<compile_context>
chip_gen: v7x
topology: tpu7x:2x2x1
jax: 0.10.0
libtpu: 0.0.40
codegen_flags: <defaults>
</compile_context>

<pallas_src>
import math

import jax
import jax.numpy as jnp
from jax.experimental import pallas as pl
from jax.experimental.pallas import tpu as pltpu

# ----------------------------- hyper-params ---------------------------------
B = 2            # batch
C = 3            # image channels
IMG = 16         # image height/width
PATCH = 8        # patch size -> 4 patches
N_PATCH = (IMG // PATCH) ** 2
VIT_SEQ = N_PATCH + 1            # +CLS
VIT_D = 32                       # vit hidden size
VIT_HEADS = 4
EMBED_DIM = 32                   # gpt2 hidden size (= embed_dim of projector)
GPT_HEADS = 4
VOCAB = 128                      # 128 -> lane-dense logits output
MAX_POS = 16
CAP_LEN = 8                      # caption seq length
EXT_LEN = CAP_LEN + 1            # +1 prepended image token
PATCH_DIM = C * PATCH * PATCH

VMEM_SPEC = pl.BlockSpec(memory_space=pltpu.MemorySpace.VMEM)

_BLOCK_KEYS = ("ln1_g", "ln1_b", "qkv_w", "qkv_b", "out_w", "out_b",
               "ln2_g", "ln2_b", "fc_w", "fc_b", "pr_w", "pr_b")


# ------------------------- in-kernel math helpers ----------------------------
def _mm(a, b, trans_b=False):
    """MXU matmul: bf16 operands, f32 accumulation. trans_b contracts b's last dim."""
    if trans_b:
        dn = (((1,), (1,)), ((), ()))
    else:
        dn = (((1,), (0,)), ((), ()))
    return jax.lax.dot_general(a.astype(jnp.bfloat16), b.astype(jnp.bfloat16),
                               dn, preferred_element_type=jnp.float32)


def _layernorm(x, g, b):
    mu = jnp.mean(x, axis=-1, keepdims=True)
    var = jnp.mean((x - mu) ** 2, axis=-1, keepdims=True)
    return (x - mu) * jax.lax.rsqrt(var + 1e-5) * g + b


def _gelu(x):
    # TODO(synk): HF ViT uses exact (erf) GELU; tanh approximation used for both
    # branches here (matches GPT2's gelu_new) to keep Mosaic lowering simple.
    return jax.nn.gelu(x, approximate=True)


def _attn_bias(n_batch, seqlen, causal, key_mask=None):
    """Additive bias (N, N), N = n_batch*seqlen: block-diagonal batch mask,
    optional causal mask and key-padding mask. Built in-kernel from iota."""
    n = n_batch * seqlen
    row = jax.lax.broadcasted_iota(jnp.int32, (n, n), 0)
    col = jax.lax.broadcasted_iota(jnp.int32, (n, n), 1)
    allowed = jnp.zeros((n, n), jnp.float32)
    for b in range(n_batch):                      # same-batch block-diagonal
        in_row = ((row >= b * seqlen) & (row < (b + 1) * seqlen)).astype(jnp.float32)
        in_col = ((col >= b * seqlen) & (col < (b + 1) * seqlen)).astype(jnp.float32)
        allowed = allowed + in_row * in_col
    if causal:
        allowed = allowed * (col <= row).astype(jnp.float32)
    if key_mask is not None:                      # key_mask: (1, N) f32 in {0,1}
        allowed = allowed * jnp.broadcast_to(key_mask, (n, n))
    return (1.0 - allowed) * (-1e9)


def _mha_block(h, blk, heads, bias):
    """Pre-LN transformer block on flattened (N, D) rows; bias is (N, N)."""
    (ln1_g, ln1_b, qkv_w, qkv_b, out_w, out_b,
     ln2_g, ln2_b, fc_w, fc_b, pr_w, pr_b) = blk
    n, d = h.shape
    dh = d // heads
    scale = 1.0 / math.sqrt(dh)

    x = _layernorm(h, ln1_g, ln1_b)
    qkv = _mm(x, qkv_w) + qkv_b                              # (N, 3D)
    attn = jnp.zeros((n, d), jnp.float32)
    for hh in range(heads):                                  # static head loop
        q = qkv[:, hh * dh:(hh + 1) * dh]
        k = qkv[:, d + hh * dh:d + (hh + 1) * dh]
        v = qkv[:, 2 * d + hh * dh:2 * d + (hh + 1) * dh]
        s = _mm(q, k, trans_b=True) * scale + bias           # (N, N)
        m = jnp.max(s, axis=-1, keepdims=True)
        p = jnp.exp(s - m)
        p = p * pl.reciprocal(jnp.sum(p, axis=-1, keepdims=True), approx=True)
        o = _mm(p, v)                                        # (N, dh)
        attn = attn + _mm(o, out_w[hh * dh:(hh + 1) * dh, :])  # == concat(heads) @ out_w
    h = h + attn + out_b

    x = _layernorm(h, ln2_g, ln2_b)
    mlp = _gelu(_mm(x, fc_w) + fc_b)
    return h + _mm(mlp, pr_w) + pr_b


# ----------------------------- fused forward kernel --------------------------
def _forward_kernel(*refs):
    (patches_ref, is_cls_ref, pos_ref, cls_sel_ref, ext_ids_ref,
     img_sc_ref, wpe_ref, key_mask_ref, labels_ref) = refs[:9]
    logits_ref, loss_ref = refs[-2:]
    p = iter([r[...] for r in refs[9:-2]])

    patch_w, patch_b, cls_tok = next(p), next(p), next(p)
    vit_blk = tuple(next(p) for _ in range(12))
    vit_lnf_g, vit_lnf_b = next(p), next(p)
    proj_w, proj_b = next(p), next(p)
    wte = next(p)
    gpt_blk = tuple(next(p) for _ in range(12))
    gpt_lnf_g, gpt_lnf_b = next(p), next(p)

    # ---------------- ViT encoder ----------------
    pe = _mm(patches_ref[...], patch_w) + patch_b             # (B*VIT_SEQ, VIT_D)
    is_cls = is_cls_ref[...]                                  # (B*VIT_SEQ, 1) f32 {0,1}
    cls_b = jnp.broadcast_to(cls_tok, pe.shape)
    h = is_cls * cls_b + (1.0 - is_cls) * pe + pos_ref[...]   # CLS/patch blend + pos
    h = _mha_block(h, vit_blk, VIT_HEADS,
                   _attn_bias(B, VIT_SEQ, causal=False))
    h = _layernorm(h, vit_lnf_g, vit_lnf_b)                   # last_hidden_state rows

    # CLS rows -> image_projector (row gather as a tiny selection matmul)
    cls_feat = _mm(cls_sel_ref[...], h)                       # (B, VIT_D)
    projected = _mm(cls_feat, proj_w) + proj_b                # (B, EMBED_DIM)

    # ---------------- GPT2 decoder ----------------
    ids = ext_ids_ref[...]                                    # (B*EXT_LEN, 1), -1 at image rows
    vocab_iota = jax.lax.broadcasted_iota(jnp.int32, (B * EXT_LEN, VOCAB), 1)
    onehot = (vocab_iota == ids).astype(jnp.float32)          # all-zero row at image rows
    tok_emb = _mm(onehot, wte)                                # wte gather via one-hot matmul
    h2 = _mm(img_sc_ref[...], projected) + tok_emb + wpe_ref[...]
    bias = _attn_bias(B, EXT_LEN, causal=True, key_mask=key_mask_ref[...])
    h2 = _mha_block(h2, gpt_blk, GPT_HEADS, bias)
    h2 = _layernorm(h2, gpt_lnf_g, gpt_lnf_b)

    logits = _mm(h2, wte, trans_b=True)                       # tied LM head (B*EXT_LEN, VOCAB)
    logits_ref[...] = logits

    # ---------------- shifted cross-entropy (ignore_index = -100) ----------------
    labels = labels_ref[...]                                  # (B*EXT_LEN, 1) pre-shifted
    m = jnp.max(logits, axis=-1, keepdims=True)
    lse = jnp.log(jnp.sum(jnp.exp(logits - m), axis=-1, keepdims=True)) + m
    tgt = jnp.sum(jnp.where(vocab_iota == labels, logits, 0.0), axis=-1, keepdims=True)
    valid = (labels != -100).astype(jnp.float32)
    loss_sum = jnp.sum((lse - tgt) * valid, axis=0, keepdims=True)   # (1, 1)
    cnt = jnp.sum(valid, axis=0, keepdims=True)
    loss_ref[...] = loss_sum / jnp.maximum(cnt, 1.0)


# ----------------------------- model glue ------------------------------------
def _flatten_params(params):
    vit, gpt = params["vit"], params["gpt2"]
    flat = [vit["patch_w"], vit["patch_b"], vit["cls"]]
    flat += [vit["block"][k] for k in _BLOCK_KEYS]
    flat += [vit["lnf_g"], vit["lnf_b"], params["proj_w"], params["proj_b"], gpt["wte"]]
    flat += [gpt["block"][k] for k in _BLOCK_KEYS]
    flat += [gpt["lnf_g"], gpt["lnf_b"]]
    return flat


def encoder_decoder_forward(params, image_inputs, input_ids, attention_mask):
    # ---- layout-only preprocessing (tiny, one-time XLA glue) ----
    x = image_inputs.reshape(B, C, IMG // PATCH, PATCH, IMG // PATCH, PATCH)
    patches = x.transpose(0, 2, 4, 1, 3, 5).reshape(B, N_PATCH, PATCH_DIM)
    patches_ext = jnp.concatenate(                               # zero row at CLS slots
        [jnp.zeros((B, 1, PATCH_DIM), jnp.float32), patches], axis=1
    ).reshape(B * VIT_SEQ, PATCH_DIM)

    rows_v = jnp.arange(B * VIT_SEQ)
    is_cls = (rows_v % VIT_SEQ == 0).astype(jnp.float32).reshape(B * VIT_SEQ, 1)
    pos_tiled = jnp.tile(params["vit"]["pos"], (B, 1))            # (B*VIT_SEQ, VIT_D)
    cls_sel = jax.nn.one_hot(jnp.arange(B) * VIT_SEQ, B * VIT_SEQ,
                             dtype=jnp.float32)                   # (B, B*VIT_SEQ)

    ids32 = input_ids.astype(jnp.int32)
    ext_ids = jnp.concatenate([jnp.full((B, 1), -1, jnp.int32), ids32],
                              axis=1).reshape(B * EXT_LEN, 1)
    rows_g = jnp.arange(B * EXT_LEN)
    img_scatter = (jax.nn.one_hot(rows_g // EXT_LEN, B, dtype=jnp.float32)
                   * (rows_g % EXT_LEN == 0).astype(jnp.float32)[:, None])
    wpe_tiled = jnp.tile(params["gpt2"]["wpe"][:EXT_LEN], (B, 1))

    ones = jnp.ones((B, 1), attention_mask.dtype)
    ext_mask = jnp.concatenate([ones, attention_mask], axis=1)
    key_mask = ext_mask.astype(jnp.float32).reshape(1, B * EXT_LEN)

    # HF shift: logits[:, :-1] vs labels[:, 1:]; prepended image label is -100.
    # (Like the PyTorch reference, padded caption tokens are NOT masked to -100.)
    ext_labels = jnp.concatenate([jnp.full((B, 1), -100, jnp.int32), ids32], axis=1)
    shift_labels = jnp.concatenate(
        [ext_labels[:, 1:], jnp.full((B, 1), -100, jnp.int32)],
        axis=1).reshape(B * EXT_LEN, 1)

    aux = [patches_ext, is_cls, pos_tiled, cls_sel, ext_ids,
           img_scatter, wpe_tiled, key_mask, shift_labels]
    flat_params = _flatten_params(params)

    logits_flat, loss = pl.pallas_call(
        _forward_kernel,
        out_shape=(jax.ShapeDtypeStruct((B * EXT_LEN, VOCAB), jnp.float32),
                   jax.ShapeDtypeStruct((1, 1), jnp.float32)),
        in_specs=[VMEM_SPEC] * (len(aux) + len(flat_params)),
        out_specs=(VMEM_SPEC, VMEM_SPEC),
    )(*aux, *flat_params)

    return {"loss": loss[0, 0],
            "logits": logits_flat.reshape(B, EXT_LEN, VOCAB)}


# ----------------------------- parameter init -------------------------------
def _block_params(key, d, mlp):
    ks = jax.random.split(key, 4)
    n = lambda k, s: jax.random.normal(k, s, jnp.float32) * 0.02
    return {
        "ln1_g": jnp.ones((1, d), jnp.float32), "ln1_b": jnp.zeros((1, d), jnp.float32),
        "qkv_w": n(ks[0], (d, 3 * d)), "qkv_b": jnp.zeros((1, 3 * d), jnp.float32),
        "out_w": n(ks[1], (d, d)), "out_b": jnp.zeros((1, d), jnp.float32),
        "ln2_g": jnp.ones((1, d), jnp.float32), "ln2_b": jnp.zeros((1, d), jnp.float32),
        "fc_w": n(ks[2], (d, mlp)), "fc_b": jnp.zeros((1, mlp), jnp.float32),
        "pr_w": n(ks[3], (mlp, d)), "pr_b": jnp.zeros((1, d), jnp.float32),
    }


def init_params(key):
    ks = jax.random.split(key, 8)
    n = lambda i, s: jax.random.normal(ks[i], s, jnp.float32) * 0.02
    vit = {
        "patch_w": n(0, (PATCH_DIM, VIT_D)),
        "patch_b": jnp.zeros((1, VIT_D), jnp.float32),
        "cls": n(1, (1, VIT_D)),
        "pos": n(2, (VIT_SEQ, VIT_D)),
        "block": _block_params(ks[3], VIT_D, 4 * VIT_D),
        "lnf_g": jnp.ones((1, VIT_D), jnp.float32),
        "lnf_b": jnp.zeros((1, VIT_D), jnp.float32),
    }
    gpt2 = {
        "wte": n(4, (VOCAB, EMBED_DIM)),
        "wpe": n(5, (MAX_POS, EMBED_DIM)),
        "block": _block_params(ks[6], EMBED_DIM, 4 * EMBED_DIM),
        "lnf_g": jnp.ones((1, EMBED_DIM), jnp.float32),
        "lnf_b": jnp.zeros((1, EMBED_DIM), jnp.float32),
    }
    return {
        "vit": vit,
        "gpt2": gpt2,
        # the wrapper's own parameter: nn.Linear(vit_hidden, embed_dim)
        "proj_w": n(7, (VIT_D, EMBED_DIM)),
        "proj_b": jnp.zeros((1, EMBED_DIM), jnp.float32),
    }


# ----------------------------------- main ------------------------------------
if __name__ == "__main__":
    key = jax.random.PRNGKey(0)
    kp, ki, kc = jax.random.split(key, 3)
    params = init_params(kp)

    image_inputs = jax.random.normal(ki, (B, C, IMG, IMG), jnp.float32)   # NCHW
    input_ids = jax.random.randint(kc, (B, CAP_LEN), 0, VOCAB, jnp.int32)
    attention_mask = jnp.ones((B, CAP_LEN), jnp.int32)
    attention_mask = attention_mask.at[1, -2:].set(0)   # some padding in row 1

    fwd = jax.jit(encoder_decoder_forward)
    out = fwd(params, image_inputs, input_ids, attention_mask)
    loss = jax.block_until_ready(out["loss"])
    logits = jax.block_until_ready(out["logits"])

    assert logits.shape == (B, EXT_LEN, VOCAB)
    assert bool(jnp.isfinite(loss))
    print("KERNEL_OK")
</pallas_src>

<mosaic_0001>
module attributes {stable_mosaic.version = 11 : i64} {
  func.func @_forward_kernel(%arg0: memref<10x192xf32, #tpu.memory_space<vmem>>, %arg1: memref<10x1xf32, #tpu.memory_space<vmem>>, %arg2: memref<10x32xf32, #tpu.memory_space<vmem>>, %arg3: memref<2x10xf32, #tpu.memory_space<vmem>>, %arg4: memref<18x1xi32, #tpu.memory_space<vmem>>, %arg5: memref<18x2xf32, #tpu.memory_space<vmem>>, %arg6: memref<18x32xf32, #tpu.memory_space<vmem>>, %arg7: memref<1x18xf32, #tpu.memory_space<vmem>>, %arg8: memref<18x1xi32, #tpu.memory_space<vmem>>, %arg9: memref<192x32xf32, #tpu.memory_space<vmem>>, %arg10: memref<1x32xf32, #tpu.memory_space<vmem>>, %arg11: memref<1x32xf32, #tpu.memory_space<vmem>>, %arg12: memref<1x32xf32, #tpu.memory_space<vmem>>, %arg13: memref<1x32xf32, #tpu.memory_space<vmem>>, %arg14: memref<32x96xf32, #tpu.memory_space<vmem>>, %arg15: memref<1x96xf32, #tpu.memory_space<vmem>>, %arg16: memref<32x32xf32, #tpu.memory_space<vmem>>, %arg17: memref<1x32xf32, #tpu.memory_space<vmem>>, %arg18: memref<1x32xf32, #tpu.memory_space<vmem>>, %arg19: memref<1x32xf32, #tpu.memory_space<vmem>>, %arg20: memref<32x128xf32, #tpu.memory_space<vmem>>, %arg21: memref<1x128xf32, #tpu.memory_space<vmem>>, %arg22: memref<128x32xf32, #tpu.memory_space<vmem>>, %arg23: memref<1x32xf32, #tpu.memory_space<vmem>>, %arg24: memref<1x32xf32, #tpu.memory_space<vmem>>, %arg25: memref<1x32xf32, #tpu.memory_space<vmem>>, %arg26: memref<32x32xf32, #tpu.memory_space<vmem>>, %arg27: memref<1x32xf32, #tpu.memory_space<vmem>>, %arg28: memref<128x32xf32, #tpu.memory_space<vmem>>, %arg29: memref<1x32xf32, #tpu.memory_space<vmem>>, %arg30: memref<1x32xf32, #tpu.memory_space<vmem>>, %arg31: memref<32x96xf32, #tpu.memory_space<vmem>>, %arg32: memref<1x96xf32, #tpu.memory_space<vmem>>, %arg33: memref<32x32xf32, #tpu.memory_space<vmem>>, %arg34: memref<1x32xf32, #tpu.memory_space<vmem>>, %arg35: memref<1x32xf32, #tpu.memory_space<vmem>>, %arg36: memref<1x32xf32, #tpu.memory_space<vmem>>, %arg37: memref<32x128xf32, #tpu.memory_space<vmem>>, %arg38: memref<1x128xf32, #tpu.memory_space<vmem>>, %arg39: memref<128x32xf32, #tpu.memory_space<vmem>>, %arg40: memref<1x32xf32, #tpu.memory_space<vmem>>, %arg41: memref<1x32xf32, #tpu.memory_space<vmem>>, %arg42: memref<1x32xf32, #tpu.memory_space<vmem>>, %arg43: memref<18x128xf32, #tpu.memory_space<vmem>>, %arg44: memref<1x1xf32, #tpu.memory_space<vmem>>) attributes {dimension_semantics = [], scalar_prefetch = 0 : i64, scratch_operands = 0 : i64, tpu.core_type = #tpu.core_type<tc>} {
    %c0 = arith.constant 0 : index
    %c0_0 = arith.constant 0 : index
    %0 = vector.load %arg9[%c0, %c0_0] : memref<192x32xf32, #tpu.memory_space<vmem>>, vector<192x32xf32>
    %c0_1 = arith.constant 0 : index
    %c0_2 = arith.constant 0 : index
    %1 = vector.load %arg10[%c0_1, %c0_2] : memref<1x32xf32, #tpu.memory_space<vmem>>, vector<1x32xf32>
    %c0_3 = arith.constant 0 : index
    %c0_4 = arith.constant 0 : index
    %2 = vector.load %arg11[%c0_3, %c0_4] : memref<1x32xf32, #tpu.memory_space<vmem>>, vector<1x32xf32>
    %c0_5 = arith.constant 0 : index
    %c0_6 = arith.constant 0 : index
    %3 = vector.load %arg12[%c0_5, %c0_6] : memref<1x32xf32, #tpu.memory_space<vmem>>, vector<1x32xf32>
    %c0_7 = arith.constant 0 : index
    %c0_8 = arith.constant 0 : index
    %4 = vector.load %arg13[%c0_7, %c0_8] : memref<1x32xf32, #tpu.memory_space<vmem>>, vector<1x32xf32>
    %c0_9 = arith.constant 0 : index
    %c0_10 = arith.constant 0 : index
    %5 = vector.load %arg14[%c0_9, %c0_10] : memref<32x96xf32, #tpu.memory_space<vmem>>, vector<32x96xf32>
    %c0_11 = arith.constant 0 : index
    %c0_12 = arith.constant 0 : index
    %6 = vector.load %arg15[%c0_11, %c0_12] : memref<1x96xf32, #tpu.memory_space<vmem>>, vector<1x96xf32>
    %c0_13 = arith.constant 0 : index
    %c0_14 = arith.constant 0 : index
    %7 = vector.load %arg16[%c0_13, %c0_14] : memref<32x32xf32, #tpu.memory_space<vmem>>, vector<32x32xf32>
    %c0_15 = arith.constant 0 : index
    %c0_16 = arith.constant 0 : index
    %8 = vector.load %arg17[%c0_15, %c0_16] : memref<1x32xf32, #tpu.memory_space<vmem>>, vector<1x32xf32>
    %c0_17 = arith.constant 0 : index
    %c0_18 = arith.constant 0 : index
    %9 = vector.load %arg18[%c0_17, %c0_18] : memref<1x32xf32, #tpu.memory_space<vmem>>, vector<1x32xf32>
    %c0_19 = arith.constant 0 : index
    %c0_20 = arith.constant 0 : index
    %10 = vector.load %arg19[%c0_19, %c0_20] : memref<1x32xf32, #tpu.memory_space<vmem>>, vector<1x32xf32>
    %c0_21 = arith.constant 0 : index
    %c0_22 = arith.constant 0 : index
    %11 = vector.load %arg20[%c0_21, %c0_22] : memref<32x128xf32, #tpu.memory_space<vmem>>, vector<32x128xf32>
    %c0_23 = arith.constant 0 : index
    %c0_24 = arith.constant 0 : index
    %12 = vector.load %arg21[%c0_23, %c0_24] : memref<1x128xf32, #tpu.memory_space<vmem>>, vector<1x128xf32>
    %c0_25 = arith.constant 0 : index
    %c0_26 = arith.constant 0 : index
    %13 = vector.load %arg22[%c0_25, %c0_26] : memref<128x32xf32, #tpu.memory_space<vmem>>, vector<128x32xf32>
    %c0_27 = arith.constant 0 : index
    %c0_28 = arith.constant 0 : index
    %14 = vector.load %arg23[%c0_27, %c0_28] : memref<1x32xf32, #tpu.memory_space<vmem>>, vector<1x32xf32>
    %c0_29 = arith.constant 0 : index
    %c0_30 = arith.constant 0 : index
    %15 = vector.load %arg24[%c0_29, %c0_30] : memref<1x32xf32, #tpu.memory_space<vmem>>, vector<1x32xf32>
    %c0_31 = arith.constant 0 : index
    %c0_32 = arith.constant 0 : index
    %16 = vector.load %arg25[%c0_31, %c0_32] : memref<1x32xf32, #tpu.memory_space<vmem>>, vector<1x32xf32>
    %c0_33 = arith.constant 0 : index
    %c0_34 = arith.constant 0 : index
    %17 = vector.load %arg26[%c0_33, %c0_34] : memref<32x32xf32, #tpu.memory_space<vmem>>, vector<32x32xf32>
    %c0_35 = arith.constant 0 : index
    %c0_36 = arith.constant 0 : index
    %18 = vector.load %arg27[%c0_35, %c0_36] : memref<1x32xf32, #tpu.memory_space<vmem>>, vector<1x32xf32>
    %c0_37 = arith.constant 0 : index
    %c0_38 = arith.constant 0 : index
    %19 = vector.load %arg28[%c0_37, %c0_38] : memref<128x32xf32, #tpu.memory_space<vmem>>, vector<128x32xf32>
    %c0_39 = arith.constant 0 : index
    %c0_40 = arith.constant 0 : index
    %20 = vector.load %arg29[%c0_39, %c0_40] : memref<1x32xf32, #tpu.memory_space<vmem>>, vector<1x32xf32>
    %c0_41 = arith.constant 0 : index
    %c0_42 = arith.constant 0 : index
    %21 = vector.load %arg30[%c0_41, %c0_42] : memref<1x32xf32, #tpu.memory_space<vmem>>, vector<1x32xf32>
    %c0_43 = arith.constant 0 : index
    %c0_44 = arith.constant 0 : index
    %22 = vector.load %arg31[%c0_43, %c0_44] : memref<32x96xf32, #tpu.memory_space<vmem>>, vector<32x96xf32>
    %c0_45 = arith.constant 0 : index
    %c0_46 = arith.constant 0 : index
    %23 = vector.load %arg32[%c0_45, %c0_46] : memref<1x96xf32, #tpu.memory_space<vmem>>, vector<1x96xf32>
    %c0_47 = arith.constant 0 : index
    %c0_48 = arith.constant 0 : index
    %24 = vector.load %arg33[%c0_47, %c0_48] : memref<32x32xf32, #tpu.memory_space<vmem>>, vector<32x32xf32>
    %c0_49 = arith.constant 0 : index
    %c0_50 = arith.constant 0 : index
    %25 = vector.load %arg34[%c0_49, %c0_50] : memref<1x32xf32, #tpu.memory_space<vmem>>, vector<1x32xf32>
    %c0_51 = arith.constant 0 : index
    %c0_52 = arith.constant 0 : index
    %26 = vector.load %arg35[%c0_51, %c0_52] : memref<1x32xf32, #tpu.memory_space<vmem>>, vector<1x32xf32>
    %c0_53 = arith.constant 0 : index
    %c0_54 = arith.constant 0 : index
    %27 = vector.load %arg36[%c0_53, %c0_54] : memref<1x32xf32, #tpu.memory_space<vmem>>, vector<1x32xf32>
    %c0_55 = arith.constant 0 : index
    %c0_56 = arith.constant 0 : index
    %28 = vector.load %arg37[%c0_55, %c0_56] : memref<32x128xf32, #tpu.memory_space<vmem>>, vector<32x128xf32>
    %c0_57 = arith.constant 0 : index
    %c0_58 = arith.constant 0 : index
    %29 = vector.load %arg38[%c0_57, %c0_58] : memref<1x128xf32, #tpu.memory_space<vmem>>, vector<1x128xf32>
    %c0_59 = arith.constant 0 : index
    %c0_60 = arith.constant 0 : index
    %30 = vector.load %arg39[%c0_59, %c0_60] : memref<128x32xf32, #tpu.memory_space<vmem>>, vector<128x32xf32>
    %c0_61 = arith.constant 0 : index
    %c0_62 = arith.constant 0 : index
    %31 = vector.load %arg40[%c0_61, %c0_62] : memref<1x32xf32, #tpu.memory_space<vmem>>, vector<1x32xf32>
    %c0_63 = arith.constant 0 : index
    %c0_64 = arith.constant 0 : index
    %32 = vector.load %arg41[%c0_63, %c0_64] : memref<1x32xf32, #tpu.memory_space<vmem>>, vector<1x32xf32>
    %c0_65 = arith.constant 0 : index
    %c0_66 = arith.constant 0 : index
    %33 = vector.load %arg42[%c0_65, %c0_66] : memref<1x32xf32, #tpu.memory_space<vmem>>, vector<1x32xf32>
    %c0_67 = arith.constant 0 : index
    %c0_68 = arith.constant 0 : index
    %34 = vector.load %arg0[%c0_67, %c0_68] : memref<10x192xf32, #tpu.memory_space<vmem>>, vector<10x192xf32>
    %35 = arith.truncf %34 : vector<10x192xf32> to vector<10x192xbf16>
    %36 = arith.truncf %0 : vector<192x32xf32> to vector<192x32xbf16>
    %cst = arith.constant dense<0.000000e+00> : vector<10x32xf32>
    %37 = tpu.matmul %35, %36, %cst {dimension_numbers = #tpu.dot_dimension_numbers<[1], [0], [0], [1], [0, 0, 1, 1], [], []>} : vector<10x192xbf16>, vector<192x32xbf16>, vector<10x32xf32> -> vector<10x32xf32>
    %38 = vector.broadcast %1 : vector<1x32xf32> to vector<10x32xf32>
    %39 = arith.addf %37, %38 : vector<10x32xf32>
    %c0_69 = arith.constant 0 : index
    %c0_70 = arith.constant 0 : index
    %40 = vector.load %arg1[%c0_69, %c0_70] : memref<10x1xf32, #tpu.memory_space<vmem>>, vector<10x1xf32>
    %41 = vector.shape_cast %2 : vector<1x32xf32> to vector<1x32xf32>
    %42 = vector.broadcast %41 : vector<1x32xf32> to vector<10x32xf32>
    %43 = vector.broadcast %40 : vector<10x1xf32> to vector<10x32xf32>
    %44 = arith.mulf %43, %42 : vector<10x32xf32>
    %cst_71 = arith.constant 1.000000e+00 : f32
    %45 = vector.broadcast %cst_71 : f32 to vector<10x1xf32>
    %46 = arith.subf %45, %40 : vector<10x1xf32>
    %47 = vector.broadcast %46 : vector<10x1xf32> to vector<10x32xf32>
    %48 = arith.mulf %47, %39 : vector<10x32xf32>
    %49 = arith.addf %44, %48 : vector<10x32xf32>
    %c0_72 = arith.constant 0 : index
    %c0_73 = arith.constant 0 : index
    %50 = vector.load %arg2[%c0_72, %c0_73] : memref<10x32xf32, #tpu.memory_space<vmem>>, vector<10x32xf32>
    %51 = arith.addf %49, %50 : vector<10x32xf32>
    %52 = tpu.iota {dimensions = array<i32: 0>} : vector<10x10xi32>
    %53 = tpu.iota {dimensions = array<i32: 1>} : vector<10x10xi32>
    %cst_74 = arith.constant 0.000000e+00 : f32
    %54 = vector.broadcast %cst_74 : f32 to vector<10x10xf32>
    %c0_i32 = arith.constant 0 : i32
    %55 = vector.broadcast %c0_i32 : i32 to vector<10x10xi32>
    %56 = arith.cmpi sge, %52, %55 : vector<10x10xi32>
    %c5_i32 = arith.constant 5 : i32
    %57 = vector.broadcast %c5_i32 : i32 to vector<10x10xi32>
    %58 = arith.cmpi slt, %52, %57 : vector<10x10xi32>
    %59 = arith.andi %56, %58 : vector<10x10xi1>
    %60 = arith.extui %59 : vector<10x10xi1> to vector<10x10xi32>
    %61 = arith.sitofp %60 : vector<10x10xi32> to vector<10x10xf32>
    %c0_i32_75 = arith.constant 0 : i32
    %62 = vector.broadcast %c0_i32_75 : i32 to vector<10x10xi32>
    %63 = arith.cmpi sge, %53, %62 : vector<10x10xi32>
    %c5_i32_76 = arith.constant 5 : i32
    %64 = vector.broadcast %c5_i32_76 : i32 to vector<10x10xi32>
    %65 = arith.cmpi slt, %53, %64 : vector<10x10xi32>
    %66 = arith.andi %63, %65 : vector<10x10xi1>
    %67 = arith.extui %66 : vector<10x10xi1> to vector<10x10xi32>
    %68 = arith.sitofp %67 : vector<10x10xi32> to vector<10x10xf32>
    %69 = arith.mulf %61, %68 : vector<10x10xf32>
    %70 = arith.addf %54, %69 : vector<10x10xf32>
    %c5_i32_77 = arith.constant 5 : i32
    %71 = vector.broadcast %c5_i32_77 : i32 to vector<10x10xi32>
    %72 = arith.cmpi sge, %52, %71 : vector<10x10xi32>
    %c10_i32 = arith.constant 10 : i32
    %73 = vector.broadcast %c10_i32 : i32 to vector<10x10xi32>
    %74 = arith.cmpi slt, %52, %73 : vector<10x10xi32>
    %75 = arith.andi %72, %74 : vector<10x10xi1>
    %76 = arith.extui %75 : vector<10x10xi1> to vector<10x10xi32>
    %77 = arith.sitofp %76 : vector<10x10xi32> to vector<10x10xf32>
    %c5_i32_78 = arith.constant 5 : i32
    %78 = vector.broadcast %c5_i32_78 : i32 to vector<10x10xi32>
    %79 = arith.cmpi sge, %53, %78 : vector<10x10xi32>
    %c10_i32_79 = arith.constant 10 : i32
    %80 = vector.broadcast %c10_i32_79 : i32 to vector<10x10xi32>
    %81 = arith.cmpi slt, %53, %80 : vector<10x10xi32>
    %82 = arith.andi %79, %81 : vector<10x10xi1>
    %83 = arith.extui %82 : vector<10x10xi1> to vector<10x10xi32>
    %84 = arith.sitofp %83 : vector<10x10xi32> to vector<10x10xf32>
    %85 = arith.mulf %77, %84 : vector<10x10xf32>
    %86 = arith.addf %70, %85 : vector<10x10xf32>
    %cst_80 = arith.constant 1.000000e+00 : f32
    %87 = vector.broadcast %cst_80 : f32 to vector<10x10xf32>
    %88 = arith.subf %87, %86 : vector<10x10xf32>
    %cst_81 = arith.constant -1.000000e+09 : f32
    %89 = vector.broadcast %cst_81 : f32 to vector<10x10xf32>
    %90 = arith.mulf %88, %89 : vector<10x10xf32>
    %cst_82 = arith.constant dense<0.000000e+00> : vector<10xf32>
    %91 = vector.multi_reduction <add>, %51, %cst_82 [1] : vector<10x32xf32> to vector<10xf32>
    %92 = vector.shape_cast %91 : vector<10xf32> to vector<10x1xf32>
    %cst_83 = arith.constant 3.200000e+01 : f32
    %93 = vector.broadcast %cst_83 : f32 to vector<10x1xf32>
    %94 = arith.divf %92, %93 : vector<10x1xf32>
    %95 = vector.broadcast %94 : vector<10x1xf32> to vector<10x32xf32>
    %96 = arith.subf %51, %95 : vector<10x32xf32>
    %97 = arith.mulf %96, %96 : vector<10x32xf32>
    %cst_84 = arith.constant dense<0.000000e+00> : vector<10xf32>
    %98 = vector.multi_reduction <add>, %97, %cst_84 [1] : vector<10x32xf32> to vector<10xf32>
    %99 = vector.shape_cast %98 : vector<10xf32> to vector<10x1xf32>
    %cst_85 = arith.constant 3.200000e+01 : f32
    %100 = vector.broadcast %cst_85 : f32 to vector<10x1xf32>
    %101 = arith.divf %99, %100 : vector<10x1xf32>
    %102 = vector.broadcast %94 : vector<10x1xf32> to vector<10x32xf32>
    %103 = arith.subf %51, %102 : vector<10x32xf32>
    %cst_86 = arith.constant 9.99999974E-6 : f32
    %104 = vector.broadcast %cst_86 : f32 to vector<10x1xf32>
    %105 = arith.addf %101, %104 : vector<10x1xf32>
    %106 = math.rsqrt %105 : vector<10x1xf32>
    %107 = vector.broadcast %106 : vector<10x1xf32> to vector<10x32xf32>
    %108 = arith.mulf %103, %107 : vector<10x32xf32>
    %109 = vector.broadcast %3 : vector<1x32xf32> to vector<10x32xf32>
    %110 = arith.mulf %108, %109 : vector<10x32xf32>
    %111 = vector.broadcast %4 : vector<1x32xf32> to vector<10x32xf32>
    %112 = arith.addf %110, %111 : vector<10x32xf32>
    %113 = arith.truncf %112 : vector<10x32xf32> to vector<10x32xbf16>
    %114 = arith.truncf %5 : vector<32x96xf32> to vector<32x96xbf16>
    %cst_87 = arith.constant dense<0.000000e+00> : vector<10x96xf32>
    %115 = tpu.matmul %113, %114, %cst_87 {dimension_numbers = #tpu.dot_dimension_numbers<[1], [0], [0], [1], [0, 0, 1, 1], [], []>} : vector<10x32xbf16>, vector<32x96xbf16>, vector<10x96xf32> -> vector<10x96xf32>
    %116 = vector.broadcast %6 : vector<1x96xf32> to vector<10x96xf32>
    %117 = arith.addf %115, %116 : vector<10x96xf32>
    %cst_88 = arith.constant 0.000000e+00 : f32
    %118 = vector.broadcast %cst_88 : f32 to vector<10x32xf32>
    %119 = vector.extract_strided_slice %117 {offsets = [0, 0], sizes = [10, 8], strides = [1, 1]} : vector<10x96xf32> to vector<10x8xf32>
    %120 = vector.extract_strided_slice %117 {offsets = [0, 32], sizes = [10, 8], strides = [1, 1]} : vector<10x96xf32> to vector<10x8xf32>
    %121 = vector.extract_strided_slice %117 {offsets = [0, 64], sizes = [10, 8], strides = [1, 1]} : vector<10x96xf32> to vector<10x8xf32>
    %122 = arith.truncf %119 : vector<10x8xf32> to vector<10x8xbf16>
    %123 = arith.truncf %120 : vector<10x8xf32> to vector<10x8xbf16>
    %cst_89 = arith.constant dense<0.000000e+00> : vector<10x10xf32>
    %124 = tpu.matmul %122, %123, %cst_89 {dimension_numbers = #tpu.dot_dimension_numbers<[1], [1], [0], [0], [0, 0, 1, 0], [], []>} : vector<10x8xbf16>, vector<10x8xbf16>, vector<10x10xf32> -> vector<10x10xf32>
    %cst_90 = arith.constant 0.353553385 : f32
    %125 = vector.broadcast %cst_90 : f32 to vector<10x10xf32>
    %126 = arith.mulf %124, %125 : vector<10x10xf32>
    %127 = arith.addf %126, %90 : vector<10x10xf32>
    %cst_91 = arith.constant dense<0xFF800000> : vector<10xf32>
    %128 = vector.multi_reduction <maximumf>, %127, %cst_91 [1] : vector<10x10xf32> to vector<10xf32>
    %129 = vector.shape_cast %128 : vector<10xf32> to vector<10x1xf32>
    %130 = vector.broadcast %129 : vector<10x1xf32> to vector<10x10xf32>
    %131 = arith.subf %127, %130 : vector<10x10xf32>
    %132 = math.exp %131 : vector<10x10xf32>
    %cst_92 = arith.constant dense<0.000000e+00> : vector<10xf32>
    %133 = vector.multi_reduction <add>, %132, %cst_92 [1] : vector<10x10xf32> to vector<10xf32>
    %134 = vector.shape_cast %133 : vector<10xf32> to vector<10x1xf32>
    %135 = tpu.reciprocal %134 {approx = true} : vector<10x1xf32> -> vector<10x1xf32>
    %136 = vector.broadcast %135 : vector<10x1xf32> to vector<10x10xf32>
    %137 = arith.mulf %132, %136 : vector<10x10xf32>
    %138 = arith.truncf %137 : vector<10x10xf32> to vector<10x10xbf16>
    %139 = arith.truncf %121 : vector<10x8xf32> to vector<10x8xbf16>
    %cst_93 = arith.constant dense<0.000000e+00> : vector<10x8xf32>
    %140 = tpu.matmul %138, %139, %cst_93 {dimension_numbers = #tpu.dot_dimension_numbers<[1], [0], [0], [1], [0, 0, 1, 1], [], []>} : vector<10x10xbf16>, vector<10x8xbf16>, vector<10x8xf32> -> vector<10x8xf32>
    %141 = vector.extract_strided_slice %7 {offsets = [0, 0], sizes = [8, 32], strides = [1, 1]} : vector<32x32xf32> to vector<8x32xf32>
    %142 = arith.truncf %140 : vector<10x8xf32> to vector<10x8xbf16>
    %143 = arith.truncf %141 : vector<8x32xf32> to vector<8x32xbf16>
    %cst_94 = arith.constant dense<0.000000e+00> : vector<10x32xf32>
    %144 = tpu.matmul %142, %143, %cst_94 {dimension_numbers = #tpu.dot_dimension_numbers<[1], [0], [0], [1], [0, 0, 1, 1], [], []>} : vector<10x8xbf16>, vector<8x32xbf16>, vector<10x32xf32> -> vector<10x32xf32>
    %145 = arith.addf %118, %144 : vector<10x32xf32>
    %146 = vector.extract_strided_slice %117 {offsets = [0, 8], sizes = [10, 8], strides = [1, 1]} : vector<10x96xf32> to vector<10x8xf32>
    %147 = vector.extract_strided_slice %117 {offsets = [0, 40], sizes = [10, 8], strides = [1, 1]} : vector<10x96xf32> to vector<10x8xf32>
    %148 = vector.extract_strided_slice %117 {offsets = [0, 72], sizes = [10, 8], strides = [1, 1]} : vector<10x96xf32> to vector<10x8xf32>
    %149 = arith.truncf %146 : vector<10x8xf32> to vector<10x8xbf16>
    %150 = arith.truncf %147 : vector<10x8xf32> to vector<10x8xbf16>
    %cst_95 = arith.constant dense<0.000000e+00> : vector<10x10xf32>
    %151 = tpu.matmul %149, %150, %cst_95 {dimension_numbers = #tpu.dot_dimension_numbers<[1], [1], [0], [0], [0, 0, 1, 0], [], []>} : vector<10x8xbf16>, vector<10x8xbf16>, vector<10x10xf32> -> vector<10x10xf32>
    %cst_96 = arith.constant 0.353553385 : f32
    %152 = vector.broadcast %cst_96 : f32 to vector<10x10xf32>
    %153 = arith.mulf %151, %152 : vector<10x10xf32>
    %154 = arith.addf %153, %90 : vector<10x10xf32>
    %cst_97 = arith.constant dense<0xFF800000> : vector<10xf32>
    %155 = vector.multi_reduction <maximumf>, %154, %cst_97 [1] : vector<10x10xf32> to vector<10xf32>
    %156 = vector.shape_cast %155 : vector<10xf32> to vector<10x1xf32>
    %157 = vector.broadcast %156 : vector<10x1xf32> to vector<10x10xf32>
    %158 = arith.subf %154, %157 : vector<10x10xf32>
    %159 = math.exp %158 : vector<10x10xf32>
    %cst_98 = arith.constant dense<0.000000e+00> : vector<10xf32>
    %160 = vector.multi_reduction <add>, %159, %cst_98 [1] : vector<10x10xf32> to vector<10xf32>
    %161 = vector.shape_cast %160 : vector<10xf32> to vector<10x1xf32>
    %162 = tpu.reciprocal %161 {approx = true} : vector<10x1xf32> -> vector<10x1xf32>
    %163 = vector.broadcast %162 : vector<10x1xf32> to vector<10x10xf32>
    %164 = arith.mulf %159, %163 : vector<10x10xf32>
    %165 = arith.truncf %164 : vector<10x10xf32> to vector<10x10xbf16>
    %166 = arith.truncf %148 : vector<10x8xf32> to vector<10x8xbf16>
    %cst_99 = arith.constant dense<0.000000e+00> : vector<10x8xf32>
    %167 = tpu.matmul %165, %166, %cst_99 {dimension_numbers = #tpu.dot_dimension_numbers<[1], [0], [0], [1], [0, 0, 1, 1], [], []>} : vector<10x10xbf16>, vector<10x8xbf16>, vector<10x8xf32> -> vector<10x8xf32>
    %168 = vector.extract_strided_slice %7 {offsets = [8, 0], sizes = [8, 32], strides = [1, 1]} : vector<32x32xf32> to vector<8x32xf32>
    %169 = arith.truncf %167 : vector<10x8xf32> to vector<10x8xbf16>
    %170 = arith.truncf %168 : vector<8x32xf32> to vector<8x32xbf16>
    %cst_100 = arith.constant dense<0.000000e+00> : vector<10x32xf32>
    %171 = tpu.matmul %169, %170, %cst_100 {dimension_numbers = #tpu.dot_dimension_numbers<[1], [0], [0], [1], [0, 0, 1, 1], [], []>} : vector<10x8xbf16>, vector<8x32xbf16>, vector<10x32xf32> -> vector<10x32xf32>
    %172 = arith.addf %145, %171 : vector<10x32xf32>
    %173 = vector.extract_strided_slice %117 {offsets = [0, 16], sizes = [10, 8], strides = [1, 1]} : vector<10x96xf32> to vector<10x8xf32>
    %174 = vector.extract_strided_slice %117 {offsets = [0, 48], sizes = [10, 8], strides = [1, 1]} : vector<10x96xf32> to vector<10x8xf32>
    %175 = vector.extract_strided_slice %117 {offsets = [0, 80], sizes = [10, 8], strides = [1, 1]} : vector<10x96xf32> to vector<10x8xf32>
    %176 = arith.truncf %173 : vector<10x8xf32> to vector<10x8xbf16>
    %177 = arith.truncf %174 : vector<10x8xf32> to vector<10x8xbf16>
    %cst_101 = arith.constant dense<0.000000e+00> : vector<10x10xf32>
    %178 = tpu.matmul %176, %177, %cst_101 {dimension_numbers = #tpu.dot_dimension_numbers<[1], [1], [0], [0], [0, 0, 1, 0], [], []>} : vector<10x8xbf16>, vector<10x8xbf16>, vector<10x10xf32> -> vector<10x10xf32>
    %cst_102 = arith.constant 0.353553385 : f32
    %179 = vector.broadcast %cst_102 : f32 to vector<10x10xf32>
    %180 = arith.mulf %178, %179 : vector<10x10xf32>
    %181 = arith.addf %180, %90 : vector<10x10xf32>
    %cst_103 = arith.constant dense<0xFF800000> : vector<10xf32>
    %182 = vector.multi_reduction <maximumf>, %181, %cst_103 [1] : vector<10x10xf32> to vector<10xf32>
    %183 = vector.shape_cast %182 : vector<10xf32> to vector<10x1xf32>
    %184 = vector.broadcast %183 : vector<10x1xf32> to vector<10x10xf32>
    %185 = arith.subf %181, %184 : vector<10x10xf32>
    %186 = math.exp %185 : vector<10x10xf32>
    %cst_104 = arith.constant dense<0.000000e+00> : vector<10xf32>
    %187 = vector.multi_reduction <add>, %186, %cst_104 [1] : vector<10x10xf32> to vector<10xf32>
    %188 = vector.shape_cast %187 : vector<10xf32> to vector<10x1xf32>
    %189 = tpu.reciprocal %188 {approx = true} : vector<10x1xf32> -> vector<10x1xf32>
    %190 = vector.broadcast %189 : vector<10x1xf32> to vector<10x10xf32>
    %191 = arith.mulf %186, %190 : vector<10x10xf32>
    %192 = arith.truncf %191 : vector<10x10xf32> to vector<10x10xbf16>
    %193 = arith.truncf %175 : vector<10x8xf32> to vector<10x8xbf16>
    %cst_105 = arith.constant dense<0.000000e+00> : vector<10x8xf32>
    %194 = tpu.matmul %192, %193, %cst_105 {dimension_numbers = #tpu.dot_dimension_numbers<[1], [0], [0], [1], [0, 0, 1, 1], [], []>} : vector<10x10xbf16>, vector<10x8xbf16>, vector<10x8xf32> -> vector<10x8xf32>
    %195 = vector.extract_strided_slice %7 {offsets = [16, 0], sizes = [8, 32], strides = [1, 1]} : vector<32x32xf32> to vector<8x32xf32>
    %196 = arith.truncf %194 : vector<10x8xf32> to vector<10x8xbf16>
    %197 = arith.truncf %195 : vector<8x32xf32> to vector<8x32xbf16>
    %cst_106 = arith.constant dense<0.000000e+00> : vector<10x32xf32>
    %198 = tpu.matmul %196, %197, %cst_106 {dimension_numbers = #tpu.dot_dimension_numbers<[1], [0], [0], [1], [0, 0, 1, 1], [], []>} : vector<10x8xbf16>, vector<8x32xbf16>, vector<10x32xf32> -> vector<10x32xf32>
    %199 = arith.addf %172, %198 : vector<10x32xf32>
    %200 = vector.extract_strided_slice %117 {offsets = [0, 24], sizes = [10, 8], strides = [1, 1]} : vector<10x96xf32> to vector<10x8xf32>
    %201 = vector.extract_strided_slice %117 {offsets = [0, 56], sizes = [10, 8], strides = [1, 1]} : vector<10x96xf32> to vector<10x8xf32>
    %202 = vector.extract_strided_slice %117 {offsets = [0, 88], sizes = [10, 8], strides = [1, 1]} : vector<10x96xf32> to vector<10x8xf32>
    %203 = arith.truncf %200 : vector<10x8xf32> to vector<10x8xbf16>
    %204 = arith.truncf %201 : vector<10x8xf32> to vector<10x8xbf16>
    %cst_107 = arith.constant dense<0.000000e+00> : vector<10x10xf32>
    %205 = tpu.matmul %203, %204, %cst_107 {dimension_numbers = #tpu.dot_dimension_numbers<[1], [1], [0], [0], [0, 0, 1, 0], [], []>} : vector<10x8xbf16>, vector<10x8xbf16>, vector<10x10xf32> -> vector<10x10xf32>
    %cst_108 = arith.constant 0.353553385 : f32
    %206 = vector.broadcast %cst_108 : f32 to vector<10x10xf32>
    %207 = arith.mulf %205, %206 : vector<10x10xf32>
    %208 = arith.addf %207, %90 : vector<10x10xf32>
    %cst_109 = arith.constant dense<0xFF800000> : vector<10xf32>
    %209 = vector.multi_reduction <maximumf>, %208, %cst_109 [1] : vector<10x10xf32> to vector<10xf32>
    %210 = vector.shape_cast %209 : vector<10xf32> to vector<10x1xf32>
    %211 = vector.broadcast %210 : vector<10x1xf32> to vector<10x10xf32>
    %212 = arith.subf %208, %211 : vector<10x10xf32>
    %213 = math.exp %212 : vector<10x10xf32>
    %cst_110 = arith.constant dense<0.000000e+00> : vector<10xf32>
    %214 = vector.multi_reduction <add>, %213, %cst_110 [1] : vector<10x10xf32> to vector<10xf32>
    %215 = vector.shape_cast %214 : vector<10xf32> to vector<10x1xf32>
    %216 = tpu.reciprocal %215 {approx = true} : vector<10x1xf32> -> vector<10x1xf32>
    %217 = vector.broadcast %216 : vector<10x1xf32> to vector<10x10xf32>
    %218 = arith.mulf %213, %217 : vector<10x10xf32>
    %219 = arith.truncf %218 : vector<10x10xf32> to vector<10x10xbf16>
    %220 = arith.truncf %202 : vector<10x8xf32> to vector<10x8xbf16>
    %cst_111 = arith.constant dense<0.000000e+00> : vector<10x8xf32>
    %221 = tpu.matmul %219, %220, %cst_111 {dimension_numbers = #tpu.dot_dimension_numbers<[1], [0], [0], [1], [0, 0, 1, 1], [], []>} : vector<10x10xbf16>, vector<10x8xbf16>, vector<10x8xf32> -> vector<10x8xf32>
    %222 = vector.extract_strided_slice %7 {offsets = [24, 0], sizes = [8, 32], strides = [1, 1]} : vector<32x32xf32> to vector<8x32xf32>
    %223 = arith.truncf %221 : vector<10x8xf32> to vector<10x8xbf16>
    %224 = arith.truncf %222 : vector<8x32xf32> to vector<8x32xbf16>
    %cst_112 = arith.constant dense<0.000000e+00> : vector<10x32xf32>
    %225 = tpu.matmul %223, %224, %cst_112 {dimension_numbers = #tpu.dot_dimension_numbers<[1], [0], [0], [1], [0, 0, 1, 1], [], []>} : vector<10x8xbf16>, vector<8x32xbf16>, vector<10x32xf32> -> vector<10x32xf32>
    %226 = arith.addf %199, %225 : vector<10x32xf32>
    %227 = arith.addf %51, %226 : vector<10x32xf32>
    %228 = vector.broadcast %8 : vector<1x32xf32> to vector<10x32xf32>
    %229 = arith.addf %227, %228 : vector<10x32xf32>
    %cst_113 = arith.constant dense<0.000000e+00> : vector<10xf32>
    %230 = vector.multi_reduction <add>, %229, %cst_113 [1] : vector<10x32xf32> to vector<10xf32>
    %231 = vector.shape_cast %230 : vector<10xf32> to vector<10x1xf32>
    %cst_114 = arith.constant 3.200000e+01 : f32
    %232 = vector.broadcast %cst_114 : f32 to vector<10x1xf32>
    %233 = arith.divf %231, %232 : vector<10x1xf32>
    %234 = vector.broadcast %233 : vector<10x1xf32> to vector<10x32xf32>
    %235 = arith.subf %229, %234 : vector<10x32xf32>
    %236 = arith.mulf %235, %235 : vector<10x32xf32>
    %cst_115 = arith.constant dense<0.000000e+00> : vector<10xf32>
    %237 = vector.multi_reduction <add>, %236, %cst_115 [1] : vector<10x32xf32> to vector<10xf32>
    %238 = vector.shape_cast %237 : vector<10xf32> to vector<10x1xf32>
    %cst_116 = arith.constant 3.200000e+01 : f32
    %239 = vector.broadcast %cst_116 : f32 to vector<10x1xf32>
    %240 = arith.divf %238, %239 : vector<10x1xf32>
    %241 = vector.broadcast %233 : vector<10x1xf32> to vector<10x32xf32>
    %242 = arith.subf %229, %241 : vector<10x32xf32>
    %cst_117 = arith.constant 9.99999974E-6 : f32
    %243 = vector.broadcast %cst_117 : f32 to vector<10x1xf32>
    %244 = arith.addf %240, %243 : vector<10x1xf32>
    %245 = math.rsqrt %244 : vector<10x1xf32>
    %246 = vector.broadcast %245 : vector<10x1xf32> to vector<10x32xf32>
    %247 = arith.mulf %242, %246 : vector<10x32xf32>
    %248 = vector.broadcast %9 : vector<1x32xf32> to vector<10x32xf32>
    %249 = arith.mulf %247, %248 : vector<10x32xf32>
    %250 = vector.broadcast %10 : vector<1x32xf32> to vector<10x32xf32>
    %251 = arith.addf %249, %250 : vector<10x32xf32>
    %252 = arith.truncf %251 : vector<10x32xf32> to vector<10x32xbf16>
    %253 = arith.truncf %11 : vector<32x128xf32> to vector<32x128xbf16>
    %cst_118 = arith.constant dense<0.000000e+00> : vector<10x128xf32>
    %254 = tpu.matmul %252, %253, %cst_118 {dimension_numbers = #tpu.dot_dimension_numbers<[1], [0], [0], [1], [0, 0, 1, 1], [], []>} : vector<10x32xbf16>, vector<32x128xbf16>, vector<10x128xf32> -> vector<10x128xf32>
    %255 = vector.broadcast %12 : vector<1x128xf32> to vector<10x128xf32>
    %256 = arith.addf %254, %255 : vector<10x128xf32>
    %257 = arith.mulf %256, %256 : vector<10x128xf32>
    %258 = arith.mulf %256, %257 : vector<10x128xf32>
    %cst_119 = arith.constant 4.471500e-02 : f32
    %259 = vector.broadcast %cst_119 : f32 to vector<10x128xf32>
    %260 = arith.mulf %259, %258 : vector<10x128xf32>
    %261 = arith.addf %256, %260 : vector<10x128xf32>
    %cst_120 = arith.constant 0.797884583 : f32
    %262 = vector.broadcast %cst_120 : f32 to vector<10x128xf32>
    %263 = arith.mulf %262, %261 : vector<10x128xf32>
    %264 = math.tanh %263 : vector<10x128xf32>
    %cst_121 = arith.constant 1.000000e+00 : f32
    %265 = vector.broadcast %cst_121 : f32 to vector<10x128xf32>
    %266 = arith.addf %265, %264 : vector<10x128xf32>
    %cst_122 = arith.constant 5.000000e-01 : f32
    %267 = vector.broadcast %cst_122 : f32 to vector<10x128xf32>
    %268 = arith.mulf %267, %266 : vector<10x128xf32>
    %269 = arith.mulf %256, %268 : vector<10x128xf32>
    %270 = arith.truncf %269 : vector<10x128xf32> to vector<10x128xbf16>
    %271 = arith.truncf %13 : vector<128x32xf32> to vector<128x32xbf16>
    %cst_123 = arith.constant dense<0.000000e+00> : vector<10x32xf32>
    %272 = tpu.matmul %270, %271, %cst_123 {dimension_numbers = #tpu.dot_dimension_numbers<[1], [0], [0], [1], [0, 0, 1, 1], [], []>} : vector<10x128xbf16>, vector<128x32xbf16>, vector<10x32xf32> -> vector<10x32xf32>
    %273 = arith.addf %229, %272 : vector<10x32xf32>
    %274 = vector.broadcast %14 : vector<1x32xf32> to vector<10x32xf32>
    %275 = arith.addf %273, %274 : vector<10x32xf32>
    %cst_124 = arith.constant dense<0.000000e+00> : vector<10xf32>
    %276 = vector.multi_reduction <add>, %275, %cst_124 [1] : vector<10x32xf32> to vector<10xf32>
    %277 = vector.shape_cast %276 : vector<10xf32> to vector<10x1xf32>
    %cst_125 = arith.constant 3.200000e+01 : f32
    %278 = vector.broadcast %cst_125 : f32 to vector<10x1xf32>
    %279 = arith.divf %277, %278 : vector<10x1xf32>
    %280 = vector.broadcast %279 : vector<10x1xf32> to vector<10x32xf32>
    %281 = arith.subf %275, %280 : vector<10x32xf32>
    %282 = arith.mulf %281, %281 : vector<10x32xf32>
    %cst_126 = arith.constant dense<0.000000e+00> : vector<10xf32>
    %283 = vector.multi_reduction <add>, %282, %cst_126 [1] : vector<10x32xf32> to vector<10xf32>
    %284 = vector.shape_cast %283 : vector<10xf32> to vector<10x1xf32>
    %cst_127 = arith.constant 3.200000e+01 : f32
    %285 = vector.broadcast %cst_127 : f32 to vector<10x1xf32>
    %286 = arith.divf %284, %285 : vector<10x1xf32>
    %287 = vector.broadcast %279 : vector<10x1xf32> to vector<10x32xf32>
    %288 = arith.subf %275, %287 : vector<10x32xf32>
    %cst_128 = arith.constant 9.99999974E-6 : f32
    %289 = vector.broadcast %cst_128 : f32 to vector<10x1xf32>
    %290 = arith.addf %286, %289 : vector<10x1xf32>
    %291 = math.rsqrt %290 : vector<10x1xf32>
    %292 = vector.broadcast %291 : vector<10x1xf32> to vector<10x32xf32>
    %293 = arith.mulf %288, %292 : vector<10x32xf32>
    %294 = vector.broadcast %15 : vector<1x32xf32> to vector<10x32xf32>
    %295 = arith.mulf %293, %294 : vector<10x32xf32>
    %296 = vector.broadcast %16 : vector<1x32xf32> to vector<10x32xf32>
    %297 = arith.addf %295, %296 : vector<10x32xf32>
    %c0_129 = arith.constant 0 : index
    %c0_130 = arith.constant 0 : index
    %298 = vector.load %arg3[%c0_129, %c0_130] : memref<2x10xf32, #tpu.memory_space<vmem>>, vector<2x10xf32>
    %299 = arith.truncf %298 : vector<2x10xf32> to vector<2x10xbf16>
    %300 = arith.truncf %297 : vector<10x32xf32> to vector<10x32xbf16>
    %cst_131 = arith.constant dense<0.000000e+00> : vector<2x32xf32>
    %301 = tpu.matmul %299, %300, %cst_131 {dimension_numbers = #tpu.dot_dimension_numbers<[1], [0], [0], [1], [0, 0, 1, 1], [], []>} : vector<2x10xbf16>, vector<10x32xbf16>, vector<2x32xf32> -> vector<2x32xf32>
    %302 = arith.truncf %301 : vector<2x32xf32> to vector<2x32xbf16>
    %303 = arith.truncf %17 : vector<32x32xf32> to vector<32x32xbf16>
    %cst_132 = arith.constant dense<0.000000e+00> : vector<2x32xf32>
    %304 = tpu.matmul %302, %303, %cst_132 {dimension_numbers = #tpu.dot_dimension_numbers<[1], [0], [0], [1], [0, 0, 1, 1], [], []>} : vector<2x32xbf16>, vector<32x32xbf16>, vector<2x32xf32> -> vector<2x32xf32>
    %305 = vector.broadcast %18 : vector<1x32xf32> to vector<2x32xf32>
    %306 = arith.addf %304, %305 : vector<2x32xf32>
    %c0_133 = arith.constant 0 : index
    %c0_134 = arith.constant 0 : index
    %307 = vector.load %arg4[%c0_133, %c0_134] : memref<18x1xi32, #tpu.memory_space<vmem>>, vector<18x1xi32>
    %308 = tpu.iota {dimensions = array<i32: 1>} : vector<18x128xi32>
    %309 = vector.broadcast %307 : vector<18x1xi32> to vector<18x128xi32>
    %310 = arith.cmpi eq, %308, %309 : vector<18x128xi32>
    %311 = arith.extui %310 : vector<18x128xi1> to vector<18x128xi32>
    %312 = arith.sitofp %311 : vector<18x128xi32> to vector<18x128xf32>
    %313 = arith.truncf %312 : vector<18x128xf32> to vector<18x128xbf16>
    %314 = arith.truncf %19 : vector<128x32xf32> to vector<128x32xbf16>
    %cst_135 = arith.constant dense<0.000000e+00> : vector<18x32xf32>
    %315 = tpu.matmul %313, %314, %cst_135 {dimension_numbers = #tpu.dot_dimension_numbers<[1], [0], [0], [1], [0, 0, 1, 1], [], []>} : vector<18x128xbf16>, vector<128x32xbf16>, vector<18x32xf32> -> vector<18x32xf32>
    %c0_136 = arith.constant 0 : index
    %c0_137 = arith.constant 0 : index
    %316 = vector.load %arg5[%c0_136, %c0_137] : memref<18x2xf32, #tpu.memory_space<vmem>>, vector<18x2xf32>
    %317 = arith.truncf %316 : vector<18x2xf32> to vector<18x2xbf16>
    %318 = arith.truncf %306 : vector<2x32xf32> to vector<2x32xbf16>
    %cst_138 = arith.constant dense<0.000000e+00> : vector<18x32xf32>
    %319 = tpu.matmul %317, %318, %cst_138 {dimension_numbers = #tpu.dot_dimension_numbers<[1], [0], [0], [1], [0, 0, 1, 1], [], []>} : vector<18x2xbf16>, vector<2x32xbf16>, vector<18x32xf32> -> vector<18x32xf32>
    %320 = arith.addf %319, %315 : vector<18x32xf32>
    %c0_139 = arith.constant 0 : index
    %c0_140 = arith.constant 0 : index
    %321 = vector.load %arg6[%c0_139, %c0_140] : memref<18x32xf32, #tpu.memory_space<vmem>>, vector<18x32xf32>
    %322 = arith.addf %320, %321 : vector<18x32xf32>
    %c0_141 = arith.constant 0 : index
    %c0_142 = arith.constant 0 : index
    %323 = vector.load %arg7[%c0_141, %c0_142] : memref<1x18xf32, #tpu.memory_space<vmem>>, vector<1x18xf32>
    %324 = tpu.iota {dimensions = array<i32: 0>} : vector<18x18xi32>
    %325 = tpu.iota {dimensions = array<i32: 1>} : vector<18x18xi32>
    %cst_143 = arith.constant 0.000000e+00 : f32
    %326 = vector.broadcast %cst_143 : f32 to vector<18x18xf32>
    %c0_i32_144 = arith.constant 0 : i32
    %327 = vector.broadcast %c0_i32_144 : i32 to vector<18x18xi32>
    %328 = arith.cmpi sge, %324, %327 : vector<18x18xi32>
    %c9_i32 = arith.constant 9 : i32
    %329 = vector.broadcast %c9_i32 : i32 to vector<18x18xi32>
    %330 = arith.cmpi slt, %324, %329 : vector<18x18xi32>
    %331 = arith.andi %328, %330 : vector<18x18xi1>
    %332 = arith.extui %331 : vector<18x18xi1> to vector<18x18xi32>
    %333 = arith.sitofp %332 : vector<18x18xi32> to vector<18x18xf32>
    %c0_i32_145 = arith.constant 0 : i32
    %334 = vector.broadcast %c0_i32_145 : i32 to vector<18x18xi32>
    %335 = arith.cmpi sge, %325, %334 : vector<18x18xi32>
    %c9_i32_146 = arith.constant 9 : i32
    %336 = vector.broadcast %c9_i32_146 : i32 to vector<18x18xi32>
    %337 = arith.cmpi slt, %325, %336 : vector<18x18xi32>
    %338 = arith.andi %335, %337 : vector<18x18xi1>
    %339 = arith.extui %338 : vector<18x18xi1> to vector<18x18xi32>
    %340 = arith.sitofp %339 : vector<18x18xi32> to vector<18x18xf32>
    %341 = arith.mulf %333, %340 : vector<18x18xf32>
    %342 = arith.addf %326, %341 : vector<18x18xf32>
    %c9_i32_147 = arith.constant 9 : i32
    %343 = vector.broadcast %c9_i32_147 : i32 to vector<18x18xi32>
    %344 = arith.cmpi sge, %324, %343 : vector<18x18xi32>
    %c18_i32 = arith.constant 18 : i32
    %345 = vector.broadcast %c18_i32 : i32 to vector<18x18xi32>
    %346 = arith.cmpi slt, %324, %345 : vector<18x18xi32>
    %347 = arith.andi %344, %346 : vector<18x18xi1>
    %348 = arith.extui %347 : vector<18x18xi1> to vector<18x18xi32>
    %349 = arith.sitofp %348 : vector<18x18xi32> to vector<18x18xf32>
    %c9_i32_148 = arith.constant 9 : i32
    %350 = vector.broadcast %c9_i32_148 : i32 to vector<18x18xi32>
    %351 = arith.cmpi sge, %325, %350 : vector<18x18xi32>
    %c18_i32_149 = arith.constant 18 : i32
    %352 = vector.broadcast %c18_i32_149 : i32 to vector<18x18xi32>
    %353 = arith.cmpi slt, %325, %352 : vector<18x18xi32>
    %354 = arith.andi %351, %353 : vector<18x18xi1>
    %355 = arith.extui %354 : vector<18x18xi1> to vector<18x18xi32>
    %356 = arith.sitofp %355 : vector<18x18xi32> to vector<18x18xf32>
    %357 = arith.mulf %349, %356 : vector<18x18xf32>
    %358 = arith.addf %342, %357 : vector<18x18xf32>
    %359 = arith.cmpi sle, %325, %324 : vector<18x18xi32>
    %360 = arith.extui %359 : vector<18x18xi1> to vector<18x18xi32>
    %361 = arith.sitofp %360 : vector<18x18xi32> to vector<18x18xf32>
    %362 = arith.mulf %358, %361 : vector<18x18xf32>
    %363 = vector.shape_cast %323 : vector<1x18xf32> to vector<1x18xf32>
    %364 = vector.broadcast %363 : vector<1x18xf32> to vector<18x18xf32>
    %365 = arith.mulf %362, %364 : vector<18x18xf32>
    %cst_150 = arith.constant 1.000000e+00 : f32
    %366 = vector.broadcast %cst_150 : f32 to vector<18x18xf32>
    %367 = arith.subf %366, %365 : vector<18x18xf32>
    %cst_151 = arith.constant -1.000000e+09 : f32
    %368 = vector.broadcast %cst_151 : f32 to vector<18x18xf32>
    %369 = arith.mulf %367, %368 : vector<18x18xf32>
    %cst_152 = arith.constant dense<0.000000e+00> : vector<18xf32>
    %370 = vector.multi_reduction <add>, %322, %cst_152 [1] : vector<18x32xf32> to vector<18xf32>
    %371 = vector.shape_cast %370 : vector<18xf32> to vector<18x1xf32>
    %cst_153 = arith.constant 3.200000e+01 : f32
    %372 = vector.broadcast %cst_153 : f32 to vector<18x1xf32>
    %373 = arith.divf %371, %372 : vector<18x1xf32>
    %374 = vector.broadcast %373 : vector<18x1xf32> to vector<18x32xf32>
    %375 = arith.subf %322, %374 : vector<18x32xf32>
    %376 = arith.mulf %375, %375 : vector<18x32xf32>
    %cst_154 = arith.constant dense<0.000000e+00> : vector<18xf32>
    %377 = vector.multi_reduction <add>, %376, %cst_154 [1] : vector<18x32xf32> to vector<18xf32>
    %378 = vector.shape_cast %377 : vector<18xf32> to vector<18x1xf32>
    %cst_155 = arith.constant 3.200000e+01 : f32
    %379 = vector.broadcast %cst_155 : f32 to vector<18x1xf32>
    %380 = arith.divf %378, %379 : vector<18x1xf32>
    %381 = vector.broadcast %373 : vector<18x1xf32> to vector<18x32xf32>
    %382 = arith.subf %322, %381 : vector<18x32xf32>
    %cst_156 = arith.constant 9.99999974E-6 : f32
    %383 = vector.broadcast %cst_156 : f32 to vector<18x1xf32>
    %384 = arith.addf %380, %383 : vector<18x1xf32>
    %385 = math.rsqrt %384 : vector<18x1xf32>
    %386 = vector.broadcast %385 : vector<18x1xf32> to vector<18x32xf32>
    %387 = arith.mulf %382, %386 : vector<18x32xf32>
    %388 = vector.broadcast %20 : vector<1x32xf32> to vector<18x32xf32>
    %389 = arith.mulf %387, %388 : vector<18x32xf32>
    %390 = vector.broadcast %21 : vector<1x32xf32> to vector<18x32xf32>
    %391 = arith.addf %389, %390 : vector<18x32xf32>
    %392 = arith.truncf %391 : vector<18x32xf32> to vector<18x32xbf16>
    %393 = arith.truncf %22 : vector<32x96xf32> to vector<32x96xbf16>
    %cst_157 = arith.constant dense<0.000000e+00> : vector<18x96xf32>
    %394 = tpu.matmul %392, %393, %cst_157 {dimension_numbers = #tpu.dot_dimension_numbers<[1], [0], [0], [1], [0, 0, 1, 1], [], []>} : vector<18x32xbf16>, vector<32x96xbf16>, vector<18x96xf32> -> vector<18x96xf32>
    %395 = vector.broadcast %23 : vector<1x96xf32> to vector<18x96xf32>
    %396 = arith.addf %394, %395 : vector<18x96xf32>
    %cst_158 = arith.constant 0.000000e+00 : f32
    %397 = vector.broadcast %cst_158 : f32 to vector<18x32xf32>
    %398 = vector.extract_strided_slice %396 {offsets = [0, 0], sizes = [18, 8], strides = [1, 1]} : vector<18x96xf32> to vector<18x8xf32>
    %399 = vector.extract_strided_slice %396 {offsets = [0, 32], sizes = [18, 8], strides = [1, 1]} : vector<18x96xf32> to vector<18x8xf32>
    %400 = vector.extract_strided_slice %396 {offsets = [0, 64], sizes = [18, 8], strides = [1, 1]} : vector<18x96xf32> to vector<18x8xf32>
    %401 = arith.truncf %398 : vector<18x8xf32> to vector<18x8xbf16>
    %402 = arith.truncf %399 : vector<18x8xf32> to vector<18x8xbf16>
    %cst_159 = arith.constant dense<0.000000e+00> : vector<18x18xf32>
    %403 = tpu.matmul %401, %402, %cst_159 {dimension_numbers = #tpu.dot_dimension_numbers<[1], [1], [0], [0], [0, 0, 1, 0], [], []>} : vector<18x8xbf16>, vector<18x8xbf16>, vector<18x18xf32> -> vector<18x18xf32>
    %cst_160 = arith.constant 0.353553385 : f32
    %404 = vector.broadcast %cst_160 : f32 to vector<18x18xf32>
    %405 = arith.mulf %403, %404 : vector<18x18xf32>
    %406 = arith.addf %405, %369 : vector<18x18xf32>
    %cst_161 = arith.constant dense<0xFF800000> : vector<18xf32>
    %407 = vector.multi_reduction <maximumf>, %406, %cst_161 [1] : vector<18x18xf32> to vector<18xf32>
    %408 = vector.shape_cast %407 : vector<18xf32> to vector<18x1xf32>
    %409 = vector.broadcast %408 : vector<18x1xf32> to vector<18x18xf32>
    %410 = arith.subf %406, %409 : vector<18x18xf32>
    %411 = math.exp %410 : vector<18x18xf32>
    %cst_162 = arith.constant dense<0.000000e+00> : vector<18xf32>
    %412 = vector.multi_reduction <add>, %411, %cst_162 [1] : vector<18x18xf32> to vector<18xf32>
    %413 = vector.shape_cast %412 : vector<18xf32> to vector<18x1xf32>
    %414 = tpu.reciprocal %413 {approx = true} : vector<18x1xf32> -> vector<18x1xf32>
    %415 = vector.broadcast %414 : vector<18x1xf32> to vector<18x18xf32>
    %416 = arith.mulf %411, %415 : vector<18x18xf32>
    %417 = arith.truncf %416 : vector<18x18xf32> to vector<18x18xbf16>
    %418 = arith.truncf %400 : vector<18x8xf32> to vector<18x8xbf16>
    %cst_163 = arith.constant dense<0.000000e+00> : vector<18x8xf32>
    %419 = tpu.matmul %417, %418, %cst_163 {dimension_numbers = #tpu.dot_dimension_numbers<[1], [0], [0], [1], [0, 0, 1, 1], [], []>} : vector<18x18xbf16>, vector<18x8xbf16>, vector<18x8xf32> -> vector<18x8xf32>
    %420 = vector.extract_strided_slice %24 {offsets = [0, 0], sizes = [8, 32], strides = [1, 1]} : vector<32x32xf32> to vector<8x32xf32>
    %421 = arith.truncf %419 : vector<18x8xf32> to vector<18x8xbf16>
    %422 = arith.truncf %420 : vector<8x32xf32> to vector<8x32xbf16>
    %cst_164 = arith.constant dense<0.000000e+00> : vector<18x32xf32>
    %423 = tpu.matmul %421, %422, %cst_164 {dimension_numbers = #tpu.dot_dimension_numbers<[1], [0], [0], [1], [0, 0, 1, 1], [], []>} : vector<18x8xbf16>, vector<8x32xbf16>, vector<18x32xf32> -> vector<18x32xf32>
    %424 = arith.addf %397, %423 : vector<18x32xf32>
    %425 = vector.extract_strided_slice %396 {offsets = [0, 8], sizes = [18, 8], strides = [1, 1]} : vector<18x96xf32> to vector<18x8xf32>
    %426 = vector.extract_strided_slice %396 {offsets = [0, 40], sizes = [18, 8], strides = [1, 1]} : vector<18x96xf32> to vector<18x8xf32>
    %427 = vector.extract_strided_slice %396 {offsets = [0, 72], sizes = [18, 8], strides = [1, 1]} : vector<18x96xf32> to vector<18x8xf32>
    %428 = arith.truncf %425 : vector<18x8xf32> to vector<18x8xbf16>
    %429 = arith.truncf %426 : vector<18x8xf32> to vector<18x8xbf16>
    %cst_165 = arith.constant dense<0.000000e+00> : vector<18x18xf32>
    %430 = tpu.matmul %428, %429, %cst_165 {dimension_numbers = #tpu.dot_dimension_numbers<[1], [1], [0], [0], [0, 0, 1, 0], [], []>} : vector<18x8xbf16>, vector<18x8xbf16>, vector<18x18xf32> -> vector<18x18xf32>
    %cst_166 = arith.constant 0.353553385 : f32
    %431 = vector.broadcast %cst_166 : f32 to vector<18x18xf32>
    %432 = arith.mulf %430, %431 : vector<18x18xf32>
    %433 = arith.addf %432, %369 : vector<18x18xf32>
    %cst_167 = arith.constant dense<0xFF800000> : vector<18xf32>
    %434 = vector.multi_reduction <maximumf>, %433, %cst_167 [1] : vector<18x18xf32> to vector<18xf32>
    %435 = vector.shape_cast %434 : vector<18xf32> to vector<18x1xf32>
    %436 = vector.broadcast %435 : vector<18x1xf32> to vector<18x18xf32>
    %437 = arith.subf %433, %436 : vector<18x18xf32>
    %438 = math.exp %437 : vector<18x18xf32>
    %cst_168 = arith.constant dense<0.000000e+00> : vector<18xf32>
    %439 = vector.multi_reduction <add>, %438, %cst_168 [1] : vector<18x18xf32> to vector<18xf32>
    %440 = vector.shape_cast %439 : vector<18xf32> to vector<18x1xf32>
    %441 = tpu.reciprocal %440 {approx = true} : vector<18x1xf32> -> vector<18x1xf32>
    %442 = vector.broadcast %441 : vector<18x1xf32> to vector<18x18xf32>
    %443 = arith.mulf %438, %442 : vector<18x18xf32>
    %444 = arith.truncf %443 : vector<18x18xf32> to vector<18x18xbf16>
    %445 = arith.truncf %427 : vector<18x8xf32> to vector<18x8xbf16>
    %cst_169 = arith.constant dense<0.000000e+00> : vector<18x8xf32>
    %446 = tpu.matmul %444, %445, %cst_169 {dimension_numbers = #tpu.dot_dimension_numbers<[1], [0], [0], [1], [0, 0, 1, 1], [], []>} : vector<18x18xbf16>, vector<18x8xbf16>, vector<18x8xf32> -> vector<18x8xf32>
    %447 = vector.extract_strided_slice %24 {offsets = [8, 0], sizes = [8, 32], strides = [1, 1]} : vector<32x32xf32> to vector<8x32xf32>
    %448 = arith.truncf %446 : vector<18x8xf32> to vector<18x8xbf16>
    %449 = arith.truncf %447 : vector<8x32xf32> to vector<8x32xbf16>
    %cst_170 = arith.constant dense<0.000000e+00> : vector<18x32xf32>
    %450 = tpu.matmul %448, %449, %cst_170 {dimension_numbers = #tpu.dot_dimension_numbers<[1], [0], [0], [1], [0, 0, 1, 1], [], []>} : vector<18x8xbf16>, vector<8x32xbf16>, vector<18x32xf32> -> vector<18x32xf32>
    %451 = arith.addf %424, %450 : vector<18x32xf32>
    %452 = vector.extract_strided_slice %396 {offsets = [0, 16], sizes = [18, 8], strides = [1, 1]} : vector<18x96xf32> to vector<18x8xf32>
    %453 = vector.extract_strided_slice %396 {offsets = [0, 48], sizes = [18, 8], strides = [1, 1]} : vector<18x96xf32> to vector<18x8xf32>
    %454 = vector.extract_strided_slice %396 {offsets = [0, 80], sizes = [18, 8], strides = [1, 1]} : vector<18x96xf32> to vector<18x8xf32>
    %455 = arith.truncf %452 : vector<18x8xf32> to vector<18x8xbf16>
    %456 = arith.truncf %453 : vector<18x8xf32> to vector<18x8xbf16>
    %cst_171 = arith.constant dense<0.000000e+00> : vector<18x18xf32>
    %457 = tpu.matmul %455, %456, %cst_171 {dimension_numbers = #tpu.dot_dimension_numbers<[1], [1], [0], [0], [0, 0, 1, 0], [], []>} : vector<18x8xbf16>, vector<18x8xbf16>, vector<18x18xf32> -> vector<18x18xf32>
    %cst_172 = arith.constant 0.353553385 : f32
    %458 = vector.broadcast %cst_172 : f32 to vector<18x18xf32>
    %459 = arith.mulf %457, %458 : vector<18x18xf32>
    %460 = arith.addf %459, %369 : vector<18x18xf32>
    %cst_173 = arith.constant dense<0xFF800000> : vector<18xf32>
    %461 = vector.multi_reduction <maximumf>, %460, %cst_173 [1] : vector<18x18xf32> to vector<18xf32>
    %462 = vector.shape_cast %461 : vector<18xf32> to vector<18x1xf32>
    %463 = vector.broadcast %462 : vector<18x1xf32> to vector<18x18xf32>
    %464 = arith.subf %460, %463 : vector<18x18xf32>
    %465 = math.exp %464 : vector<18x18xf32>
    %cst_174 = arith.constant dense<0.000000e+00> : vector<18xf32>
    %466 = vector.multi_reduction <add>, %465, %cst_174 [1] : vector<18x18xf32> to vector<18xf32>
    %467 = vector.shape_cast %466 : vector<18xf32> to vector<18x1xf32>
    %468 = tpu.reciprocal %467 {approx = true} : vector<18x1xf32> -> vector<18x1xf32>
    %469 = vector.broadcast %468 : vector<18x1xf32> to vector<18x18xf32>
    %470 = arith.mulf %465, %469 : vector<18x18xf32>
    %471 = arith.truncf %470 : vector<18x18xf32> to vector<18x18xbf16>
    %472 = arith.truncf %454 : vector<18x8xf32> to vector<18x8xbf16>
    %cst_175 = arith.constant dense<0.000000e+00> : vector<18x8xf32>
    %473 = tpu.matmul %471, %472, %cst_175 {dimension_numbers = #tpu.dot_dimension_numbers<[1], [0], [0], [1], [0, 0, 1, 1], [], []>} : vector<18x18xbf16>, vector<18x8xbf16>, vector<18x8xf32> -> vector<18x8xf32>
    %474 = vector.extract_strided_slice %24 {offsets = [16, 0], sizes = [8, 32], strides = [1, 1]} : vector<32x32xf32> to vector<8x32xf32>
    %475 = arith.truncf %473 : vector<18x8xf32> to vector<18x8xbf16>
    %476 = arith.truncf %474 : vector<8x32xf32> to vector<8x32xbf16>
    %cst_176 = arith.constant dense<0.000000e+00> : vector<18x32xf32>
    %477 = tpu.matmul %475, %476, %cst_176 {dimension_numbers = #tpu.dot_dimension_numbers<[1], [0], [0], [1], [0, 0, 1, 1], [], []>} : vector<18x8xbf16>, vector<8x32xbf16>, vector<18x32xf32> -> vector<18x32xf32>
    %478 = arith.addf %451, %477 : vector<18x32xf32>
    %479 = vector.extract_strided_slice %396 {offsets = [0, 24], sizes = [18, 8], strides = [1, 1]} : vector<18x96xf32> to vector<18x8xf32>
    %480 = vector.extract_strided_slice %396 {offsets = [0, 56], sizes = [18, 8], strides = [1, 1]} : vector<18x96xf32> to vector<18x8xf32>
    %481 = vector.extract_strided_slice %396 {offsets = [0, 88], sizes = [18, 8], strides = [1, 1]} : vector<18x96xf32> to vector<18x8xf32>
    %482 = arith.truncf %479 : vector<18x8xf32> to vector<18x8xbf16>
    %483 = arith.truncf %480 : vector<18x8xf32> to vector<18x8xbf16>
    %cst_177 = arith.constant dense<0.000000e+00> : vector<18x18xf32>
    %484 = tpu.matmul %482, %483, %cst_177 {dimension_numbers = #tpu.dot_dimension_numbers<[1], [1], [0], [0], [0, 0, 1, 0], [], []>} : vector<18x8xbf16>, vector<18x8xbf16>, vector<18x18xf32> -> vector<18x18xf32>
    %cst_178 = arith.constant 0.353553385 : f32
    %485 = vector.broadcast %cst_178 : f32 to vector<18x18xf32>
    %486 = arith.mulf %484, %485 : vector<18x18xf32>
    %487 = arith.addf %486, %369 : vector<18x18xf32>
    %cst_179 = arith.constant dense<0xFF800000> : vector<18xf32>
    %488 = vector.multi_reduction <maximumf>, %487, %cst_179 [1] : vector<18x18xf32> to vector<18xf32>
    %489 = vector.shape_cast %488 : vector<18xf32> to vector<18x1xf32>
    %490 = vector.broadcast %489 : vector<18x1xf32> to vector<18x18xf32>
    %491 = arith.subf %487, %490 : vector<18x18xf32>
    %492 = math.exp %491 : vector<18x18xf32>
    %cst_180 = arith.constant dense<0.000000e+00> : vector<18xf32>
    %493 = vector.multi_reduction <add>, %492, %cst_180 [1] : vector<18x18xf32> to vector<18xf32>
    %494 = vector.shape_cast %493 : vector<18xf32> to vector<18x1xf32>
    %495 = tpu.reciprocal %494 {approx = true} : vector<18x1xf32> -> vector<18x1xf32>
    %496 = vector.broadcast %495 : vector<18x1xf32> to vector<18x18xf32>
    %497 = arith.mulf %492, %496 : vector<18x18xf32>
    %498 = arith.truncf %497 : vector<18x18xf32> to vector<18x18xbf16>
    %499 = arith.truncf %481 : vector<18x8xf32> to vector<18x8xbf16>
    %cst_181 = arith.constant dense<0.000000e+00> : vector<18x8xf32>
    %500 = tpu.matmul %498, %499, %cst_181 {dimension_numbers = #tpu.dot_dimension_numbers<[1], [0], [0], [1], [0, 0, 1, 1], [], []>} : vector<18x18xbf16>, vector<18x8xbf16>, vector<18x8xf32> -> vector<18x8xf32>
    %501 = vector.extract_strided_slice %24 {offsets = [24, 0], sizes = [8, 32], strides = [1, 1]} : vector<32x32xf32> to vector<8x32xf32>
    %502 = arith.truncf %500 : vector<18x8xf32> to vector<18x8xbf16>
    %503 = arith.truncf %501 : vector<8x32xf32> to vector<8x32xbf16>
    %cst_182 = arith.constant dense<0.000000e+00> : vector<18x32xf32>
    %504 = tpu.matmul %502, %503, %cst_182 {dimension_numbers = #tpu.dot_dimension_numbers<[1], [0], [0], [1], [0, 0, 1, 1], [], []>} : vector<18x8xbf16>, vector<8x32xbf16>, vector<18x32xf32> -> vector<18x32xf32>
    %505 = arith.addf %478, %504 : vector<18x32xf32>
    %506 = arith.addf %322, %505 : vector<18x32xf32>
    %507 = vector.broadcast %25 : vector<1x32xf32> to vector<18x32xf32>
    %508 = arith.addf %506, %507 : vector<18x32xf32>
    %cst_183 = arith.constant dense<0.000000e+00> : vector<18xf32>
    %509 = vector.multi_reduction <add>, %508, %cst_183 [1] : vector<18x32xf32> to vector<18xf32>
    %510 = vector.shape_cast %509 : vector<18xf32> to vector<18x1xf32>
    %cst_184 = arith.constant 3.200000e+01 : f32
    %511 = vector.broadcast %cst_184 : f32 to vector<18x1xf32>
    %512 = arith.divf %510, %511 : vector<18x1xf32>
    %513 = vector.broadcast %512 : vector<18x1xf32> to vector<18x32xf32>
    %514 = arith.subf %508, %513 : vector<18x32xf32>
    %515 = arith.mulf %514, %514 : vector<18x32xf32>
    %cst_185 = arith.constant dense<0.000000e+00> : vector<18xf32>
    %516 = vector.multi_reduction <add>, %515, %cst_185 [1] : vector<18x32xf32> to vector<18xf32>
    %517 = vector.shape_cast %516 : vector<18xf32> to vector<18x1xf32>
    %cst_186 = arith.constant 3.200000e+01 : f32
    %518 = vector.broadcast %cst_186 : f32 to vector<18x1xf32>
    %519 = arith.divf %517, %518 : vector<18x1xf32>
    %520 = vector.broadcast %512 : vector<18x1xf32> to vector<18x32xf32>
    %521 = arith.subf %508, %520 : vector<18x32xf32>
    %cst_187 = arith.constant 9.99999974E-6 : f32
    %522 = vector.broadcast %cst_187 : f32 to vector<18x1xf32>
    %523 = arith.addf %519, %522 : vector<18x1xf32>
    %524 = math.rsqrt %523 : vector<18x1xf32>
    %525 = vector.broadcast %524 : vector<18x1xf32> to vector<18x32xf32>
    %526 = arith.mulf %521, %525 : vector<18x32xf32>
    %527 = vector.broadcast %26 : vector<1x32xf32> to vector<18x32xf32>
    %528 = arith.mulf %526, %527 : vector<18x32xf32>
    %529 = vector.broadcast %27 : vector<1x32xf32> to vector<18x32xf32>
    %530 = arith.addf %528, %529 : vector<18x32xf32>
    %531 = arith.truncf %530 : vector<18x32xf32> to vector<18x32xbf16>
    %532 = arith.truncf %28 : vector<32x128xf32> to vector<32x128xbf16>
    %cst_188 = arith.constant dense<0.000000e+00> : vector<18x128xf32>
    %533 = tpu.matmul %531, %532, %cst_188 {dimension_numbers = #tpu.dot_dimension_numbers<[1], [0], [0], [1], [0, 0, 1, 1], [], []>} : vector<18x32xbf16>, vector<32x128xbf16>, vector<18x128xf32> -> vector<18x128xf32>
    %534 = vector.broadcast %29 : vector<1x128xf32> to vector<18x128xf32>
    %535 = arith.addf %533, %534 : vector<18x128xf32>
    %536 = arith.mulf %535, %535 : vector<18x128xf32>
    %537 = arith.mulf %535, %536 : vector<18x128xf32>
    %cst_189 = arith.constant 4.471500e-02 : f32
    %538 = vector.broadcast %cst_189 : f32 to vector<18x128xf32>
    %539 = arith.mulf %538, %537 : vector<18x128xf32>
    %540 = arith.addf %535, %539 : vector<18x128xf32>
    %cst_190 = arith.constant 0.797884583 : f32
    %541 = vector.broadcast %cst_190 : f32 to vector<18x128xf32>
    %542 = arith.mulf %541, %540 : vector<18x128xf32>
    %543 = math.tanh %542 : vector<18x128xf32>
    %cst_191 = arith.constant 1.000000e+00 : f32
    %544 = vector.broadcast %cst_191 : f32 to vector<18x128xf32>
    %545 = arith.addf %544, %543 : vector<18x128xf32>
    %cst_192 = arith.constant 5.000000e-01 : f32
    %546 = vector.broadcast %cst_192 : f32 to vector<18x128xf32>
    %547 = arith.mulf %546, %545 : vector<18x128xf32>
    %548 = arith.mulf %535, %547 : vector<18x128xf32>
    %549 = arith.truncf %548 : vector<18x128xf32> to vector<18x128xbf16>
    %550 = arith.truncf %30 : vector<128x32xf32> to vector<128x32xbf16>
    %cst_193 = arith.constant dense<0.000000e+00> : vector<18x32xf32>
    %551 = tpu.matmul %549, %550, %cst_193 {dimension_numbers = #tpu.dot_dimension_numbers<[1], [0], [0], [1], [0, 0, 1, 1], [], []>} : vector<18x128xbf16>, vector<128x32xbf16>, vector<18x32xf32> -> vector<18x32xf32>
    %552 = arith.addf %508, %551 : vector<18x32xf32>
    %553 = vector.broadcast %31 : vector<1x32xf32> to vector<18x32xf32>
    %554 = arith.addf %552, %553 : vector<18x32xf32>
    %cst_194 = arith.constant dense<0.000000e+00> : vector<18xf32>
    %555 = vector.multi_reduction <add>, %554, %cst_194 [1] : vector<18x32xf32> to vector<18xf32>
    %556 = vector.shape_cast %555 : vector<18xf32> to vector<18x1xf32>
    %cst_195 = arith.constant 3.200000e+01 : f32
    %557 = vector.broadcast %cst_195 : f32 to vector<18x1xf32>
    %558 = arith.divf %556, %557 : vector<18x1xf32>
    %559 = vector.broadcast %558 : vector<18x1xf32> to vector<18x32xf32>
    %560 = arith.subf %554, %559 : vector<18x32xf32>
    %561 = arith.mulf %560, %560 : vector<18x32xf32>
    %cst_196 = arith.constant dense<0.000000e+00> : vector<18xf32>
    %562 = vector.multi_reduction <add>, %561, %cst_196 [1] : vector<18x32xf32> to vector<18xf32>
    %563 = vector.shape_cast %562 : vector<18xf32> to vector<18x1xf32>
    %cst_197 = arith.constant 3.200000e+01 : f32
    %564 = vector.broadcast %cst_197 : f32 to vector<18x1xf32>
    %565 = arith.divf %563, %564 : vector<18x1xf32>
    %566 = vector.broadcast %558 : vector<18x1xf32> to vector<18x32xf32>
    %567 = arith.subf %554, %566 : vector<18x32xf32>
    %cst_198 = arith.constant 9.99999974E-6 : f32
    %568 = vector.broadcast %cst_198 : f32 to vector<18x1xf32>
    %569 = arith.addf %565, %568 : vector<18x1xf32>
    %570 = math.rsqrt %569 : vector<18x1xf32>
    %571 = vector.broadcast %570 : vector<18x1xf32> to vector<18x32xf32>
    %572 = arith.mulf %567, %571 : vector<18x32xf32>
    %573 = vector.broadcast %32 : vector<1x32xf32> to vector<18x32xf32>
    %574 = arith.mulf %572, %573 : vector<18x32xf32>
    %575 = vector.broadcast %33 : vector<1x32xf32> to vector<18x32xf32>
    %576 = arith.addf %574, %575 : vector<18x32xf32>
    %577 = arith.truncf %576 : vector<18x32xf32> to vector<18x32xbf16>
    %578 = arith.truncf %19 : vector<128x32xf32> to vector<128x32xbf16>
    %cst_199 = arith.constant dense<0.000000e+00> : vector<18x128xf32>
    %579 = tpu.matmul %577, %578, %cst_199 {dimension_numbers = #tpu.dot_dimension_numbers<[1], [1], [0], [0], [0, 0, 1, 0], [], []>} : vector<18x32xbf16>, vector<128x32xbf16>, vector<18x128xf32> -> vector<18x128xf32>
    %c0_200 = arith.constant 0 : index
    %c0_201 = arith.constant 0 : index
    %580 = vector.load %arg43[%c0_200, %c0_201] : memref<18x128xf32, #tpu.memory_space<vmem>>, vector<18x128xf32>
    tpu.vector_store %arg43[%c0_200, %c0_201], %579 {strides = array<i32>} : memref<18x128xf32, #tpu.memory_space<vmem>>, vector<18x128xf32>,
    %c0_202 = arith.constant 0 : index
    %c0_203 = arith.constant 0 : index
    %581 = vector.load %arg8[%c0_202, %c0_203] : memref<18x1xi32, #tpu.memory_space<vmem>>, vector<18x1xi32>
    %cst_204 = arith.constant dense<0xFF800000> : vector<18xf32>
    %582 = vector.multi_reduction <maximumf>, %579, %cst_204 [1] : vector<18x128xf32> to vector<18xf32>
    %583 = vector.shape_cast %582 : vector<18xf32> to vector<18x1xf32>
    %584 = vector.broadcast %583 : vector<18x1xf32> to vector<18x128xf32>
    %585 = arith.subf %579, %584 : vector<18x128xf32>
    %586 = math.exp %585 : vector<18x128xf32>
    %cst_205 = arith.constant dense<0.000000e+00> : vector<18xf32>
    %587 = vector.multi_reduction <add>, %586, %cst_205 [1] : vector<18x128xf32> to vector<18xf32>
    %588 = vector.shape_cast %587 : vector<18xf32> to vector<18x1xf32>
    %589 = math.log %588 : vector<18x1xf32>
    %590 = arith.addf %589, %583 : vector<18x1xf32>
    %591 = vector.broadcast %581 : vector<18x1xi32> to vector<18x128xi32>
    %592 = arith.cmpi eq, %308, %591 : vector<18x128xi32>
    %cst_206 = arith.constant 0.000000e+00 : f32
    %593 = vector.broadcast %cst_206 : f32 to vector<18x128xf32>
    %594 = arith.select %592, %579, %593 : vector<18x128xi1>, vector<18x128xf32>
    %cst_207 = arith.constant dense<0.000000e+00> : vector<18xf32>
    %595 = vector.multi_reduction <add>, %594, %cst_207 [1] : vector<18x128xf32> to vector<18xf32>
    %596 = vector.shape_cast %595 : vector<18xf32> to vector<18x1xf32>
    %c-100_i32 = arith.constant -100 : i32
    %597 = vector.broadcast %c-100_i32 : i32 to vector<18x1xi32>
    %598 = arith.cmpi ne, %581, %597 : vector<18x1xi32>
    %599 = arith.extui %598 : vector<18x1xi1> to vector<18x1xi32>
    %600 = arith.sitofp %599 : vector<18x1xi32> to vector<18x1xf32>
    %601 = arith.subf %590, %596 : vector<18x1xf32>
    %602 = arith.mulf %601, %600 : vector<18x1xf32>
    %cst_208 = arith.constant dense<0.000000e+00> : vector<1xf32>
    %603 = vector.multi_reduction <add>, %602, %cst_208 [0] : vector<18x1xf32> to vector<1xf32>
    %604 = vector.shape_cast %603 : vector<1xf32> to vector<1x1xf32>
    %cst_209 = arith.constant dense<0.000000e+00> : vector<1xf32>
    %605 = vector.multi_reduction <add>, %600, %cst_209 [0] : vector<18x1xf32> to vector<1xf32>
    %606 = vector.shape_cast %605 : vector<1xf32> to vector<1x1xf32>
    %cst_210 = arith.constant 1.000000e+00 : f32
    %607 = vector.broadcast %cst_210 : f32 to vector<1x1xf32>
    %608 = arith.maximumf %606, %607 : vector<1x1xf32>
    %609 = arith.divf %604, %608 : vector<1x1xf32>
    %c0_211 = arith.constant 0 : index
    %c0_212 = arith.constant 0 : index
    %610 = vector.load %arg44[%c0_211, %c0_212] : memref<1x1xf32, #tpu.memory_space<vmem>>, vector<1x1xf32>
    tpu.vector_store %arg44[%c0_211, %c0_212], %609 {strides = array<i32>} : memref<1x1xf32, #tpu.memory_space<vmem>>, vector<1x1xf32>,
    return
  }
}

</mosaic_0001>

<llo_original>
// kernel: tile.19
$region0: #{tile.19}
  %s0 = inlined_call_operand.vmem [shape: f32[2,9,32], index: 0, kind: input, shape index: {}]
  %s1 = inlined_call_operand.vmem [shape: f32[18,32], index: 1, kind: output, shape index: {}]
  %v2 = vld [vmem:[%s0] sm:$0xff]
  %vm3 = vcmask 261120
  %4 = vst.msk [vmem:[%s1] sm:$0xff] %vm3, %v2
  %s5 = scalar_lea.vmem %s0, 8
  %s6 = smov 3
  %v7 = vld [vmem:[%s5] ss:$8 sm:%s6]
  %vm8 = vcmask 261120
  %s9 = scalar_lea.vmem %s1, 8
  %10 = vst.msk [vmem:[%s9] sm:$0x3] %vm8, %v7
  %s11 = scalar_lea.vmem %s0, 17
  %v12 = vld [vmem:[%s11] sm:$0xff]
  %vm13 = vcmask 261120
  %s14 = scalar_lea.vmem %s1, 10
  %15 = vst.msk [vmem:[%s14] sm:$0xff] %vm13, %v12

// kernel: tile.14
$region0: #{tile.14}
  %s0 = inlined_call_operand.vmem [shape: f32[2,5,32], index: 0, kind: input, shape index: {}]
  %s1 = inlined_call_operand.vmem [shape: f32[10,32], index: 1, kind: output, shape index: {}]
  %v2 = vld [vmem:[%s0] sm:$0x1f]
  %vm3 = vcmask 261120
  %4 = vst.msk [vmem:[%s1] sm:$0x1f] %vm3, %v2
  %s5 = scalar_lea.vmem %s0, 8
  %v6 = vld [vmem:[%s5] sm:$0x1f]
  %vm7 = vcmask 261120
  %s8 = scalar_lea.vmem %s1, 5
  %9 = vst.msk [vmem:[%s8] sm:$0x1f] %vm7, %v6

// kernel: encoder_decoder_forward.1
$region0: #{encoder_decoder_forward.1}
  #allocation0 [shape = 'u32[]', space=smem, size = 0x4, offset = 0x4, fixed_abs, tag = 'smem constant byte address 0x4 - core index']
  #allocation1 [shape = 'u32[144,128]{1,0:T(1,128)}', space=vmem, size = 0x12000, scoped, tag = 'internal scratch']
  %s0 = inlined_call_operand.smem [shape: u32[45], index: -1, kind: input, shape index: {}]
  %s1 = sld [smem:[%s0]]
  %s2 = scalar_lea.smem %s0, 1
  %s3 = sld [smem:[%s2]]
  %s4 = scalar_lea.smem %s0, 2
  %s5 = sld [smem:[%s4]]
  %s6 = scalar_lea.smem %s0, 3
  %s7 = sld [smem:[%s6]]
  %s8 = scalar_lea.smem %s0, 4
  %s9 = sld [smem:[%s8]]
  %s10 = scalar_lea.smem %s0, 5
  %s11 = sld [smem:[%s10]]
  %s12 = scalar_lea.smem %s0, 6
  %s13 = sld [smem:[%s12]]
  %s14 = scalar_lea.smem %s0, 7
  %s15 = sld [smem:[%s14]]
  %s16 = scalar_lea.smem %s0, 8
  %s17 = sld [smem:[%s16]]
  %s18 = scalar_lea.smem %s0, 9
  %s19 = sld [smem:[%s18]]
  %s20 = scalar_lea.smem %s0, 10
  %s21 = sld [smem:[%s20]]
  %s22 = scalar_lea.smem %s0, 11
  %s23 = sld [smem:[%s22]]
  %s24 = scalar_lea.smem %s0, 12
  %s25 = sld [smem:[%s24]]
  %s26 = scalar_lea.smem %s0, 13
  %s27 = sld [smem:[%s26]]
  %s28 = scalar_lea.smem %s0, 14
  %s29 = sld [smem:[%s28]]
  %s30 = scalar_lea.smem %s0, 15
  %s31 = sld [smem:[%s30]]
  %s32 = scalar_lea.smem %s0, 16
  %s33 = sld [smem:[%s32]]
  %s34 = scalar_lea.smem %s0, 17
  %s35 = sld [smem:[%s34]]
  %s36 = scalar_lea.smem %s0, 18
  %s37 = sld [smem:[%s36]]
  %s38 = scalar_lea.smem %s0, 19
  %s39 = sld [smem:[%s38]]
  %s40 = scalar_lea.smem %s0, 20
  %s41 = sld [smem:[%s40]]
  %s42 = scalar_lea.smem %s0, 21
  %s43 = sld [smem:[%s42]]
  %s44 = scalar_lea.smem %s0, 22
  %s45 = sld [smem:[%s44]]
  %s46 = scalar_lea.smem %s0, 23
  %s47 = sld [smem:[%s46]]
  %s48 = scalar_lea.smem %s0, 24
  %s49 = sld [smem:[%s48]]
  %s50 = scalar_lea.smem %s0, 25
  %s51 = sld [smem:[%s50]]
  %s52 = scalar_lea.smem %s0, 26
  %s53 = sld [smem:[%s52]]
  %s54 = scalar_lea.smem %s0, 27
  %s55 = sld [smem:[%s54]]
  %s56 = scalar_lea.smem %s0, 28
  %s57 = sld [smem:[%s56]]
  %s58 = scalar_lea.smem %s0, 29
  %s59 = sld [smem:[%s58]]
  %s60 = scalar_lea.smem %s0, 30
  %s61 = sld [smem:[%s60]]
  %s62 = scalar_lea.smem %s0, 31
  %s63 = sld [smem:[%s62]]
  %s64 = scalar_lea.smem %s0, 32
  %s65 = sld [smem:[%s64]]
  %s66 = scalar_lea.smem %s0, 33
  %s67 = sld [smem:[%s66]]
  %s68 = scalar_lea.smem %s0, 34
  %s69 = sld [smem:[%s68]]
  %s70 = scalar_lea.smem %s0, 35
  %s71 = sld [smem:[%s70]]
  %s72 = scalar_lea.smem %s0, 36
  %s73 = sld [smem:[%s72]]
  %s74 = scalar_lea.smem %s0, 37
  %s75 = sld [smem:[%s74]]
  %s76 = scalar_lea.smem %s0, 38
  %s77 = sld [smem:[%s76]]
  %s78 = scalar_lea.smem %s0, 39
  %s79 = sld [smem:[%s78]]
  %s80 = scalar_lea.smem %s0, 40
  %s81 = sld [smem:[%s80]]
  %s82 = scalar_lea.smem %s0, 41
  %s83 = sld [smem:[%s82]]
  %s84 = scalar_lea.smem %s0, 42
  %s85 = sld [smem:[%s84]]
  %s86 = scalar_lea.smem %s0, 43
  %s87 = sld [smem:[%s86]]
  %s88 = scalar_lea.smem %s0, 44
  %s89 = sld [smem:[%s88]]
  %90 = xla_tuple %s87, %s89
  %s91 = sld [smem:[#allocation0]]
  $region190: #{encoder_decoder_forward.1} parent=0
    _
  %s93 = ssub.s32 1, %s91
  %s94 = scalar_select 0, %s93, %s91
  $region1: #{encoder_decoder_forward.1} parent=0
    #allocation2 [shape = 'u8[512]{0}', space=vmem, size = 0x400, scoped, tag = 'output window, operand 1, single buffered']
    #allocation3 [shape = 's32[1]{0}', space=sflag, size = 0x4, scoped, tag = 'scoped memory for encoder_decoder_forward.1']
    %95 = vsyncpa [#allocation3], 0
    // Predicated region
    $region2: #{encoder_decoder_forward.1} parent=1 // pred_check
      _
    $region3: #{encoder_decoder_forward.1} parent=1 // pred_check_branch
      %97 = sbr.rel (0) target = $region5
    $region4: #{encoder_decoder_forward.1} parent=1 // pred_region
      _
    $region5: #{encoder_decoder_forward.1} parent=1 // pred_fallthru
      _
    // Predicated region
    $region6: #{encoder_decoder_forward.1} parent=1 // pred_check
      _
    $region7: #{encoder_decoder_forward.1} parent=1 // pred_check_branch
      %99 = sbr.rel (0) target = $region9
    $region8: #{encoder_decoder_forward.1} parent=1 // pred_region
      _
    $region9: #{encoder_decoder_forward.1} parent=1 // pred_fallthru
      _
    // Predicated region
    $region10: #{encoder_decoder_forward.1} parent=1 // pred_check
      _
    $region11: #{encoder_decoder_forward.1} parent=1 // pred_check_branch
      %101 = sbr.rel (0) target = $region13
    $region12: #{encoder_decoder_forward.1} parent=1 // pred_region
      _
    $region13: #{encoder_decoder_forward.1} parent=1 // pred_fallthru
      _
    // Predicated region
    $region14: #{encoder_decoder_forward.1} parent=1 // pred_check
      _
    $region15: #{encoder_decoder_forward.1} parent=1 // pred_check_branch
      %103 = sbr.rel (0) target = $region17
    $region16: #{encoder_decoder_forward.1} parent=1 // pred_region
      _
    $region17: #{encoder_decoder_forward.1} parent=1 // pred_fallthru
      _
    // Predicated region
    $region18: #{encoder_decoder_forward.1} parent=1 // pred_check
      _
    $region19: #{encoder_decoder_forward.1} parent=1 // pred_check_branch
      %105 = sbr.rel (0) target = $region21
    $region20: #{encoder_decoder_forward.1} parent=1 // pred_region
      _
    $region21: #{encoder_decoder_forward.1} parent=1 // pred_fallthru
      _
    // Predicated region
    $region22: #{encoder_decoder_forward.1} parent=1 // pred_check
      _
    $region23: #{encoder_decoder_forward.1} parent=1 // pred_check_branch
      %107 = sbr.rel (0) target = $region25
    $region24: #{encoder_decoder_forward.1} parent=1 // pred_region
      _
    $region25: #{encoder_decoder_forward.1} parent=1 // pred_fallthru
      _
    // Predicated region
    $region26: #{encoder_decoder_forward.1} parent=1 // pred_check
      _
    $region27: #{encoder_decoder_forward.1} parent=1 // pred_check_branch
      %109 = sbr.rel (0) target = $region29
    $region28: #{encoder_decoder_forward.1} parent=1 // pred_region
      _
    $region29: #{encoder_decoder_forward.1} parent=1 // pred_fallthru
      _
    // Predicated region
    $region30: #{encoder_decoder_forward.1} parent=1 // pred_check
      _
    $region31: #{encoder_decoder_forward.1} parent=1 // pred_check_branch
      %111 = sbr.rel (0) target = $region33
    $region32: #{encoder_decoder_forward.1} parent=1 // pred_region
      _
    $region33: #{encoder_decoder_forward.1} parent=1 // pred_fallthru
      _
    // Predicated region
    $region34: #{encoder_decoder_forward.1} parent=1 // pred_check
      _
    $region35: #{encoder_decoder_forward.1} parent=1 // pred_check_branch
      %113 = sbr.rel (0) target = $region37
    $region36: #{encoder_decoder_forward.1} parent=1 // pred_region
      _
    $region37: #{encoder_decoder_forward.1} parent=1 // pred_fallthru
      _
    // Predicated region
    $region38: #{encoder_decoder_forward.1} parent=1 // pred_check
      _
    $region39: #{encoder_decoder_forward.1} parent=1 // pred_check_branch
      %115 = sbr.rel (0) target = $region41
    $region40: #{encoder_decoder_forward.1} parent=1 // pred_region
      _
    $region41: #{encoder_decoder_forward.1} parent=1 // pred_fallthru
      _
    // Predicated region
    $region42: #{encoder_decoder_forward.1} parent=1 // pred_check
      _
    $region43: #{encoder_decoder_forward.1} parent=1 // pred_check_branch
      %117 = sbr.rel (0) target = $region45
    $region44: #{encoder_decoder_forward.1} parent=1 // pred_region
      _
    $region45: #{encoder_decoder_forward.1} parent=1 // pred_fallthru
      _
    // Predicated region
    $region46: #{encoder_decoder_forward.1} parent=1 // pred_check
      _
    $region47: #{encoder_decoder_forward.1} parent=1 // pred_check_branch
      %119 = sbr.rel (0) target = $region49
    $region48: #{encoder_decoder_forward.1} parent=1 // pred_region
      _
    $region49: #{encoder_decoder_forward.1} parent=1 // pred_fallthru
      _
    // Predicated region
    $region50: #{encoder_decoder_forward.1} parent=1 // pred_check
      _
    $region51: #{encoder_decoder_forward.1} parent=1 // pred_check_branch
      %121 = sbr.rel (0) target = $region53
    $region52: #{encoder_decoder_forward.1} parent=1 // pred_region
      _
    $region53: #{encoder_decoder_forward.1} parent=1 // pred_fallthru
      _
    // Predicated region
    $region54: #{encoder_decoder_forward.1} parent=1 // pred_check
      _
    $region55: #{encoder_decoder_forward.1} parent=1 // pred_check_branch
      %123 = sbr.rel (0) target = $region57
    $region56: #{encoder_decoder_forward.1} parent=1 // pred_region
      _
    $region57: #{encoder_decoder_forward.1} parent=1 // pred_fallthru
      _
    // Predicated region
    $region58: #{encoder_decoder_forward.1} parent=1 // pred_check
      _
    $region59: #{encoder_decoder_forward.1} parent=1 // pred_check_branch
      %125 = sbr.rel (0) target = $region61
    $region60: #{encoder_decoder_forward.1} parent=1 // pred_region
      _
    $region61: #{encoder_decoder_forward.1} parent=1 // pred_fallthru
      _
    // Predicated region
    $region62: #{encoder_decoder_forward.1} parent=1 // pred_check
      _
    $region63: #{encoder_decoder_forward.1} parent=1 // pred_check_branch
      %127 = sbr.rel (0) target = $region65
    $region64: #{encoder_decoder_forward.1} parent=1 // pred_region
      _
    $region65: #{encoder_decoder_forward.1} parent=1 // pred_fallthru
      _
    // Predicated region
    $region66: #{encoder_decoder_forward.1} parent=1 // pred_check
      _
    $region67: #{encoder_decoder_forward.1} parent=1 // pred_check_branch
      %129 = sbr.rel (0) target = $region69
    $region68: #{encoder_decoder_forward.1} parent=1 // pred_region
      _
    $region69: #{encoder_decoder_forward.1} parent=1 // pred_fallthru
      _
    // Predicated region
    $region70: #{encoder_decoder_forward.1} parent=1 // pred_check
      _
    $region71: #{encoder_decoder_forward.1} parent=1 // pred_check_branch
      %131 = sbr.rel (0) target = $region73
    $region72: #{encoder_decoder_forward.1} parent=1 // pred_region
      _
    $region73: #{encoder_decoder_forward.1} parent=1 // pred_fallthru
      _
    // Predicated region
    $region74: #{encoder_decoder_forward.1} parent=1 // pred_check
      _
    $region75: #{encoder_decoder_forward.1} parent=1 // pred_check_branch
      %133 = sbr.rel (0) target = $region77
    $region76: #{encoder_decoder_forward.1} parent=1 // pred_region
      _
    $region77: #{encoder_decoder_forward.1} parent=1 // pred_fallthru
      _
    // Predicated region
    $region78: #{encoder_decoder_forward.1} parent=1 // pred_check
      _
    $region79: #{encoder_decoder_forward.1} parent=1 // pred_check_branch
      %135 = sbr.rel (0) target = $region81
    $region80: #{encoder_decoder_forward.1} parent=1 // pred_region
      _
    $region81: #{encoder_decoder_forward.1} parent=1 // pred_fallthru
      _
    // Predicated region
    $region82: #{encoder_decoder_forward.1} parent=1 // pred_check
      _
    $region83: #{encoder_decoder_forward.1} parent=1 // pred_check_branch
      %137 = sbr.rel (0) target = $region85
    $region84: #{encoder_decoder_forward.1} parent=1 // pred_region
      _
    $region85: #{encoder_decoder_forward.1} parent=1 // pred_fallthru
      _
    // Predicated region
    $region86: #{encoder_decoder_forward.1} parent=1 // pred_check
      _
    $region87: #{encoder_decoder_forward.1} parent=1 // pred_check_branch
      %139 = sbr.rel (0) target = $region89
    $region88: #{encoder_decoder_forward.1} parent=1 // pred_region
      _
    $region89: #{encoder_decoder_forward.1} parent=1 // pred_fallthru
      _
    // Predicated region
    $region90: #{encoder_decoder_forward.1} parent=1 // pred_check
      _
    $region91: #{encoder_decoder_forward.1} parent=1 // pred_check_branch
      %141 = sbr.rel (0) target = $region93
    $region92: #{encoder_decoder_forward.1} parent=1 // pred_region
      _
    $region93: #{encoder_decoder_forward.1} parent=1 // pred_fallthru
      _
    // Predicated region
    $region94: #{encoder_decoder_forward.1} parent=1 // pred_check
      _
    $region95: #{encoder_decoder_forward.1} parent=1 // pred_check_branch
      %143 = sbr.rel (0) target = $region97
    $region96: #{encoder_decoder_forward.1} parent=1 // pred_region
      _
    $region97: #{encoder_decoder_forward.1} parent=1 // pred_fallthru
      _
    // Predicated region
    $region98: #{encoder_decoder_forward.1} parent=1 // pred_check
      _
    $region99: #{encoder_decoder_forward.1} parent=1 // pred_check_branch
      %145 = sbr.rel (0) target = $region101
    $region100: #{encoder_decoder_forward.1} parent=1 // pred_region
      _
    $region101: #{encoder_decoder_forward.1} parent=1 // pred_fallthru
      _
    // Predicated region
    $region102: #{encoder_decoder_forward.1} parent=1 // pred_check
      _
    $region103: #{encoder_decoder_forward.1} parent=1 // pred_check_branch
      %147 = sbr.rel (0) target = $region105
    $region104: #{encoder_decoder_forward.1} parent=1 // pred_region
      _
    $region105: #{encoder_decoder_forward.1} parent=1 // pred_fallthru
      _
    // Predicated region
    $region106: #{encoder_decoder_forward.1} parent=1 // pred_check
      _
    $region107: #{encoder_decoder_forward.1} parent=1 // pred_check_branch
      %149 = sbr.rel (0) target = $region109
    $region108: #{encoder_decoder_forward.1} parent=1 // pred_region
      _
    $region109: #{encoder_decoder_forward.1} parent=1 // pred_fallthru
      _
    // Predicated region
    $region110: #{encoder_decoder_forward.1} parent=1 // pred_check
      _
    $region111: #{encoder_decoder_forward.1} parent=1 // pred_check_branch
      %151 = sbr.rel (0) target = $region113
    $region112: #{encoder_decoder_forward.1} parent=1 // pred_region
      _
    $region113: #{encoder_decoder_forward.1} parent=1 // pred_fallthru
      _
    // Predicated region
    $region114: #{encoder_decoder_forward.1} parent=1 // pred_check
      _
    $region115: #{encoder_decoder_forward.1} parent=1 // pred_check_branch
      %153 = sbr.rel (0) target = $region117
    $region116: #{encoder_decoder_forward.1} parent=1 // pred_region
      _
    $region117: #{encoder_decoder_forward.1} parent=1 // pred_fallthru
      _
    // Predicated region
    $region118: #{encoder_decoder_forward.1} parent=1 // pred_check
      _
    $region119: #{encoder_decoder_forward.1} parent=1 // pred_check_branch
      %155 = sbr.rel (0) target = $region121
    $region120: #{encoder_decoder_forward.1} parent=1 // pred_region
      _
    $region121: #{encoder_decoder_forward.1} parent=1 // pred_fallthru
      _
    // Predicated region
    $region122: #{encoder_decoder_forward.1} parent=1 // pred_check
      _
    $region123: #{encoder_decoder_forward.1} parent=1 // pred_check_branch
      %157 = sbr.rel (0) target = $region125
    $region124: #{encoder_decoder_forward.1} parent=1 // pred_region
      _
    $region125: #{encoder_decoder_forward.1} parent=1 // pred_fallthru
      _
    // Predicated region
    $region126: #{encoder_decoder_forward.1} parent=1 // pred_check
      _
    $region127: #{encoder_decoder_forward.1} parent=1 // pred_check_branch
      %159 = sbr.rel (0) target = $region129
    $region128: #{encoder_decoder_forward.1} parent=1 // pred_region
      _
    $region129: #{encoder_decoder_forward.1} parent=1 // pred_fallthru
      _
    // Predicated region
    $region130: #{encoder_decoder_forward.1} parent=1 // pred_check
      _
    $region131: #{encoder_decoder_forward.1} parent=1 // pred_check_branch
      %161 = sbr.rel (0) target = $region133
    $region132: #{encoder_decoder_forward.1} parent=1 // pred_region
      _
    $region133: #{encoder_decoder_forward.1} parent=1 // pred_fallthru
      _
    // Predicated region
    $region134: #{encoder_decoder_forward.1} parent=1 // pred_check
      _
    $region135: #{encoder_decoder_forward.1} parent=1 // pred_check_branch
      %163 = sbr.rel (0) target = $region137
    $region136: #{encoder_decoder_forward.1} parent=1 // pred_region
      _
    $region137: #{encoder_decoder_forward.1} parent=1 // pred_fallthru
      _
    // Predicated region
    $region138: #{encoder_decoder_forward.1} parent=1 // pred_check
      _
    $region139: #{encoder_decoder_forward.1} parent=1 // pred_check_branch
      %165 = sbr.rel (0) target = $region141
    $region140: #{encoder_decoder_forward.1} parent=1 // pred_region
      _
    $region141: #{encoder_decoder_forward.1} parent=1 // pred_fallthru
      _
    // Predicated region
    $region142: #{encoder_decoder_forward.1} parent=1 // pred_check
      _
    $region143: #{encoder_decoder_forward.1} parent=1 // pred_check_branch
      %167 = sbr.rel (0) target = $region145
    $region144: #{encoder_decoder_forward.1} parent=1 // pred_region
      _
    $region145: #{encoder_decoder_forward.1} parent=1 // pred_fallthru
      _
    // Predicated region
    $region146: #{encoder_decoder_forward.1} parent=1 // pred_check
      _
    $region147: #{encoder_decoder_forward.1} parent=1 // pred_check_branch
      %169 = sbr.rel (0) target = $region149
    $region148: #{encoder_decoder_forward.1} parent=1 // pred_region
      _
    $region149: #{encoder_decoder_forward.1} parent=1 // pred_fallthru
      _
    // Predicated region
    $region150: #{encoder_decoder_forward.1} parent=1 // pred_check
      _
    $region151: #{encoder_decoder_forward.1} parent=1 // pred_check_branch
      %171 = sbr.rel (0) target = $region153
    $region152: #{encoder_decoder_forward.1} parent=1 // pred_region
      _
    $region153: #{encoder_decoder_forward.1} parent=1 // pred_fallthru
      _
    // Predicated region
    $region154: #{encoder_decoder_forward.1} parent=1 // pred_check
      _
    $region155: #{encoder_decoder_forward.1} parent=1 // pred_check_branch
      %173 = sbr.rel (0) target = $region157
    $region156: #{encoder_decoder_forward.1} parent=1 // pred_region
      _
    $region157: #{encoder_decoder_forward.1} parent=1 // pred_fallthru
      _
    // Predicated region
    $region158: #{encoder_decoder_forward.1} parent=1 // pred_check
      _
    $region159: #{encoder_decoder_forward.1} parent=1 // pred_check_branch
      %175 = sbr.rel (0) target = $region161
    $region160: #{encoder_decoder_forward.1} parent=1 // pred_region
      _
    $region161: #{encoder_decoder_forward.1} parent=1 // pred_fallthru
      _
    // Predicated region
    $region162: #{encoder_decoder_forward.1} parent=1 // pred_check
      _
    $region163: #{encoder_decoder_forward.1} parent=1 // pred_check_branch
      %177 = sbr.rel (0) target = $region165
    $region164: #{encoder_decoder_forward.1} parent=1 // pred_region
      _
    $region165: #{encoder_decoder_forward.1} parent=1 // pred_fallthru
      _
    // Predicated region
    $region166: #{encoder_decoder_forward.1} parent=1 // pred_check
      _
    $region167: #{encoder_decoder_forward.1} parent=1 // pred_check_branch
      %179 = sbr.rel (0) target = $region169
    $region168: #{encoder_decoder_forward.1} parent=1 // pred_region
      _
    $region169: #{encoder_decoder_forward.1} parent=1 // pred_fallthru
      _
    // Predicated region
    $region170: #{encoder_decoder_forward.1} parent=1 // pred_check
      _
    $region171: #{encoder_decoder_forward.1} parent=1 // pred_check_branch
      %181 = sbr.rel (0) target = $region173
    $region172: #{encoder_decoder_forward.1} parent=1 // pred_region
      _
    $region173: #{encoder_decoder_forward.1} parent=1 // pred_fallthru
      _
    %v183 = vld [vmem:[%s19] sm:$0xff]
    %v184 = vld [vmem:[%s19 + $0x8] sm:$0xff]
    %v185 = vld [vmem:[%s19 + $0x10] sm:$0xff]
    %v186 = vld [vmem:[%s19 + $0x18] sm:$0xff]
    %v187 = vld [vmem:[%s19 + $0x20] sm:$0xff]
    %v188 = vld [vmem:[%s19 + $0x28] sm:$0xff]
    %v189 = vld [vmem:[%s19 + $0x30] sm:$0xff]
    %v190 = vld [vmem:[%s19 + $0x38] sm:$0xff]
    %v191 = vld [vmem:[%s19 + $0x40] sm:$0xff]
    %v192 = vld [vmem:[%s19 + $0x48] sm:$0xff]
    %v193 = vld [vmem:[%s19 + $0x50] sm:$0xff]
    %v194 = vld [vmem:[%s19 + $0x58] sm:$0xff]
    %v195 = vld [vmem:[%s19 + $0x60] sm:$0xff]
    %v196 = vld [vmem:[%s19 + $0x68] sm:$0xff]
    %v197 = vld [vmem:[%s19 + $0x70] sm:$0xff]
    %v198 = vld [vmem:[%s19 + $0x78] sm:$0xff]
    %v199 = vld [vmem:[%s19 + $0x80] sm:$0xff]
    %v200 = vld [vmem:[%s19 + $0x88] sm:$0xff]
    %v201 = vld [vmem:[%s19 + $0x90] sm:$0xff]
    %v202 = vld [vmem:[%s19 + $0x98] sm:$0xff]
    %v203 = vld [vmem:[%s19 + $0xa0] sm:$0xff]
    %v204 = vld [vmem:[%s19 + $0xa8] sm:$0xff]
    %v205 = vld [vmem:[%s19 + $0xb0] sm:$0xff]
    %v206 = vld [vmem:[%s19 + $0xb8] sm:$0xff]
    %v207 = vld [vmem:[%s21] sm:$0x1]
    %v208 = vld [vmem:[%s23] sm:$0x1]
    %v209 = vld [vmem:[%s25] sm:$0x1]
    %v210 = vld [vmem:[%s27] sm:$0x1]
    %v211 = vld [vmem:[%s29] sm:$0xff]
    %v212 = vld [vmem:[%s29 + $0x8] sm:$0xff]
    %v213 = vld [vmem:[%s29 + $0x10] sm:$0xff]
    %v214 = vld [vmem:[%s29 + $0x18] sm:$0xff]
    %v215 = vld [vmem:[%s31] sm:$0x1]
    %v216 = vld [vmem:[%s33] sm:$0xff]
    %v217 = vld [vmem:[%s33 + $0x8] sm:$0xff]
    %v218 = vld [vmem:[%s33 + $0x10] sm:$0xff]
    %v219 = vld [vmem:[%s33 + $0x18] sm:$0xff]
    %v220 = vld [vmem:[%s35] sm:$0x1]
    %v221 = vld [vmem:[%s37] sm:$0x1]
    %v222 = vld [vmem:[%s39] sm:$0x1]
    %v223 = vld [vmem:[%s41] sm:$0xff]
    %v224 = vld [vmem:[%s41 + $0x8] sm:$0xff]
    %v225 = vld [vmem:[%s41 + $0x10] sm:$0xff]
    %v226 = vld [vmem:[%s41 + $0x18] sm:$0xff]
    %v227 = vld [vmem:[%s43] sm:$0x1]
    %v228 = vld [vmem:[%s45] sm:$0xff]
    %v229 = vld [vmem:[%s45 + $0x8] sm:$0xff]
    %v230 = vld [vmem:[%s45 + $0x10] sm:$0xff]
    %v231 = vld [vmem:[%s45 + $0x18] sm:$0xff]
    %v232 = vld [vmem:[%s45 + $0x20] sm:$0xff]
    %v233 = vld [vmem:[%s45 + $0x28] sm:$0xff]
    %v234 = vld [vmem:[%s45 + $0x30] sm:$0xff]
    %v235 = vld [vmem:[%s45 + $0x38] sm:$0xff]
    %v236 = vld [vmem:[%s45 + $0x40] sm:$0xff]
    %v237 = vld [vmem:[%s45 + $0x48] sm:$0xff]
    %v238 = vld [vmem:[%s45 + $0x50] sm:$0xff]
    %v239 = vld [vmem:[%s45 + $0x58] sm:$0xff]
    %v240 = vld [vmem:[%s45 + $0x60] sm:$0xff]
    %v241 = vld [vmem:[%s45 + $0x68] sm:$0xff]
    %v242 = vld [vmem:[%s45 + $0x70] sm:$0xff]
    %v243 = vld [vmem:[%s45 + $0x78] sm:$0xff]
    %v244 = vld [vmem:[%s47] sm:$0x1]
    %v245 = vld [vmem:[%s49] sm:$0x1]
    %v246 = vld [vmem:[%s51] sm:$0x1]
    %v247 = vld [vmem:[%s53] sm:$0xff]
    %v248 = vld [vmem:[%s53 + $0x8] sm:$0xff]
    %v249 = vld [vmem:[%s53 + $0x10] sm:$0xff]
    %v250 = vld [vmem:[%s53 + $0x18] sm:$0xff]
    %v251 = vld [vmem:[%s55] sm:$0x1]
    %v252 = vld [vmem:[%s57] sm:$0xff]
    %v253 = vld [vmem:[%s57 + $0x8] sm:$0xff]
    %v254 = vld [vmem:[%s57 + $0x10] sm:$0xff]
    %v255 = vld [vmem:[%s57 + $0x18] sm:$0xff]
    %v256 = vld [vmem:[%s57 + $0x20] sm:$0xff]
    %v257 = vld [vmem:[%s57 + $0x28] sm:$0xff]
    %v258 = vld [vmem:[%s57 + $0x30] sm:$0xff]
    %v259 = vld [vmem:[%s57 + $0x38] sm:$0xff]
    %v260 = vld [vmem:[%s57 + $0x40] sm:$0xff]
    %v261 = vld [vmem:[%s57 + $0x48] sm:$0xff]
    %v262 = vld [vmem:[%s57 + $0x50] sm:$0xff]
    %v263 = vld [vmem:[%s57 + $0x58] sm:$0xff]
    %v264 = vld [vmem:[%s57 + $0x60] sm:$0xff]
    %v265 = vld [vmem:[%s57 + $0x68] sm:$0xff]
    %v266 = vld [vmem:[%s57 + $0x70] sm:$0xff]
    %v267 = vld [vmem:[%s57 + $0x78] sm:$0xff]
    %v268 = vld [vmem:[%s59] sm:$0x1]
    %v269 = vld [vmem:[%s61] sm:$0x1]
    %v270 = vld [vmem:[%s63] sm:$0xff]
    %v271 = vld [vmem:[%s63 + $0x8] sm:$0xff]
    %v272 = vld [vmem:[%s63 + $0x10] sm:$0xff]
    %v273 = vld [vmem:[%s63 + $0x18] sm:$0xff]
    %v274 = vld [vmem:[%s65] sm:$0x1]
    %v275 = vld [vmem:[%s67] sm:$0xff]
    %v276 = vld [vmem:[%s67 + $0x8] sm:$0xff]
    %v277 = vld [vmem:[%s67 + $0x10] sm:$0xff]
    %v278 = vld [vmem:[%s67 + $0x18] sm:$0xff]
    %v279 = vld [vmem:[%s69] sm:$0x1]
    %v280 = vld [vmem:[%s71] sm:$0x1]
    %v281 = vld [vmem:[%s73] sm:$0x1]
    %v282 = vld [vmem:[%s75] sm:$0xff]
    %v283 = vld [vmem:[%s75 + $0x8] sm:$0xff]
    %v284 = vld [vmem:[%s75 + $0x10] sm:$0xff]
    %v285 = vld [vmem:[%s75 + $0x18] sm:$0xff]
    %v286 = vld [vmem:[%s77] sm:$0x1]
    %v287 = vld [vmem:[%s79] sm:$0xff]
    %v288 = vld [vmem:[%s79 + $0x8] sm:$0xff]
    %v289 = vld [vmem:[%s79 + $0x10] sm:$0xff]
    %v290 = vld [vmem:[%s79 + $0x18] sm:$0xff]
    %v291 = vld [vmem:[%s79 + $0x20] sm:$0xff]
    %v292 = vld [vmem:[%s79 + $0x28] sm:$0xff]
    %v293 = vld [vmem:[%s79 + $0x30] sm:$0xff]
    %v294 = vld [vmem:[%s79 + $0x38] sm:$0xff]
    %v295 = vld [vmem:[%s79 + $0x40] sm:$0xff]
    %v296 = vld [vmem:[%s79 + $0x48] sm:$0xff]
    %v297 = vld [vmem:[%s79 + $0x50] sm:$0xff]
    %v298 = vld [vmem:[%s79 + $0x58] sm:$0xff]
    %v299 = vld [vmem:[%s79 + $0x60] sm:$0xff]
    %v300 = vld [vmem:[%s79 + $0x68] sm:$0xff]
    %v301 = vld [vmem:[%s79 + $0x70] sm:$0xff]
    %v302 = vld [vmem:[%s79 + $0x78] sm:$0xff]
    %v303 = vld [vmem:[%s81] sm:$0x1]
    %v304 = vld [vmem:[%s83] sm:$0x1]
    %v305 = vld [vmem:[%s85] sm:$0x1]
    %v306 = vld [vmem:[%s1] sm:$0xff]
    %v307 = vld [vmem:[%s1 + $0x8] sm:$0xff]
    %v308 = vld [vmem:[%s1 + $0x10] sm:$0x3]
    %v309 = vld [vmem:[%s1 + $0x18] sm:$0x3]
    %v310 = vpack.c.bf16 %v308, %v306
    %v311 = vpack.c.bf16 %v309, %v307
    %v312 = vpack.c.bf16 %v184, %v183
    %v313 = vpack.c.bf16 %v186, %v185
    %v314 = vpack.c.bf16 %v188, %v187
    %v315 = vpack.c.bf16 %v190, %v189
    %v316 = vpack.c.bf16 %v192, %v191
    %v317 = vpack.c.bf16 %v194, %v193
    %v318 = vpack.c.bf16 %v196, %v195
    %v319 = vpack.c.bf16 %v198, %v197
    %v320 = vpack.c.bf16 %v200, %v199
    %v321 = vpack.c.bf16 %v202, %v201
    %v322 = vpack.c.bf16 %v204, %v203
    %v323 = vpack.c.bf16 %v206, %v205
    %v325 = vlaneseq
    %v326 = vshrl.u32 %v325, 7
    %v327 = vsub.s32 0, %v326
    %v328 = vrot.slane %v207, %v327
    %vm330 = vcmask 523264
    %v332 = vsel %vm330, %v311, 0
    %334 = vmatprep.subr.bf16.mxu0 0
    %335 = vmatpush1.bf16.msra.mxu0 %v312
    %336 = vmatprep.subr.bf16.mxu0 0
    %337 = vmatpush1.bf16.msra.mxu0 %v313
    %338 = vmatprep.subr.bf16.mxu0 0
    %339 = vmatpush1.bf16.msra.mxu0 %v314
    %340 = vmatprep.subr.bf16.mxu0 0
    %341 = vmatpush1.bf16.msra.mxu0 %v315
    %342 = vmatprep.subr.bf16.mxu0 0
    %343 = vmatpush1.bf16.msra.mxu0 %v316
    %344 = vmatprep.subr.bf16.mxu0 0
    %345 = vmatpush1.bf16.msra.mxu0 %v317
    %346 = vmatprep.subr.bf16.mxu0 0
    %347 = vmatpush1.bf16.msra.mxu0 %v318
    %348 = vmatprep.subr.bf16.mxu0 0
    %349 = vmatpush1.bf16.msra.mxu0 %v319
    %350 = vmatprep.subr.bf16.mxu0 0
    %351 = vmatpush1.bf16.msra.mxu0 %v320
    %352 = vmatprep.subr.bf16.mxu0 0
    %353 = vmatpush1.bf16.msra.mxu0 %v321
    %354 = vmatprep.subr.bf16.mxu0 0
    %355 = vmatpush1.bf16.msra.mxu0 %v322
    %356 = vmatprep.subr.bf16.mxu0 0
    %357 = vmatpush1.bf16.msra.mxu0 %v323
    %358 = vmatprep.subr.bf16.mxu0 0
    %359 = vmatpush1.bf16.msra.mxu0 0
    %360 = vmatprep.subr.bf16.mxu0 0
    %361 = vmatpush1.bf16.msra.mxu0 0
    %362 = vmatprep.subr.bf16.mxu0 0
    %363 = vmatpush1.bf16.msra.mxu0 0
    %364 = vmatprep.subr.bf16.mxu0 0
    %365 = vmatpush1.bf16.msra.mxu0 0
    %366 = vmatprep.mubr.bf16.mxu0 %v332
    %367 = vmatmul.mubr.bf16.gmra.mrb[0].mxu0 %v310
    %v368 = vpop.f32.mrb[0].mxu0
    %v369 = vadd.f32 %v328, %v368
    %v370 = vpop.f32.mrb[0].mxu0
    %v371 = vpop.f32.mrb[0].mxu0
    %v372 = vadd.f32 %v328, %v371
    %v373 = vpop.f32.mrb[0].mxu0
    %374 = vdwg.mxu0
    %v375 = vld [vmem:[%s3] sm:$0xff]
    %v376 = vld [vmem:[%s3 + $0x8] sm:$0x3]
    %v378 = vlaneseq
    %v379 = vshrl.u32 %v378, 7
    %v380 = vsub.s32 0, %v379
    %v381 = vrot.slane %v208, %v380
    %384 = vset.pattern.permute.xlu0 0
    %385 = vperm.xlu0 %384, %v375
    %v386 = vpop.permute.xlu0 %385
    %389 = vset.pattern.permute.xlu0 0
    %390 = vperm.xlu0 %389, %v376
    %v391 = vpop.permute.xlu0 %390
    %v393 = vmul.f32 %v386, %v381
    %v394 = vmul.f32 %v391, %v381
    %v395 = vsub.f32 1.0, %v375
    %v396 = vsub.f32 1.0, %v376
    %398 = vset.pattern.permute.xlu0 0
    %399 = vperm.xlu0 %398, %v395
    %v400 = vpop.permute.xlu0 %399
    %403 = vset.pattern.permute.xlu0 0
    %404 = vperm.xlu0 %403, %v396
    %v405 = vpop.permute.xlu0 %404
    %v407 = vmul.f32 %v400, %v369
    %v408 = vmul.f32 %v405, %v372
    %v409 = vadd.f32 %v393, %v407
    %v410 = vadd.f32 %v394, %v408
    %v411 = vld [vmem:[%s5] sm:$0xff]
    %v412 = vld [vmem:[%s5 + $0x8] sm:$0x3]
    %v413 = vadd.f32 %v409, %v411
    %v414 = vadd.f32 %v410, %v412
    %v415 = vlaneseq
    %v416 = vshrl.u32 %v415, 7
    %v417 = vadd.s32 %v416, 8
    %v418 = vlaneseq
    %v419 = vand.u32 %v418, 127
    %vm420 = vcmp.ge.s32.totalorder %v416, 0
    %vm421 = vcmp.ge.s32.totalorder %v417, 0
    %vm422 = vcmp.lt.s32.totalorder %v416, 5
    %vm423 = vcmp.lt.s32.totalorder %v417, 5
    %vm424 = vmand %vm420, %vm422
    %vm425 = vmand %vm421, %vm423
    %v426 = vsel %vm424, 1, 0
    %v427 = vsel %vm425, 1, 0
    %v428 = vcvt.s32.f32 %v426
    %v429 = vcvt.s32.f32 %v427
    %vm430 = vcmp.ge.s32.totalorder %v419, 0
    %vm431 = vcmp.lt.s32.totalorder %v419, 5
    %vm432 = vmand %vm430, %vm431
    %v433 = vsel %vm432, 1, 0
    %v434 = vcvt.s32.f32 %v433
    %v435 = vmul.f32 %v428, %v434
    %v436 = vmul.f32 %v429, %v434
    %v437 = vadd.f32 %v435, 0.0
    %v438 = vadd.f32 %v436, 0.0
    %vm439 = vcmp.ge.s32.totalorder %v416, 5
    %vm440 = vcmp.ge.s32.totalorder %v417, 5
    %vm441 = vcmp.lt.s32.totalorder %v416, 10
    %vm442 = vcmp.lt.s32.totalorder %v417, 10
    %vm443 = vmand %vm439, %vm441
    %vm444 = vmand %vm440, %vm442
    %v445 = vsel %vm443, 1, 0
    %v446 = vsel %vm444, 1, 0
    %v447 = vcvt.s32.f32 %v445
    %v448 = vcvt.s32.f32 %v446
    %vm449 = vcmp.ge.s32.totalorder %v419, 5
    %vm450 = vcmp.lt.s32.totalorder %v419, 10
    %vm451 = vmand %vm449, %vm450
    %v452 = vsel %vm451, 1, 0
    %v453 = vcvt.s32.f32 %v452
    %v454 = vmul.f32 %v447, %v453
    %v455 = vmul.f32 %v448, %v453
    %v456 = vadd.f32 %v437, %v454
    %v457 = vadd.f32 %v438, %v455
    %v458 = vsub.f32 1.0, %v456
    %v459 = vsub.f32 1.0, %v457
    %v460 = vmul.f32 %v458, -1e+09
    %v461 = vmul.f32 %v459, -1e+09
    %vm462 = vcmask 261120
    %v463 = vsel %vm462, %v413, 0.0
    %464 = vadd.xlane.f32.xlu0 %v463
    %v465 = vpop.xlane.xlu0 %464
    %vm466 = vcmask 254976
    %v467 = vsel %vm466, %v414, 0.0
    %468 = vadd.xlane.f32.xlu0 %v467
    %v469 = vpop.xlane.xlu0 %468
    %v470 = vrcp.pop 32.0
    %v471 = vmul.f32 %v465, %v470
    %v472 = vmul.f32 %v469, %v470
    %v473 = vsub.f32 %v413, %v471
    %v474 = vsub.f32 %v414, %v472
    %v475 = vmul.f32 %v473, %v473
    %v476 = vmul.f32 %v474, %v474
    %v477 = vsel %vm462, %v475, 0.0
    %478 = vadd.xlane.f32.xlu0 %v477
    %v479 = vpop.xlane.xlu0 %478
    %v480 = vsel %vm466, %v476, 0.0
    %481 = vadd.xlane.f32.xlu0 %v480
    %v482 = vpop.xlane.xlu0 %481
    %v483 = vmul.f32 %v479, %v470
    %v484 = vmul.f32 %v482, %v470
    %v485 = vadd.f32 %v483, 1e-05
    %v486 = vadd.f32 %v484, 1e-05
    %v487 = vrsqrt.pop %v485
    %v488 = vrsqrt.pop %v486
    %v489 = vmul.f32 %v473, %v487
    %v490 = vmul.f32 %v474, %v488
    %v492 = vlaneseq
    %v493 = vshrl.u32 %v492, 7
    %v494 = vsub.s32 0, %v493
    %v495 = vrot.slane %v209, %v494
    %v497 = vmul.f32 %v489, %v495
    %v498 = vmul.f32 %v490, %v495
    %v500 = vlaneseq
    %v501 = vshrl.u32 %v500, 7
    %v502 = vsub.s32 0, %v501
    %v503 = vrot.slane %v210, %v502
    %v505 = vadd.f32 %v497, %v503
    %v506 = vadd.f32 %v498, %v503
    %v507 = vpack.c.bf16 %v506, %v505
    %v508 = vpack.c.bf16 %v212, %v211
    %v509 = vpack.c.bf16 %v214, %v213
    %v511 = vlaneseq
    %v512 = vshrl.u32 %v511, 7
    %v513 = vsub.s32 0, %v512
    %v514 = vrot.slane %v215, %v513
    %v517 = vsel %vm462, %v507, 0
    %519 = vmatprep.subr.bf16.mxu0 0
    %520 = vmatpush1.bf16.msra.mxu0 %v508
    %521 = vmatprep.subr.bf16.mxu0 0
    %522 = vmatpush1.bf16.msra.mxu0 %v509
    %523 = vmatprep.subr.bf16.mxu0 0
    %524 = vmatpush1.bf16.msra.mxu0 0
    %525 = vmatprep.subr.bf16.mxu0 0
    %526 = vmatpush1.bf16.msra.mxu0 0
    %527 = vmatprep.subr.bf16.mxu0 0
    %528 = vmatpush1.bf16.msra.mxu0 0
    %529 = vmatprep.subr.bf16.mxu0 0
    %530 = vmatpush1.bf16.msra.mxu0 0
    %531 = vmatprep.subr.bf16.mxu0 0
    %532 = vmatpush1.bf16.msra.mxu0 0
    %533 = vmatprep.subr.bf16.mxu0 0
    %534 = vmatpush1.bf16.msra.mxu0 0
    %535 = vmatprep.subr.bf16.mxu0 0
    %536 = vmatpush1.bf16.msra.mxu0 0
    %537 = vmatprep.subr.bf16.mxu0 0
    %538 = vmatpush1.bf16.msra.mxu0 0
    %539 = vmatprep.subr.bf16.mxu0 0
    %540 = vmatpush1.bf16.msra.mxu0 0
    %541 = vmatprep.subr.bf16.mxu0 0
    %542 = vmatpush1.bf16.msra.mxu0 0
    %543 = vmatprep.subr.bf16.mxu0 0
    %544 = vmatpush1.bf16.msra.mxu0 0
    %545 = vmatprep.subr.bf16.mxu0 0
    %546 = vmatpush1.bf16.msra.mxu0 0
    %547 = vmatprep.subr.bf16.mxu0 0
    %548 = vmatpush1.bf16.msra.mxu0 0
    %549 = vmatprep.subr.bf16.mxu0 0
    %550 = vmatpush1.bf16.msra.mxu0 0
    %551 = vmatprep.mubr.bf16.mxu0 0
    %552 = vmatmul.mubr.bf16.gmra.mrb[0].mxu0 %v517
    %v553 = vpop.f32.mrb[0].mxu0
    %v554 = vadd.f32 %v514, %v553
    %v555 = vpop.f32.mrb[0].mxu0
    %v556 = vpop.f32.mrb[0].mxu0
    %v557 = vadd.f32 %v514, %v556
    %v558 = vpop.f32.mrb[0].mxu0
    %559 = vdwg.mxu0
    %v560 = vpack.c.bf16 %v557, %v554
    %562 = vrot.lane.b32.xlu0 %v560, 96
    %v563 = vpop.permute.xlu0 %562
    %vm564 = vcmask 64512
    %v566 = vsel %vm564, %v560, 0
    %v569 = vsel %vm564, %v563, 0
    %571 = vmatprep.subr.bf16.mxu0 0
    %572 = vmatpush1.bf16.xpose.msra.mxu0 %v569
    %573 = vmatprep.subr.bf16.mxu0 0
    %574 = vmatpush1.bf16.xpose.msra.mxu0 0
    %575 = vmatprep.subr.bf16.mxu0 0
    %576 = vmatpush1.bf16.xpose.msra.mxu0 0
    %577 = vmatprep.subr.bf16.mxu0 0
    %578 = vmatpush1.bf16.xpose.msra.mxu0 0
    %579 = vmatprep.subr.bf16.mxu0 0
    %580 = vmatpush1.bf16.xpose.msra.mxu0 0
    %581 = vmatprep.subr.bf16.mxu0 0
    %582 = vmatpush1.bf16.xpose.msra.mxu0 0
    %583 = vmatprep.subr.bf16.mxu0 0
    %584 = vmatpush1.bf16.xpose.msra.mxu0 0
    %585 = vmatprep.subr.bf16.mxu0 0
    %586 = vmatpush1.bf16.xpose.msra.mxu0 0
    %587 = vmatprep.subr.bf16.mxu0 0
    %588 = vmatpush1.bf16.xpose.msra.mxu0 0
    %589 = vmatprep.subr.bf16.mxu0 0
    %590 = vmatpush1.bf16.xpose.msra.mxu0 0
    %591 = vmatprep.subr.bf16.mxu0 0
    %592 = vmatpush1.bf16.xpose.msra.mxu0 0
    %593 = vmatprep.subr.bf16.mxu0 0
    %594 = vmatpush1.bf16.xpose.msra.mxu0 0
    %595 = vmatprep.subr.bf16.mxu0 0
    %596 = vmatpush1.bf16.xpose.msra.mxu0 0
    %597 = vmatprep.subr.bf16.mxu0 0
    %598 = vmatpush1.bf16.xpose.msra.mxu0 0
    %599 = vmatprep.subr.bf16.mxu0 0
    %600 = vmatpush1.bf16.xpose.msra.mxu0 0
    %601 = vmatprep.subr.bf16.mxu0 0
    %602 = vmatpush1.bf16.xpose.msra.mxu0 0
    %603 = vmatprep.mubr.bf16.mxu0 0
    %604 = vmatmul.mubr.bf16.gmra.mrb[0].mxu0 %v566
    %v605 = vpop.f32.mrb[0].mxu0
    %v606 = vadd.f32 0.0, %v605
    %v607 = vpop.f32.mrb[0].mxu0
    %v608 = vpop.f32.mrb[0].mxu0
    %v609 = vadd.f32 0.0, %v608
    %v610 = vpop.f32.mrb[0].mxu0
    %611 = vdwg.mxu0
    %v612 = vmul.f32 %v606, 0.35355338
    %v613 = vmul.f32 %v609, 0.35355338
    %v614 = vadd.f32 %v612, %v460
    %v615 = vadd.f32 %v613, %v461
    %vm616 = vcmask 80896
    %v617 = vsel %vm616, %v614, -inf
    %618 = vmax.xlane.f32.xlu0 %v617
    %v619 = vpop.xlane.xlu0 %618
    %vm620 = vcmask 74752
    %v621 = vsel %vm620, %v615, -inf
    %622 = vmax.xlane.f32.xlu0 %v621
    %v623 = vpop.xlane.xlu0 %622
    %v624 = vsub.f32 %v614, %v619
    %v625 = vsub.f32 %v615, %v623
    %v626 = vmul.f32 %v624, 1.442695
    %v627 = vpow.pop %v626
    %v628 = vmul.f32 %v625, 1.442695
    %v629 = vpow.pop %v628
    %v630 = vsel %vm616, %v627, 0.0
    %631 = vadd.xlane.f32.xlu0 %v630
    %v632 = vpop.xlane.xlu0 %631
    %v633 = vsel %vm620, %v629, 0.0
    %634 = vadd.xlane.f32.xlu0 %v633
    %v635 = vpop.xlane.xlu0 %634
    %v636 = vrcp.pop %v632
    %v637 = vrcp.pop %v635
    %v638 = vmul.f32 %v627, %v636
    %v639 = vmul.f32 %v629, %v637
    %v640 = vpack.c.bf16 %v639, %v638
    %641 = vrot.lane.b32.xlu0 %v560, 64
    %v642 = vpop.permute.xlu0 %641
    %v644 = vsel %vm616, %v640, 0
    %vm646 = vcmask 1044480
    %v648 = vsel %vm646, %v642, 0
    %650 = vmatprep.subr.bf16.mxu0 0
    %651 = vmatpush1.bf16.msra.mxu0 %v648
    %652 = vmatprep.subr.bf16.mxu0 0
    %653 = vmatpush1.bf16.msra.mxu0 0
    %654 = vmatprep.subr.bf16.mxu0 0
    %655 = vmatpush1.bf16.msra.mxu0 0
    %656 = vmatprep.subr.bf16.mxu0 0
    %657 = vmatpush1.bf16.msra.mxu0 0
    %658 = vmatprep.subr.bf16.mxu0 0
    %659 = vmatpush1.bf16.msra.mxu0 0
    %660 = vmatprep.subr.bf16.mxu0 0
    %661 = vmatpush1.bf16.msra.mxu0 0
    %662 = vmatprep.subr.bf16.mxu0 0
    %663 = vmatpush1.bf16.msra.mxu0 0
    %664 = vmatprep.subr.bf16.mxu0 0
    %665 = vmatpush1.bf16.msra.mxu0 0
    %666 = vmatprep.subr.bf16.mxu0 0
    %667 = vmatpush1.bf16.msra.mxu0 0
    %668 = vmatprep.subr.bf16.mxu0 0
    %669 = vmatpush1.bf16.msra.mxu0 0
    %670 = vmatprep.subr.bf16.mxu0 0
    %671 = vmatpush1.bf16.msra.mxu0 0
    %672 = vmatprep.subr.bf16.mxu0 0
    %673 = vmatpush1.bf16.msra.mxu0 0
    %674 = vmatprep.subr.bf16.mxu0 0
    %675 = vmatpush1.bf16.msra.mxu0 0
    %676 = vmatprep.subr.bf16.mxu0 0
    %677 = vmatpush1.bf16.msra.mxu0 0
    %678 = vmatprep.subr.bf16.mxu0 0
    %679 = vmatpush1.bf16.msra.mxu0 0
    %680 = vmatprep.subr.bf16.mxu0 0
    %681 = vmatpush1.bf16.msra.mxu0 0
    %682 = vmatprep.mubr.bf16.mxu0 0
    %683 = vmatmul.mubr.bf16.gmra.mrb[0].mxu0 %v644
    %v684 = vpop.f32.mrb[0].mxu0
    %v685 = vadd.f32 0.0, %v684
    %v686 = vpop.f32.mrb[0].mxu0
    %v687 = vpop.f32.mrb[0].mxu0
    %v688 = vadd.f32 0.0, %v687
    %v689 = vpop.f32.mrb[0].mxu0
    %690 = vdwg.mxu0
    %v691 = vpack.c.bf16 %v688, %v685
    %v692 = vpack.c.bf16 %v216, %v216
    %693 = vrot.lane.b32.xlu0 %v560, 120
    %v694 = vpop.permute.xlu0 %693
    %695 = vrot.lane.b32.xlu0 %v560, 88
    %v696 = vpop.permute.xlu0 %695
    %v698 = vsel %vm564, %v694, 0
    %v701 = vsel %vm564, %v696, 0
    %703 = vmatprep.subr.bf16.mxu0 0
    %704 = vmatpush1.bf16.xpose.msra.mxu0 %v701
    %705 = vmatprep.subr.bf16.mxu0 0
    %706 = vmatpush1.bf16.xpose.msra.mxu0 0
    %707 = vmatprep.subr.bf16.mxu0 0
    %708 = vmatpush1.bf16.xpose.msra.mxu0 0
    %709 = vmatprep.subr.bf16.mxu0 0
    %710 = vmatpush1.bf16.xpose.msra.mxu0 0
    %711 = vmatprep.subr.bf16.mxu0 0
    %712 = vmatpush1.bf16.xpose.msra.mxu0 0
    %713 = vmatprep.subr.bf16.mxu0 0
    %714 = vmatpush1.bf16.xpose.msra.mxu0 0
    %715 = vmatprep.subr.bf16.mxu0 0
    %716 = vmatpush1.bf16.xpose.msra.mxu0 0
    %717 = vmatprep.subr.bf16.mxu0 0
    %718 = vmatpush1.bf16.xpose.msra.mxu0 0
    %719 = vmatprep.subr.bf16.mxu0 0
    %720 = vmatpush1.bf16.xpose.msra.mxu0 0
    %721 = vmatprep.subr.bf16.mxu0 0
    %722 = vmatpush1.bf16.xpose.msra.mxu0 0
    %723 = vmatprep.subr.bf16.mxu0 0
    %724 = vmatpush1.bf16.xpose.msra.mxu0 0
    %725 = vmatprep.subr.bf16.mxu0 0
    %726 = vmatpush1.bf16.xpose.msra.mxu0 0
    %727 = vmatprep.subr.bf16.mxu0 0
    %728 = vmatpush1.bf16.xpose.msra.mxu0 0
    %729 = vmatprep.subr.bf16.mxu0 0
    %730 = vmatpush1.bf16.xpose.msra.mxu0 0
    %731 = vmatprep.subr.bf16.mxu0 0
    %732 = vmatpush1.bf16.xpose.msra.mxu0 0
    %733 = vmatprep.subr.bf16.mxu0 0
    %734 = vmatpush1.bf16.xpose.msra.mxu0 0
    %735 = vmatprep.mubr.bf16.mxu0 0
    %736 = vmatmul.mubr.bf16.gmra.mrb[0].mxu0 %v698
    %v737 = vpop.f32.mrb[0].mxu0
    %v738 = vadd.f32 0.0, %v737
    %v739 = vpop.f32.mrb[0].mxu0
    %v740 = vpop.f32.mrb[0].mxu0
    %v741 = vadd.f32 0.0, %v740
    %v742 = vpop.f32.mrb[0].mxu0
    %743 = vdwg.mxu0
    %v744 = vmul.f32 %v738, 0.35355338
    %v745 = vmul.f32 %v741, 0.35355338
    %v746 = vadd.f32 %v744, %v460
    %v747 = vadd.f32 %v745, %v461
    %v748 = vsel %vm616, %v746, -inf
    %749 = vmax.xlane.f32.xlu0 %v748
    %v750 = vpop.xlane.xlu0 %749
    %v751 = vsel %vm620, %v747, -inf
    %752 = vmax.xlane.f32.xlu0 %v751
    %v753 = vpop.xlane.xlu0 %752
    %v754 = vsub.f32 %v746, %v750
    %v755 = vsub.f32 %v747, %v753
    %v756 = vmul.f32 %v754, 1.442695
    %v757 = vpow.pop %v756
    %v758 = vmul.f32 %v755, 1.442695
    %v759 = vpow.pop %v758
    %v760 = vsel %vm616, %v757, 0.0
    %761 = vadd.xlane.f32.xlu0 %v760
    %v762 = vpop.xlane.xlu0 %761
    %v763 = vsel %vm620, %v759, 0.0
    %764 = vadd.xlane.f32.xlu0 %v763
    %v765 = vpop.xlane.xlu0 %764
    %v766 = vrcp.pop %v762
    %v767 = vrcp.pop %v765
    %v768 = vmul.f32 %v757, %v766
    %v769 = vmul.f32 %v759, %v767
    %v770 = vpack.c.bf16 %v769, %v768
    %771 = vrot.lane.b32.xlu0 %v560, 56
    %v772 = vpop.permute.xlu0 %771
    %v774 = vsel %vm616, %v770, 0
    %v777 = vsel %vm646, %v772, 0
    %779 = vmatprep.subr.bf16.mxu0 0
    %780 = vmatpush1.bf16.msra.mxu0 %v777
    %781 = vmatprep.subr.bf16.mxu0 0
    %782 = vmatpush1.bf16.msra.mxu0 0
    %783 = vmatprep.subr.bf16.mxu0 0
    %784 = vmatpush1.bf16.msra.mxu0 0
    %785 = vmatprep.subr.bf16.mxu0 0
    %786 = vmatpush1.bf16.msra.mxu0 0
    %787 = vmatprep.subr.bf16.mxu0 0
    %788 = vmatpush1.bf16.msra.mxu0 0
    %789 = vmatprep.subr.bf16.mxu0 0
    %790 = vmatpush1.bf16.msra.mxu0 0
    %791 = vmatprep.subr.bf16.mxu0 0
    %792 = vmatpush1.bf16.msra.mxu0 0
    %793 = vmatprep.subr.bf16.mxu0 0
    %794 = vmatpush1.bf16.msra.mxu0 0
    %795 = vmatprep.subr.bf16.mxu0 0
    %796 = vmatpush1.bf16.msra.mxu0 0
    %797 = vmatprep.subr.bf16.mxu0 0
    %798 = vmatpush1.bf16.msra.mxu0 0
    %799 = vmatprep.subr.bf16.mxu0 0
    %800 = vmatpush1.bf16.msra.mxu0 0
    %801 = vmatprep.subr.bf16.mxu0 0
    %802 = vmatpush1.bf16.msra.mxu0 0
    %803 = vmatprep.subr.bf16.mxu0 0
    %804 = vmatpush1.bf16.msra.mxu0 0
    %805 = vmatprep.subr.bf16.mxu0 0
    %806 = vmatpush1.bf16.msra.mxu0 0
    %807 = vmatprep.subr.bf16.mxu0 0
    %808 = vmatpush1.bf16.msra.mxu0 0
    %809 = vmatprep.subr.bf16.mxu0 0
    %810 = vmatpush1.bf16.msra.mxu0 0
    %811 = vmatprep.mubr.bf16.mxu0 0
    %812 = vmatmul.mubr.bf16.gmra.mrb[0].mxu0 %v774
    %v813 = vpop.f32.mrb[0].mxu0
    %v814 = vadd.f32 0.0, %v813
    %v815 = vpop.f32.mrb[0].mxu0
    %v816 = vpop.f32.mrb[0].mxu0
    %v817 = vadd.f32 0.0, %v816
    %v818 = vpop.f32.mrb[0].mxu0
    %819 = vdwg.mxu0
    %v820 = vpack.c.bf16 %v817, %v814
    %v821 = vpack.c.bf16 %v217, %v217
    %v823 = vsel %vm564, %v820, 0
    %vm825 = vcmask 1043456
    %v827 = vsel %vm825, %v821, 0
    %829 = vmatprep.subr.bf16.mxu0 0
    %830 = vmatpush1.bf16.msra.mxu0 %v827
    %831 = vmatprep.subr.bf16.mxu0 0
    %832 = vmatpush1.bf16.msra.mxu0 0
    %833 = vmatprep.subr.bf16.mxu0 0
    %834 = vmatpush1.bf16.msra.mxu0 0
    %835 = vmatprep.subr.bf16.mxu0 0
    %836 = vmatpush1.bf16.msra.mxu0 0
    %837 = vmatprep.subr.bf16.mxu0 0
    %838 = vmatpush1.bf16.msra.mxu0 0
    %839 = vmatprep.subr.bf16.mxu0 0
    %840 = vmatpush1.bf16.msra.mxu0 0
    %841 = vmatprep.subr.bf16.mxu0 0
    %842 = vmatpush1.bf16.msra.mxu0 0
    %843 = vmatprep.subr.bf16.mxu0 0
    %844 = vmatpush1.bf16.msra.mxu0 0
    %845 = vmatprep.subr.bf16.mxu0 0
    %846 = vmatpush1.bf16.msra.mxu0 0
    %847 = vmatprep.subr.bf16.mxu0 0
    %848 = vmatpush1.bf16.msra.mxu0 0
    %849 = vmatprep.subr.bf16.mxu0 0
    %850 = vmatpush1.bf16.msra.mxu0 0
    %851 = vmatprep.subr.bf16.mxu0 0
    %852 = vmatpush1.bf16.msra.mxu0 0
    %853 = vmatprep.subr.bf16.mxu0 0
    %854 = vmatpush1.bf16.msra.mxu0 0
    %855 = vmatprep.subr.bf16.mxu0 0
    %856 = vmatpush1.bf16.msra.mxu0 0
    %857 = vmatprep.subr.bf16.mxu0 0
    %858 = vmatpush1.bf16.msra.mxu0 0
    %859 = vmatprep.subr.bf16.mxu0 0
    %860 = vmatpush1.bf16.msra.mxu0 0
    %861 = vmatprep.mubr.bf16.mxu0 0
    %862 = vmatmul.mubr.bf16.gmra.mrb[0].mxu0 %v823
    %v863 = vpop.f32.mrb[0].mxu0
    %v864 = vadd.f32 0.0, %v863
    %v865 = vpop.f32.mrb[0].mxu0
    %v866 = vpop.f32.mrb[0].mxu0
    %v867 = vadd.f32 0.0, %v866
    %v868 = vpop.f32.mrb[0].mxu0
    %869 = vdwg.mxu0
    %v871 = vsel %vm564, %v691, 0
    %v874 = vsel %vm825, %v692, 0
    %876 = vmatprep.subr.bf16.mxu0 0
    %877 = vmatpush1.bf16.msra.mxu0 %v874
    %878 = vmatprep.subr.bf16.mxu0 0
    %879 = vmatpush1.bf16.msra.mxu0 0
    %880 = vmatprep.subr.bf16.mxu0 0
    %881 = vmatpush1.bf16.msra.mxu0 0
    %882 = vmatprep.subr.bf16.mxu0 0
    %883 = vmatpush1.bf16.msra.mxu0 0
    %884 = vmatprep.subr.bf16.mxu0 0
    %885 = vmatpush1.bf16.msra.mxu0 0
    %886 = vmatprep.subr.bf16.mxu0 0
    %887 = vmatpush1.bf16.msra.mxu0 0
    %888 = vmatprep.subr.bf16.mxu0 0
    %889 = vmatpush1.bf16.msra.mxu0 0
    %890 = vmatprep.subr.bf16.mxu0 0
    %891 = vmatpush1.bf16.msra.mxu0 0
    %892 = vmatprep.subr.bf16.mxu0 0
    %893 = vmatpush1.bf16.msra.mxu0 0
    %894 = vmatprep.subr.bf16.mxu0 0
    %895 = vmatpush1.bf16.msra.mxu0 0
    %896 = vmatprep.subr.bf16.mxu0 0
    %897 = vmatpush1.bf16.msra.mxu0 0
    %898 = vmatprep.subr.bf16.mxu0 0
    %899 = vmatpush1.bf16.msra.mxu0 0
    %900 = vmatprep.subr.bf16.mxu0 0
    %901 = vmatpush1.bf16.msra.mxu0 0
    %902 = vmatprep.subr.bf16.mxu0 0
    %903 = vmatpush1.bf16.msra.mxu0 0
    %904 = vmatprep.subr.bf16.mxu0 0
    %905 = vmatpush1.bf16.msra.mxu0 0
    %906 = vmatprep.subr.bf16.mxu0 0
    %907 = vmatpush1.bf16.msra.mxu0 0
    %908 = vmatprep.mubr.bf16.mxu0 0
    %909 = vmatmul.mubr.bf16.gmra.mrb[0].mxu0 %v871
    %v910 = vpop.f32.mrb[0].mxu0
    %v911 = vadd.f32 %v864, %v910
    %v912 = vpop.f32.mrb[0].mxu0
    %v913 = vpop.f32.mrb[0].mxu0
    %v914 = vadd.f32 %v867, %v913
    %v915 = vpop.f32.mrb[0].mxu0
    %916 = vdwg.mxu0
    %917 = vrot.lane.b32.xlu0 %v560, 112
    %v918 = vpop.permute.xlu0 %917
    %919 = vrot.lane.b32.xlu0 %v560, 80
    %v920 = vpop.permute.xlu0 %919
    %v922 = vsel %vm564, %v918, 0
    %v925 = vsel %vm564, %v920, 0
    %927 = vmatprep.subr.bf16.mxu0 0
    %928 = vmatpush1.bf16.xpose.msra.mxu0 %v925
    %929 = vmatprep.subr.bf16.mxu0 0
    %930 = vmatpush1.bf16.xpose.msra.mxu0 0
    %931 = vmatprep.subr.bf16.mxu0 0
    %932 = vmatpush1.bf16.xpose.msra.mxu0 0
    %933 = vmatprep.subr.bf16.mxu0 0
    %934 = vmatpush1.bf16.xpose.msra.mxu0 0
    %935 = vmatprep.subr.bf16.mxu0 0
    %936 = vmatpush1.bf16.xpose.msra.mxu0 0
    %937 = vmatprep.subr.bf16.mxu0 0
    %938 = vmatpush1.bf16.xpose.msra.mxu0 0
    %939 = vmatprep.subr.bf16.mxu0 0
    %940 = vmatpush1.bf16.xpose.msra.mxu0 0
    %941 = vmatprep.subr.bf16.mxu0 0
    %942 = vmatpush1.bf16.xpose.msra.mxu0 0
    %943 = vmatprep.subr.bf16.mxu0 0
    %944 = vmatpush1.bf16.xpose.msra.mxu0 0
    %945 = vmatprep.subr.bf16.mxu0 0
    %946 = vmatpush1.bf16.xpose.msra.mxu0 0
    %947 = vmatprep.subr.bf16.mxu0 0
    %948 = vmatpush1.bf16.xpose.msra.mxu0 0
    %949 = vmatprep.subr.bf16.mxu0 0
    %950 = vmatpush1.bf16.xpose.msra.mxu0 0
    %951 = vmatprep.subr.bf16.mxu0 0
    %952 = vmatpush1.bf16.xpose.msra.mxu0 0
    %953 = vmatprep.subr.bf16.mxu0 0
    %954 = vmatpush1.bf16.xpose.msra.mxu0 0
    %955 = vmatprep.subr.bf16.mxu0 0
    %956 = vmatpush1.bf16.xpose.msra.mxu0 0
    %957 = vmatprep.subr.bf16.mxu0 0
    %958 = vmatpush1.bf16.xpose.msra.mxu0 0
    %959 = vmatprep.mubr.bf16.mxu0 0
    %960 = vmatmul.mubr.bf16.gmra.mrb[0].mxu0 %v922
    %v961 = vpop.f32.mrb[0].mxu0
    %v962 = vadd.f32 0.0, %v961
    %v963 = vpop.f32.mrb[0].mxu0
    %v964 = vpop.f32.mrb[0].mxu0
    %v965 = vadd.f32 0.0, %v964
    %v966 = vpop.f32.mrb[0].mxu0
    %967 = vdwg.mxu0
    %v968 = vmul.f32 %v962, 0.35355338
    %v969 = vmul.f32 %v965, 0.35355338
    %v970 = vadd.f32 %v968, %v460
    %v971 = vadd.f32 %v969, %v461
    %v972 = vsel %vm616, %v970, -inf
    %973 = vmax.xlane.f32.xlu0 %v972
    %v974 = vpop.xlane.xlu0 %973
    %v975 = vsel %vm620, %v971, -inf
    %976 = vmax.xlane.f32.xlu0 %v975
    %v977 = vpop.xlane.xlu0 %976
    %v978 = vsub.f32 %v970, %v974
    %v979 = vsub.f32 %v971, %v977
    %v980 = vmul.f32 %v978, 1.442695
    %v981 = vpow.pop %v980
    %v982 = vmul.f32 %v979, 1.442695
    %v983 = vpow.pop %v982
    %v984 = vsel %vm616, %v981, 0.0
    %985 = vadd.xlane.f32.xlu0 %v984
    %v986 = vpop.xlane.xlu0 %985
    %v987 = vsel %vm620, %v983, 0.0
    %988 = vadd.xlane.f32.xlu0 %v987
    %v989 = vpop.xlane.xlu0 %988
    %v990 = vrcp.pop %v986
    %v991 = vrcp.pop %v989
    %v992 = vmul.f32 %v981, %v990
    %v993 = vmul.f32 %v983, %v991
    %v994 = vpack.c.bf16 %v993, %v992
    %995 = vrot.lane.b32.xlu0 %v560, 48
    %v996 = vpop.permute.xlu0 %995
    %v998 = vsel %vm616, %v994, 0
    %v1001 = vsel %vm646, %v996, 0
    %1003 = vmatprep.subr.bf16.mxu0 0
    %1004 = vmatpush1.bf16.msra.mxu0 %v1001
    %1005 = vmatprep.subr.bf16.mxu0 0
    %1006 = vmatpush1.bf16.msra.mxu0 0
    %1007 = vmatprep.subr.bf16.mxu0 0
    %1008 = vmatpush1.bf16.msra.mxu0 0
    %1009 = vmatprep.subr.bf16.mxu0 0
    %1010 = vmatpush1.bf16.msra.mxu0 0
    %1011 = vmatprep.subr.bf16.mxu0 0
    %1012 = vmatpush1.bf16.msra.mxu0 0
    %1013 = vmatprep.subr.bf16.mxu0 0
    %1014 = vmatpush1.bf16.msra.mxu0 0
    %1015 = vmatprep.subr.bf16.mxu0 0
    %1016 = vmatpush1.bf16.msra.mxu0 0
    %1017 = vmatprep.subr.bf16.mxu0 0
    %1018 = vmatpush1.bf16.msra.mxu0 0
    %1019 = vmatprep.subr.bf16.mxu0 0
    %1020 = vmatpush1.bf16.msra.mxu0 0
    %1021 = vmatprep.subr.bf16.mxu0 0
    %1022 = vmatpush1.bf16.msra.mxu0 0
    %1023 = vmatprep.subr.bf16.mxu0 0
    %1024 = vmatpush1.bf16.msra.mxu0 0
    %1025 = vmatprep.subr.bf16.mxu0 0
    %1026 = vmatpush1.bf16.msra.mxu0 0
    %1027 = vmatprep.subr.bf16.mxu0 0
    %1028 = vmatpush1.bf16.msra.mxu0 0
    %1029 = vmatprep.subr.bf16.mxu0 0
    %1030 = vmatpush1.bf16.msra.mxu0 0
    %1031 = vmatprep.subr.bf16.mxu0 0
    %1032 = vmatpush1.bf16.msra.mxu0 0
    %1033 = vmatprep.subr.bf16.mxu0 0
    %1034 = vmatpush1.bf16.msra.mxu0 0
    %1035 = vmatprep.mubr.bf16.mxu0 0
    %1036 = vmatmul.mubr.bf16.gmra.mrb[0].mxu0 %v998
    %v1037 = vpop.f32.mrb[0].mxu0
    %v1038 = vadd.f32 0.0, %v1037
    %v1039 = vpop.f32.mrb[0].mxu0
    %v1040 = vpop.f32.mrb[0].mxu0
    %v1041 = vadd.f32 0.0, %v1040
    %v1042 = vpop.f32.mrb[0].mxu0
    %1043 = vdwg.mxu0
    %v1044 = vpack.c.bf16 %v1041, %v1038
    %v1045 = vpack.c.bf16 %v218, %v218
    %v1047 = vsel %vm564, %v1044, 0
    %v1050 = vsel %vm825, %v1045, 0
    %1052 = vmatprep.subr.bf16.mxu0 0
    %1053 = vmatpush1.bf16.msra.mxu0 %v1050
    %1054 = vmatprep.subr.bf16.mxu0 0
    %1055 = vmatpush1.bf16.msra.mxu0 0
    %1056 = vmatprep.subr.bf16.mxu0 0
    %1057 = vmatpush1.bf16.msra.mxu0 0
    %1058 = vmatprep.subr.bf16.mxu0 0
    %1059 = vmatpush1.bf16.msra.mxu0 0
    %1060 = vmatprep.subr.bf16.mxu0 0
    %1061 = vmatpush1.bf16.msra.mxu0 0
    %1062 = vmatprep.subr.bf16.mxu0 0
    %1063 = vmatpush1.bf16.msra.mxu0 0
    %1064 = vmatprep.subr.bf16.mxu0 0
    %1065 = vmatpush1.bf16.msra.mxu0 0
    %1066 = vmatprep.subr.bf16.mxu0 0
    %1067 = vmatpush1.bf16.msra.mxu0 0
    %1068 = vmatprep.subr.bf16.mxu0 0
    %1069 = vmatpush1.bf16.msra.mxu0 0
    %1070 = vmatprep.subr.bf16.mxu0 0
    %1071 = vmatpush1.bf16.msra.mxu0 0
    %1072 = vmatprep.subr.bf16.mxu0 0
    %1073 = vmatpush1.bf16.msra.mxu0 0
    %1074 = vmatprep.subr.bf16.mxu0 0
    %1075 = vmatpush1.bf16.msra.mxu0 0
    %1076 = vmatprep.subr.bf16.mxu0 0
    %1077 = vmatpush1.bf16.msra.mxu0 0
    %1078 = vmatprep.subr.bf16.mxu0 0
    %1079 = vmatpush1.bf16.msra.mxu0 0
    %1080 = vmatprep.subr.bf16.mxu0 0
    %1081 = vmatpush1.bf16.msra.mxu0 0
    %1082 = vmatprep.subr.bf16.mxu0 0
    %1083 = vmatpush1.bf16.msra.mxu0 0
    %1084 = vmatprep.mubr.bf16.mxu0 0
    %1085 = vmatmul.mubr.bf16.gmra.mrb[0].mxu0 %v1047
    %v1086 = vpop.f32.mrb[0].mxu0
    %v1087 = vadd.f32 0.0, %v1086
    %v1088 = vpop.f32.mrb[0].mxu0
    %v1089 = vpop.f32.mrb[0].mxu0
    %v1090 = vadd.f32 0.0, %v1089
    %v1091 = vpop.f32.mrb[0].mxu0
    %1092 = vdwg.mxu0
    %v1093 = vadd.f32 %v911, %v1087
    %v1094 = vadd.f32 %v914, %v1090
    %1095 = vrot.lane.b32.xlu0 %v560, 104
    %v1096 = vpop.permute.xlu0 %1095
    %1097 = vrot.lane.b32.xlu0 %v560, 72
    %v1098 = vpop.permute.xlu0 %1097
    %v1100 = vsel %vm564, %v1096, 0
    %v1103 = vsel %vm564, %v1098, 0
    %1105 = vmatprep.subr.bf16.mxu0 0
    %1106 = vmatpush1.bf16.xpose.msra.mxu0 %v1103
    %1107 = vmatprep.subr.bf16.mxu0 0
    %1108 = vmatpush1.bf16.xpose.msra.mxu0 0
    %1109 = vmatprep.subr.bf16.mxu0 0
    %1110 = vmatpush1.bf16.xpose.msra.mxu0 0
    %1111 = vmatprep.subr.bf16.mxu0 0
    %1112 = vmatpush1.bf16.xpose.msra.mxu0 0
    %1113 = vmatprep.subr.bf16.mxu0 0
    %1114 = vmatpush1.bf16.xpose.msra.mxu0 0
    %1115 = vmatprep.subr.bf16.mxu0 0
    %1116 = vmatpush1.bf16.xpose.msra.mxu0 0
    %1117 = vmatprep.subr.bf16.mxu0 0
    %1118 = vmatpush1.bf16.xpose.msra.mxu0 0
    %1119 = vmatprep.subr.bf16.mxu0 0
    %1120 = vmatpush1.bf16.xpose.msra.mxu0 0
    %1121 = vmatprep.subr.bf16.mxu0 0
    %1122 = vmatpush1.bf16.xpose.msra.mxu0 0
    %1123 = vmatprep.subr.bf16.mxu0 0
    %1124 = vmatpush1.bf16.xpose.msra.mxu0 0
    %1125 = vmatprep.subr.bf16.mxu0 0
    %1126 = vmatpush1.bf16.xpose.msra.mxu0 0
    %1127 = vmatprep.subr.bf16.mxu0 0
    %1128 = vmatpush1.bf16.xpose.msra.mxu0 0
    %1129 = vmatprep.subr.bf16.mxu0 0
    %1130 = vmatpush1.bf16.xpose.msra.mxu0 0
    %1131 = vmatprep.subr.bf16.mxu0 0
    %1132 = vmatpush1.bf16.xpose.msra.mxu0 0
    %1133 = vmatprep.subr.bf16.mxu0 0
    %1134 = vmatpush1.bf16.xpose.msra.mxu0 0
    %1135 = vmatprep.subr.bf16.mxu0 0
    %1136 = vmatpush1.bf16.xpose.msra.mxu0 0
    %1137 = vmatprep.mubr.bf16.mxu0 0
    %1138 = vmatmul.mubr.bf16.gmra.mrb[0].mxu0 %v1100
    %v1139 = vpop.f32.mrb[0].mxu0
    %v1140 = vadd.f32 0.0, %v1139
    %v1141 = vpop.f32.mrb[0].mxu0
    %v1142 = vpop.f32.mrb[0].mxu0
    %v1143 = vadd.f32 0.0, %v1142
    %v1144 = vpop.f32.mrb[0].mxu0
    %1145 = vdwg.mxu0
    %v1146 = vmul.f32 %v1140, 0.35355338
    %v1147 = vmul.f32 %v1143, 0.35355338
    %v1148 = vadd.f32 %v1146, %v460
    %v1149 = vadd.f32 %v1147, %v461
    %v1150 = vsel %vm616, %v1148, -inf
    %1151 = vmax.xlane.f32.xlu0 %v1150
    %v1152 = vpop.xlane.xlu0 %1151
    %v1153 = vsel %vm620, %v1149, -inf
    %1154 = vmax.xlane.f32.xlu0 %v1153
    %v1155 = vpop.xlane.xlu0 %1154
    %v1156 = vsub.f32 %v1148, %v1152
    %v1157 = vsub.f32 %v1149, %v1155
    %v1158 = vmul.f32 %v1156, 1.442695
    %v1159 = vpow.pop %v1158
    %v1160 = vmul.f32 %v1157, 1.442695
    %v1161 = vpow.pop %v1160
    %v1162 = vsel %vm616, %v1159, 0.0
    %1163 = vadd.xlane.f32.xlu0 %v1162
    %v1164 = vpop.xlane.xlu0 %1163
    %v1165 = vsel %vm620, %v1161, 0.0
    %1166 = vadd.xlane.f32.xlu0 %v1165
    %v1167 = vpop.xlane.xlu0 %1166
    %v1168 = vrcp.pop %v1164
    %v1169 = vrcp.pop %v1167
    %v1170 = vmul.f32 %v1159, %v1168
    %v1171 = vmul.f32 %v1161, %v1169
    %v1172 = vpack.c.bf16 %v1171, %v1170
    %1173 = vrot.lane.b32.xlu0 %v560, 40
    %v1174 = vpop.permute.xlu0 %1173
    %v1176 = vsel %vm616, %v1172, 0
    %v1179 = vsel %vm646, %v1174, 0
    %1181 = vmatprep.subr.bf16.mxu0 0
    %1182 = vmatpush1.bf16.msra.mxu0 %v1179
    %1183 = vmatprep.subr.bf16.mxu0 0
    %1184 = vmatpush1.bf16.msra.mxu0 0
    %1185 = vmatprep.subr.bf16.mxu0 0
    %1186 = vmatpush1.bf16.msra.mxu0 0
    %1187 = vmatprep.subr.bf16.mxu0 0
    %1188 = vmatpush1.bf16.msra.mxu0 0
    %1189 = vmatprep.subr.bf16.mxu0 0
    %1190 = vmatpush1.bf16.msra.mxu0 0
    %1191 = vmatprep.subr.bf16.mxu0 0
    %1192 = vmatpush1.bf16.msra.mxu0 0
    %1193 = vmatprep.subr.bf16.mxu0 0
    %1194 = vmatpush1.bf16.msra.mxu0 0
    %1195 = vmatprep.subr.bf16.mxu0 0
    %1196 = vmatpush1.bf16.msra.mxu0 0
    %1197 = vmatprep.subr.bf16.mxu0 0
    %1198 = vmatpush1.bf16.msra.mxu0 0
    %1199 = vmatprep.subr.bf16.mxu0 0
    %1200 = vmatpush1.bf16.msra.mxu0 0
    %1201 = vmatprep.subr.bf16.mxu0 0
    %1202 = vmatpush1.bf16.msra.mxu0 0
    %1203 = vmatprep.subr.bf16.mxu0 0
    %1204 = vmatpush1.bf16.msra.mxu0 0
    %1205 = vmatprep.subr.bf16.mxu0 0
    %1206 = vmatpush1.bf16.msra.mxu0 0
    %1207 = vmatprep.subr.bf16.mxu0 0
    %1208 = vmatpush1.bf16.msra.mxu0 0
    %1209 = vmatprep.subr.bf16.mxu0 0
    %1210 = vmatpush1.bf16.msra.mxu0 0
    %1211 = vmatprep.subr.bf16.mxu0 0
    %1212 = vmatpush1.bf16.msra.mxu0 0
    %1213 = vmatprep.mubr.bf16.mxu0 0
    %1214 = vmatmul.mubr.bf16.gmra.mrb[0].mxu0 %v1176
    %v1215 = vpop.f32.mrb[0].mxu0
    %v1216 = vadd.f32 0.0, %v1215
    %v1217 = vpop.f32.mrb[0].mxu0
    %v1218 = vpop.f32.mrb[0].mxu0
    %v1219 = vadd.f32 0.0, %v1218
    %v1220 = vpop.f32.mrb[0].mxu0
    %1221 = vdwg.mxu0
    %v1222 = vpack.c.bf16 %v1219, %v1216
    %v1223 = vpack.c.bf16 %v219, %v219
    %v1225 = vsel %vm564, %v1222, 0
    %v1228 = vsel %vm825, %v1223, 0
    %1230 = vmatprep.subr.bf16.mxu0 0
    %1231 = vmatpush1.bf16.msra.mxu0 %v1228
    %1232 = vmatprep.subr.bf16.mxu0 0
    %1233 = vmatpush1.bf16.msra.mxu0 0
    %1234 = vmatprep.subr.bf16.mxu0 0
    %1235 = vmatpush1.bf16.msra.mxu0 0
    %1236 = vmatprep.subr.bf16.mxu0 0
    %1237 = vmatpush1.bf16.msra.mxu0 0
    %1238 = vmatprep.subr.bf16.mxu0 0
    %1239 = vmatpush1.bf16.msra.mxu0 0
    %1240 = vmatprep.subr.bf16.mxu0 0
    %1241 = vmatpush1.bf16.msra.mxu0 0
    %1242 = vmatprep.subr.bf16.mxu0 0
    %1243 = vmatpush1.bf16.msra.mxu0 0
    %1244 = vmatprep.subr.bf16.mxu0 0
    %1245 = vmatpush1.bf16.msra.mxu0 0
    %1246 = vmatprep.subr.bf16.mxu0 0
    %1247 = vmatpush1.bf16.msra.mxu0 0
    %1248 = vmatprep.subr.bf16.mxu0 0
    %1249 = vmatpush1.bf16.msra.mxu0 0
    %1250 = vmatprep.subr.bf16.mxu0 0
    %1251 = vmatpush1.bf16.msra.mxu0 0
    %1252 = vmatprep.subr.bf16.mxu0 0
    %1253 = vmatpush1.bf16.msra.mxu0 0
    %1254 = vmatprep.subr.bf16.mxu0 0
    %1255 = vmatpush1.bf16.msra.mxu0 0
    %1256 = vmatprep.subr.bf16.mxu0 0
    %1257 = vmatpush1.bf16.msra.mxu0 0
    %1258 = vmatprep.subr.bf16.mxu0 0
    %1259 = vmatpush1.bf16.msra.mxu0 0
    %1260 = vmatprep.subr.bf16.mxu0 0
    %1261 = vmatpush1.bf16.msra.mxu0 0
    %1262 = vmatprep.mubr.bf16.mxu0 0
    %1263 = vmatmul.mubr.bf16.gmra.mrb[0].mxu0 %v1225
    %v1264 = vpop.f32.mrb[0].mxu0
    %v1265 = vadd.f32 0.0, %v1264
    %v1266 = vpop.f32.mrb[0].mxu0
    %v1267 = vpop.f32.mrb[0].mxu0
    %v1268 = vadd.f32 0.0, %v1267
    %v1269 = vpop.f32.mrb[0].mxu0
    %1270 = vdwg.mxu0
    %v1271 = vadd.f32 %v1093, %v1265
    %v1272 = vadd.f32 %v1094, %v1268
    %v1273 = vadd.f32 %v413, %v1271
    %v1274 = vadd.f32 %v414, %v1272
    %v1276 = vlaneseq
    %v1277 = vshrl.u32 %v1276, 7
    %v1278 = vsub.s32 0, %v1277
    %v1279 = vrot.slane %v220, %v1278
    %v1281 = vadd.f32 %v1273, %v1279
    %v1282 = vadd.f32 %v1274, %v1279
    %v1283 = vsel %vm462, %v1281, 0.0
    %1284 = vadd.xlane.f32.xlu0 %v1283
    %v1285 = vpop.xlane.xlu0 %1284
    %v1286 = vsel %vm466, %v1282, 0.0
    %1287 = vadd.xlane.f32.xlu0 %v1286
    %v1288 = vpop.xlane.xlu0 %1287
    %v1289 = vmul.f32 %v1285, %v470
    %v1290 = vmul.f32 %v1288, %v470
    %v1291 = vsub.f32 %v1281, %v1289
    %v1292 = vsub.f32 %v1282, %v1290
    %v1293 = vmul.f32 %v1291, %v1291
    %v1294 = vmul.f32 %v1292, %v1292
    %v1295 = vsel %vm462, %v1293, 0.0
    %1296 = vadd.xlane.f32.xlu0 %v1295
    %v1297 = vpop.xlane.xlu0 %1296
    %v1298 = vsel %vm466, %v1294, 0.0
    %1299 = vadd.xlane.f32.xlu0 %v1298
    %v1300 = vpop.xlane.xlu0 %1299
    %v1301 = vmul.f32 %v1297, %v470
    %v1302 = vmul.f32 %v1300, %v470
    %v1303 = vadd.f32 %v1301, 1e-05
    %v1304 = vadd.f32 %v1302, 1e-05
    %v1305 = vrsqrt.pop %v1303
    %v1306 = vrsqrt.pop %v1304
    %v1307 = vmul.f32 %v1291, %v1305
    %v1308 = vmul.f32 %v1292, %v1306
    %v1310 = vlaneseq
    %v1311 = vshrl.u32 %v1310, 7
    %v1312 = vsub.s32 0, %v1311
    %v1313 = vrot.slane %v221, %v1312
    %v1315 = vmul.f32 %v1307, %v1313
    %v1316 = vmul.f32 %v1308, %v1313
    %v1318 = vlaneseq
    %v1319 = vshrl.u32 %v1318, 7
    %v1320 = vsub.s32 0, %v1319
    %v1321 = vrot.slane %v222, %v1320
    %v1323 = vadd.f32 %v1315, %v1321
    %v1324 = vadd.f32 %v1316, %v1321
    %v1325 = vpack.c.bf16 %v1324, %v1323
    %v1326 = vpack.c.bf16 %v224, %v223
    %v1327 = vpack.c.bf16 %v226, %v225
    %v1329 = vlaneseq
    %v1330 = vshrl.u32 %v1329, 7
    %v1331 = vsub.s32 0, %v1330
    %v1332 = vrot.slane %v227, %v1331
    %v1335 = vsel %vm462, %v1325, 0
    %1337 = vmatprep.subr.bf16.mxu0 0
    %1338 = vmatpush1.bf16.msra.mxu0 %v1326
    %1339 = vmatprep.subr.bf16.mxu0 0
    %1340 = vmatpush1.bf16.msra.mxu0 %v1327
    %1341 = vmatprep.subr.bf16.mxu0 0
    %1342 = vmatpush1.bf16.msra.mxu0 0
    %1343 = vmatprep.subr.bf16.mxu0 0
    %1344 = vmatpush1.bf16.msra.mxu0 0
    %1345 = vmatprep.subr.bf16.mxu0 0
    %1346 = vmatpush1.bf16.msra.mxu0 0
    %1347 = vmatprep.subr.bf16.mxu0 0
    %1348 = vmatpush1.bf16.msra.mxu0 0
    %1349 = vmatprep.subr.bf16.mxu0 0
    %1350 = vmatpush1.bf16.msra.mxu0 0
    %1351 = vmatprep.subr.bf16.mxu0 0
    %1352 = vmatpush1.bf16.msra.mxu0 0
    %1353 = vmatprep.subr.bf16.mxu0 0
    %1354 = vmatpush1.bf16.msra.mxu0 0
    %1355 = vmatprep.subr.bf16.mxu0 0
    %1356 = vmatpush1.bf16.msra.mxu0 0
    %1357 = vmatprep.subr.bf16.mxu0 0
    %1358 = vmatpush1.bf16.msra.mxu0 0
    %1359 = vmatprep.subr.bf16.mxu0 0
    %1360 = vmatpush1.bf16.msra.mxu0 0
    %1361 = vmatprep.subr.bf16.mxu0 0
    %1362 = vmatpush1.bf16.msra.mxu0 0
    %1363 = vmatprep.subr.bf16.mxu0 0
    %1364 = vmatpush1.bf16.msra.mxu0 0
    %1365 = vmatprep.subr.bf16.mxu0 0
    %1366 = vmatpush1.bf16.msra.mxu0 0
    %1367 = vmatprep.subr.bf16.mxu0 0
    %1368 = vmatpush1.bf16.msra.mxu0 0
    %1369 = vmatprep.mubr.bf16.mxu0 0
    %1370 = vmatmul.mubr.bf16.gmra.mrb[0].mxu0 %v1335
    %v1371 = vpop.f32.mrb[0].mxu0
    %v1372 = vadd.f32 %v1332, %v1371
    %v1373 = vpop.f32.mrb[0].mxu0
    %v1374 = vpop.f32.mrb[0].mxu0
    %v1375 = vadd.f32 %v1332, %v1374
    %v1376 = vpop.f32.mrb[0].mxu0
    %1377 = vdwg.mxu0
    %v1378 = vmul.f32 %v1372, %v1372
    %v1379 = vmul.f32 %v1375, %v1375
    %v1380 = vmul.f32 %v1372, %v1378
    %v1381 = vmul.f32 %v1375, %v1379
    %v1382 = vmul.f32 %v1380, 0.044715
    %v1383 = vmul.f32 %v1381, 0.044715
    %v1384 = vadd.f32 %v1372, %v1382
    %v1385 = vadd.f32 %v1375, %v1383
    %v1386 = vmul.f32 %v1384, 0.7978846
    %v1387 = vmul.f32 %v1385, 0.7978846
    %v1388 = vtanh.pop %v1386
    %v1389 = vtanh.pop %v1387
    %v1390 = vadd.f32 %v1388, 1.0
    %v1391 = vadd.f32 %v1389, 1.0
    %v1392 = vmul.f32 %v1390, 0.5
    %v1393 = vmul.f32 %v1391, 0.5
    %v1394 = vmul.f32 %v1372, %v1392
    %v1395 = vmul.f32 %v1375, %v1393
    %v1396 = vpack.c.bf16 %v1395, %v1394
    %v1397 = vpack.c.bf16 %v229, %v228
    %v1398 = vpack.c.bf16 %v231, %v230
    %v1399 = vpack.c.bf16 %v233, %v232
    %v1400 = vpack.c.bf16 %v235, %v234
    %v1401 = vpack.c.bf16 %v237, %v236
    %v1402 = vpack.c.bf16 %v239, %v238
    %v1403 = vpack.c.bf16 %v241, %v240
    %v1404 = vpack.c.bf16 %v243, %v242
    %1405 = vmatprep.subr.bf16.mxu0 0
    %1406 = vmatpush1.bf16.msra.mxu0 %v1397
    %1407 = vmatprep.subr.bf16.mxu0 0
    %1408 = vmatpush1.bf16.msra.mxu0 %v1398
    %1409 = vmatprep.subr.bf16.mxu0 0
    %1410 = vmatpush1.bf16.msra.mxu0 %v1399
    %1411 = vmatprep.subr.bf16.mxu0 0
    %1412 = vmatpush1.bf16.msra.mxu0 %v1400
    %1413 = vmatprep.subr.bf16.mxu0 0
    %1414 = vmatpush1.bf16.msra.mxu0 %v1401
    %1415 = vmatprep.subr.bf16.mxu0 0
    %1416 = vmatpush1.bf16.msra.mxu0 %v1402
    %1417 = vmatprep.subr.bf16.mxu0 0
    %1418 = vmatpush1.bf16.msra.mxu0 %v1403
    %1419 = vmatprep.subr.bf16.mxu0 0
    %1420 = vmatpush1.bf16.msra.mxu0 %v1404
    %1421 = vmatprep.subr.bf16.mxu0 0
    %1422 = vmatpush1.bf16.msra.mxu0 0
    %1423 = vmatprep.subr.bf16.mxu0 0
    %1424 = vmatpush1.bf16.msra.mxu0 0
    %1425 = vmatprep.subr.bf16.mxu0 0
    %1426 = vmatpush1.bf16.msra.mxu0 0
    %1427 = vmatprep.subr.bf16.mxu0 0
    %1428 = vmatpush1.bf16.msra.mxu0 0
    %1429 = vmatprep.subr.bf16.mxu0 0
    %1430 = vmatpush1.bf16.msra.mxu0 0
    %1431 = vmatprep.subr.bf16.mxu0 0
    %1432 = vmatpush1.bf16.msra.mxu0 0
    %1433 = vmatprep.subr.bf16.mxu0 0
    %1434 = vmatpush1.bf16.msra.mxu0 0
    %1435 = vmatprep.subr.bf16.mxu0 0
    %1436 = vmatpush1.bf16.msra.mxu0 0
    %1437 = vmatprep.mubr.bf16.mxu0 0
    %1438 = vmatmul.mubr.bf16.gmra.mrb[0].mxu0 %v1396
    %v1439 = vpop.f32.mrb[0].mxu0
    %v1440 = vadd.f32 0.0, %v1439
    %v1441 = vpop.f32.mrb[0].mxu0
    %v1442 = vpop.f32.mrb[0].mxu0
    %v1443 = vadd.f32 0.0, %v1442
    %v1444 = vpop.f32.mrb[0].mxu0
    %1445 = vdwg.mxu0
    %v1446 = vadd.f32 %v1281, %v1440
    %v1447 = vadd.f32 %v1282, %v1443
    %v1449 = vlaneseq
    %v1450 = vshrl.u32 %v1449, 7
    %v1451 = vsub.s32 0, %v1450
    %v1452 = vrot.slane %v244, %v1451
    %v1454 = vadd.f32 %v1446, %v1452
    %v1455 = vadd.f32 %v1447, %v1452
    %v1456 = vsel %vm462, %v1454, 0.0
    %1457 = vadd.xlane.f32.xlu0 %v1456
    %v1458 = vpop.xlane.xlu0 %1457
    %v1459 = vsel %vm466, %v1455, 0.0
    %1460 = vadd.xlane.f32.xlu0 %v1459
    %v1461 = vpop.xlane.xlu0 %1460
    %v1462 = vmul.f32 %v1458, %v470
    %v1463 = vmul.f32 %v1461, %v470
    %v1464 = vsub.f32 %v1454, %v1462
    %v1465 = vsub.f32 %v1455, %v1463
    %v1466 = vmul.f32 %v1464, %v1464
    %v1467 = vmul.f32 %v1465, %v1465
    %v1468 = vsel %vm462, %v1466, 0.0
    %1469 = vadd.xlane.f32.xlu0 %v1468
    %v1470 = vpop.xlane.xlu0 %1469
    %v1471 = vsel %vm466, %v1467, 0.0
    %1472 = vadd.xlane.f32.xlu0 %v1471
    %v1473 = vpop.xlane.xlu0 %1472
    %v1474 = vmul.f32 %v1470, %v470
    %v1475 = vmul.f32 %v1473, %v470
    %v1476 = vadd.f32 %v1474, 1e-05
    %v1477 = vadd.f32 %v1475, 1e-05
    %v1478 = vrsqrt.pop %v1476
    %v1479 = vrsqrt.pop %v1477
    %v1480 = vmul.f32 %v1464, %v1478
    %v1481 = vmul.f32 %v1465, %v1479
    %v1483 = vlaneseq
    %v1484 = vshrl.u32 %v1483, 7
    %v1485 = vsub.s32 0, %v1484
    %v1486 = vrot.slane %v245, %v1485
    %v1488 = vmul.f32 %v1480, %v1486
    %v1489 = vmul.f32 %v1481, %v1486
    %v1491 = vlaneseq
    %v1492 = vshrl.u32 %v1491, 7
    %v1493 = vsub.s32 0, %v1492
    %v1494 = vrot.slane %v246, %v1493
    %v1496 = vadd.f32 %v1488, %v1494
    %v1497 = vadd.f32 %v1489, %v1494
    %v1498 = vld [vmem:[%s7] sm:$0x3]
    %v1499 = vpack.c.bf16 %v1498, %v1498
    %v1500 = vpack.c.bf16 %v1497, %v1496
    %v1502 = vsel %vm616, %v1499, 0
    %v1505 = vsel %vm646, %v1500, 0
    %1507 = vmatprep.subr.bf16.mxu0 0
    %1508 = vmatpush1.bf16.msra.mxu0 %v1505
    %1509 = vmatprep.subr.bf16.mxu0 0
    %1510 = vmatpush1.bf16.msra.mxu0 0
    %1511 = vmatprep.subr.bf16.mxu0 0
    %1512 = vmatpush1.bf16.msra.mxu0 0
    %1513 = vmatprep.subr.bf16.mxu0 0
    %1514 = vmatpush1.bf16.msra.mxu0 0
    %1515 = vmatprep.subr.bf16.mxu0 0
    %1516 = vmatpush1.bf16.msra.mxu0 0
    %1517 = vmatprep.subr.bf16.mxu0 0
    %1518 = vmatpush1.bf16.msra.mxu0 0
    %1519 = vmatprep.subr.bf16.mxu0 0
    %1520 = vmatpush1.bf16.msra.mxu0 0
    %1521 = vmatprep.subr.bf16.mxu0 0
    %1522 = vmatpush1.bf16.msra.mxu0 0
    %1523 = vmatprep.subr.bf16.mxu0 0
    %1524 = vmatpush1.bf16.msra.mxu0 0
    %1525 = vmatprep.subr.bf16.mxu0 0
    %1526 = vmatpush1.bf16.msra.mxu0 0
    %1527 = vmatprep.subr.bf16.mxu0 0
    %1528 = vmatpush1.bf16.msra.mxu0 0
    %1529 = vmatprep.subr.bf16.mxu0 0
    %1530 = vmatpush1.bf16.msra.mxu0 0
    %1531 = vmatprep.subr.bf16.mxu0 0
    %1532 = vmatpush1.bf16.msra.mxu0 0
    %1533 = vmatprep.subr.bf16.mxu0 0
    %1534 = vmatpush1.bf16.msra.mxu0 0
    %1535 = vmatprep.subr.bf16.mxu0 0
    %1536 = vmatpush1.bf16.msra.mxu0 0
    %1537 = vmatprep.subr.bf16.mxu0 0
    %1538 = vmatpush1.bf16.msra.mxu0 0
    %1539 = vmatprep.mubr.bf16.mxu0 0
    %1540 = vmatmul.mubr.bf16.gmra.mrb[0].mxu0 %v1502
    %v1541 = vpop.f32.mrb[0].mxu0
    %v1542 = vadd.f32 0.0, %v1541
    %v1543 = vpop.f32.mrb[0].mxu0
    %v1544 = vpop.f32.mrb[0].mxu0
    %v1545 = vpop.f32.mrb[0].mxu0
    %1546 = vdwg.mxu0
    %v1547 = vpack.c.bf16 %v1542, %v1542
    %v1548 = vpack.c.bf16 %v248, %v247
    %v1549 = vpack.c.bf16 %v250, %v249
    %v1551 = vlaneseq
    %v1552 = vshrl.u32 %v1551, 7
    %v1553 = vsub.s32 0, %v1552
    %v1554 = vrot.slane %v251, %v1553
    %v1557 = vsel %vm462, %v1547, 0
    %1559 = vmatprep.subr.bf16.mxu0 0
    %1560 = vmatpush1.bf16.msra.mxu0 %v1548
    %1561 = vmatprep.subr.bf16.mxu0 0
    %1562 = vmatpush1.bf16.msra.mxu0 %v1549
    %1563 = vmatprep.subr.bf16.mxu0 0
    %1564 = vmatpush1.bf16.msra.mxu0 0
    %1565 = vmatprep.subr.bf16.mxu0 0
    %1566 = vmatpush1.bf16.msra.mxu0 0
    %1567 = vmatprep.subr.bf16.mxu0 0
    %1568 = vmatpush1.bf16.msra.mxu0 0
    %1569 = vmatprep.subr.bf16.mxu0 0
    %1570 = vmatpush1.bf16.msra.mxu0 0
    %1571 = vmatprep.subr.bf16.mxu0 0
    %1572 = vmatpush1.bf16.msra.mxu0 0
    %1573 = vmatprep.subr.bf16.mxu0 0
    %1574 = vmatpush1.bf16.msra.mxu0 0
    %1575 = vmatprep.subr.bf16.mxu0 0
    %1576 = vmatpush1.bf16.msra.mxu0 0
    %1577 = vmatprep.subr.bf16.mxu0 0
    %1578 = vmatpush1.bf16.msra.mxu0 0
    %1579 = vmatprep.subr.bf16.mxu0 0
    %1580 = vmatpush1.bf16.msra.mxu0 0
    %1581 = vmatprep.subr.bf16.mxu0 0
    %1582 = vmatpush1.bf16.msra.mxu0 0
    %1583 = vmatprep.subr.bf16.mxu0 0
    %1584 = vmatpush1.bf16.msra.mxu0 0
    %1585 = vmatprep.subr.bf16.mxu0 0
    %1586 = vmatpush1.bf16.msra.mxu0 0
    %1587 = vmatprep.subr.bf16.mxu0 0
    %1588 = vmatpush1.bf16.msra.mxu0 0
    %1589 = vmatprep.subr.bf16.mxu0 0
    %1590 = vmatpush1.bf16.msra.mxu0 0
    %1591 = vmatprep.mubr.bf16.mxu0 0
    %1592 = vmatmul.mubr.bf16.gmra.mrb[0].mxu0 %v1557
    %v1593 = vpop.f32.mrb[0].mxu0
    %v1594 = vadd.f32 %v1554, %v1593
    %v1595 = vpop.f32.mrb[0].mxu0
    %v1596 = vpop.f32.mrb[0].mxu0
    %v1597 = vpop.f32.mrb[0].mxu0
    %1598 = vdwg.mxu0
    %v1599 = vld [vmem:[%s9] sm:$0xff]
    %v1600 = vld [vmem:[%s9 + $0x8] sm:$0xff]
    %v1601 = vld [vmem:[%s9 + $0x10] sm:$0x3]
    %1602 = vset.pattern.permute.xlu0 0
    %1603 = vperm.xlu0 %1602, %v1599
    %v1604 = vpop.permute.xlu0 %1603
    %1605 = vset.pattern.permute.xlu0 0
    %1606 = vperm.xlu0 %1605, %v1600
    %v1607 = vpop.permute.xlu0 %1606
    %1608 = vset.pattern.permute.xlu0 0
    %1609 = vperm.xlu0 %1608, %v1601
    %v1610 = vpop.permute.xlu0 %1609
    %vm1611 = vcmp.eq.s32.totalorder %v419, %v1604
    %vm1612 = vcmp.eq.s32.totalorder %v419, %v1607
    %vm1613 = vcmp.eq.s32.totalorder %v419, %v1610
    %v1614 = vsel %vm1611, 1, 0
    %v1615 = vsel %vm1612, 1, 0
    %v1616 = vsel %vm1613, 1, 0
    %v1617 = vcvt.s32.f32 %v1614
    %v1618 = vcvt.s32.f32 %v1615
    %v1619 = vcvt.s32.f32 %v1616
    %v1620 = vpack.c.bf16 %v1618, %v1617
    %v1621 = vpack.c.bf16 %v1619, %v1619
    %v1622 = vpack.c.bf16 %v253, %v252
    %v1623 = vpack.c.bf16 %v255, %v254
    %v1624 = vpack.c.bf16 %v257, %v256
    %v1625 = vpack.c.bf16 %v259, %v258
    %v1626 = vpack.c.bf16 %v261, %v260
    %v1627 = vpack.c.bf16 %v263, %v262
    %v1628 = vpack.c.bf16 %v265, %v264
    %v1629 = vpack.c.bf16 %v267, %v266
    %1630 = vmatprep.subr.bf16.mxu0 0
    %1631 = vmatpush1.bf16.msra.mxu0 %v1622
    %1632 = vmatprep.subr.bf16.mxu0 0
    %1633 = vmatpush1.bf16.msra.mxu0 %v1623
    %1634 = vmatprep.subr.bf16.mxu0 0
    %1635 = vmatpush1.bf16.msra.mxu0 %v1624
    %1636 = vmatprep.subr.bf16.mxu0 0
    %1637 = vmatpush1.bf16.msra.mxu0 %v1625
    %1638 = vmatprep.subr.bf16.mxu0 0
    %1639 = vmatpush1.bf16.msra.mxu0 %v1626
    %1640 = vmatprep.subr.bf16.mxu0 0
    %1641 = vmatpush1.bf16.msra.mxu0 %v1627
    %1642 = vmatprep.subr.bf16.mxu0 0
    %1643 = vmatpush1.bf16.msra.mxu0 %v1628
    %1644 = vmatprep.subr.bf16.mxu0 0
    %1645 = vmatpush1.bf16.msra.mxu0 %v1629
    %1646 = vmatprep.subr.bf16.mxu0 0
    %1647 = vmatpush1.bf16.msra.mxu0 0
    %1648 = vmatprep.subr.bf16.mxu0 0
    %1649 = vmatpush1.bf16.msra.mxu0 0
    %1650 = vmatprep.subr.bf16.mxu0 0
    %1651 = vmatpush1.bf16.msra.mxu0 0
    %1652 = vmatprep.subr.bf16.mxu0 0
    %1653 = vmatpush1.bf16.msra.mxu0 0
    %1654 = vmatprep.subr.bf16.mxu0 0
    %1655 = vmatpush1.bf16.msra.mxu0 0
    %1656 = vmatprep.subr.bf16.mxu0 0
    %1657 = vmatpush1.bf16.msra.mxu0 0
    %1658 = vmatprep.subr.bf16.mxu0 0
    %1659 = vmatpush1.bf16.msra.mxu0 0
    %1660 = vmatprep.subr.bf16.mxu0 0
    %1661 = vmatpush1.bf16.msra.mxu0 0
    %1662 = vmatprep.mubr.bf16.mxu0 0
    %1663 = vmatmul.mubr.bf16.gmra.mrb[0].mxu0 %v1620
    %v1664 = vpop.f32.mrb[0].mxu0
    %v1665 = vadd.f32 0.0, %v1664
    %v1666 = vpop.f32.mrb[0].mxu0
    %v1667 = vpop.f32.mrb[0].mxu0
    %v1668 = vadd.f32 0.0, %v1667
    %v1669 = vpop.f32.mrb[0].mxu0
    %1670 = vmatprep.mubr.bf16.mxu0 0
    %1671 = vmatmul.mubr.bf16.gmra.mrb[0].mxu0 %v1621
    %v1672 = vpop.f32.mrb[0].mxu0
    %v1673 = vadd.f32 0.0, %v1672
    %v1674 = vpop.f32.mrb[0].mxu0
    %v1675 = vpop.f32.mrb[0].mxu0
    %v1676 = vpop.f32.mrb[0].mxu0
    %1677 = vdwg.mxu0
    %v1678 = vld [vmem:[%s11] sm:$0xff]
    %v1679 = vld [vmem:[%s11 + $0x8] sm:$0xff]
    %v1680 = vld [vmem:[%s11 + $0x10] sm:$0x3]
    %v1681 = vpack.c.bf16 %v1679, %v1678
    %v1682 = vpack.c.bf16 %v1680, %v1680
    %v1683 = vpack.c.bf16 %v1594, %v1594
    %vm1684 = vcmask 15360
    %v1686 = vsel %vm1684, %v1681, 0
    %v1689 = vsel %vm1684, %v1682, 0
    %vm1691 = vcmask 1040384
    %v1693 = vsel %vm1691, %v1683, 0
    %1695 = vmatprep.subr.bf16.mxu0 0
    %1696 = vmatpush1.bf16.msra.mxu0 %v1693
    %1697 = vmatprep.subr.bf16.mxu0 0
    %1698 = vmatpush1.bf16.msra.mxu0 0
    %1699 = vmatprep.subr.bf16.mxu0 0
    %1700 = vmatpush1.bf16.msra.mxu0 0
    %1701 = vmatprep.subr.bf16.mxu0 0
    %1702 = vmatpush1.bf16.msra.mxu0 0
    %1703 = vmatprep.subr.bf16.mxu0 0
    %1704 = vmatpush1.bf16.msra.mxu0 0
    %1705 = vmatprep.subr.bf16.mxu0 0
    %1706 = vmatpush1.bf16.msra.mxu0 0
    %1707 = vmatprep.subr.bf16.mxu0 0
    %1708 = vmatpush1.bf16.msra.mxu0 0
    %1709 = vmatprep.subr.bf16.mxu0 0
    %1710 = vmatpush1.bf16.msra.mxu0 0
    %1711 = vmatprep.subr.bf16.mxu0 0
    %1712 = vmatpush1.bf16.msra.mxu0 0
    %1713 = vmatprep.subr.bf16.mxu0 0
    %1714 = vmatpush1.bf16.msra.mxu0 0
    %1715 = vmatprep.subr.bf16.mxu0 0
    %1716 = vmatpush1.bf16.msra.mxu0 0
    %1717 = vmatprep.subr.bf16.mxu0 0
    %1718 = vmatpush1.bf16.msra.mxu0 0
    %1719 = vmatprep.subr.bf16.mxu0 0
    %1720 = vmatpush1.bf16.msra.mxu0 0
    %1721 = vmatprep.subr.bf16.mxu0 0
    %1722 = vmatpush1.bf16.msra.mxu0 0
    %1723 = vmatprep.subr.bf16.mxu0 0
    %1724 = vmatpush1.bf16.msra.mxu0 0
    %1725 = vmatprep.subr.bf16.mxu0 0
    %1726 = vmatpush1.bf16.msra.mxu0 0
    %1727 = vmatprep.mubr.bf16.mxu0 0
    %1728 = vmatmul.mubr.bf16.gmra.mrb[0].mxu0 %v1686
    %v1729 = vpop.f32.mrb[0].mxu0
    %v1730 = vadd.f32 %v1665, %v1729
    %v1731 = vpop.f32.mrb[0].mxu0
    %v1732 = vpop.f32.mrb[0].mxu0
    %v1733 = vadd.f32 %v1668, %v1732
    %v1734 = vpop.f32.mrb[0].mxu0
    %1735 = vmatprep.mubr.bf16.mxu0 0
    %1736 = vmatmul.mubr.bf16.gmra.mrb[0].mxu0 %v1689
    %v1737 = vpop.f32.mrb[0].mxu0
    %v1738 = vadd.f32 %v1673, %v1737
    %v1739 = vpop.f32.mrb[0].mxu0
    %v1740 = vpop.f32.mrb[0].mxu0
    %v1741 = vpop.f32.mrb[0].mxu0
    %1742 = vdwg.mxu0
    %v1743 = vld [vmem:[%s13] sm:$0xff]
    %v1744 = vld [vmem:[%s13 + $0x8] sm:$0xff]
    %v1745 = vld [vmem:[%s13 + $0x10] sm:$0x3]
    %v1746 = vadd.f32 %v1730, %v1743
    %v1747 = vadd.f32 %v1733, %v1744
    %v1748 = vadd.f32 %v1738, %v1745
    %v1749 = vld [vmem:[%s15] sm:$0x1]
    %v1750 = vadd.s32 %v416, 16
    %vm1751 = vcmp.ge.s32.totalorder %v1750, 0
    %vm1752 = vcmp.lt.s32.totalorder %v416, 9
    %vm1753 = vcmp.lt.s32.totalorder %v417, 9
    %vm1754 = vcmp.lt.s32.totalorder %v1750, 9
    %vm1755 = vmand %vm420, %vm1752
    %vm1756 = vmand %vm421, %vm1753
    %vm1757 = vmand %vm1751, %vm1754
    %v1758 = vsel %vm1755, 1, 0
    %v1759 = vsel %vm1756, 1, 0
    %v1760 = vsel %vm1757, 1, 0
    %v1761 = vcvt.s32.f32 %v1758
    %v1762 = vcvt.s32.f32 %v1759
    %v1763 = vcvt.s32.f32 %v1760
    %vm1764 = vcmp.lt.s32.totalorder %v419, 9
    %vm1765 = vmand %vm430, %vm1764
    %v1766 = vsel %vm1765, 1, 0
    %v1767 = vcvt.s32.f32 %v1766
    %v1768 = vmul.f32 %v1761, %v1767
    %v1769 = vmul.f32 %v1762, %v1767
    %v1770 = vmul.f32 %v1763, %v1767
    %v1771 = vadd.f32 %v1768, 0.0
    %v1772 = vadd.f32 %v1769, 0.0
    %v1773 = vadd.f32 %v1770, 0.0
    %vm1774 = vcmp.ge.s32.totalorder %v416, 9
    %vm1775 = vcmp.ge.s32.totalorder %v417, 9
    %vm1776 = vcmp.ge.s32.totalorder %v1750, 9
    %vm1777 = vcmp.lt.s32.totalorder %v416, 18
    %vm1778 = vcmp.lt.s32.totalorder %v417, 18
    %vm1779 = vcmp.lt.s32.totalorder %v1750, 18
    %vm1780 = vmand %vm1774, %vm1777
    %vm1781 = vmand %vm1775, %vm1778
    %vm1782 = vmand %vm1776, %vm1779
    %v1783 = vsel %vm1780, 1, 0
    %v1784 = vsel %vm1781, 1, 0
    %v1785 = vsel %vm1782, 1, 0
    %v1786 = vcvt.s32.f32 %v1783
    %v1787 = vcvt.s32.f32 %v1784
    %v1788 = vcvt.s32.f32 %v1785
    %vm1789 = vcmp.ge.s32.totalorder %v419, 9
    %vm1790 = vcmp.lt.s32.totalorder %v419, 18
    %vm1791 = vmand %vm1789, %vm1790
    %v1792 = vsel %vm1791, 1, 0
    %v1793 = vcvt.s32.f32 %v1792
    %v1794 = vmul.f32 %v1786, %v1793
    %v1795 = vmul.f32 %v1787, %v1793
    %v1796 = vmul.f32 %v1788, %v1793
    %v1797 = vadd.f32 %v1771, %v1794
    %v1798 = vadd.f32 %v1772, %v1795
    %v1799 = vadd.f32 %v1773, %v1796
    %vm1800 = vcmp.le.s32.totalorder %v419, %v416
    %vm1801 = vcmp.le.s32.totalorder %v419, %v417
    %vm1802 = vcmp.le.s32.totalorder %v419, %v1750
    %v1803 = vsel %vm1800, 1, 0
    %v1804 = vsel %vm1801, 1, 0
    %v1805 = vsel %vm1802, 1, 0
    %v1806 = vcvt.s32.f32 %v1803
    %v1807 = vcvt.s32.f32 %v1804
    %v1808 = vcvt.s32.f32 %v1805
    %v1809 = vmul.f32 %v1797, %v1806
    %v1810 = vmul.f32 %v1798, %v1807
    %v1811 = vmul.f32 %v1799, %v1808
    %v1813 = vlaneseq
    %v1814 = vshrl.u32 %v1813, 7
    %v1815 = vsub.s32 0, %v1814
    %v1816 = vrot.slane %v1749, %v1815
    %v1818 = vmul.f32 %v1809, %v1816
    %v1819 = vmul.f32 %v1810, %v1816
    %v1820 = vmul.f32 %v1811, %v1816
    %v1821 = vsub.f32 1.0, %v1818
    %v1822 = vsub.f32 1.0, %v1819
    %v1823 = vsub.f32 1.0, %v1820
    %v1824 = vmul.f32 %v1821, -1e+09
    %v1825 = vmul.f32 %v1822, -1e+09
    %v1826 = vmul.f32 %v1823, -1e+09
    %v1827 = vsel %vm462, %v1746, 0.0
    %1828 = vadd.xlane.f32.xlu0 %v1827
    %v1829 = vpop.xlane.xlu0 %1828
    %v1830 = vsel %vm462, %v1747, 0.0
    %1831 = vadd.xlane.f32.xlu0 %v1830
    %v1832 = vpop.xlane.xlu0 %1831
    %v1833 = vsel %vm466, %v1748, 0.0
    %1834 = vadd.xlane.f32.xlu0 %v1833
    %v1835 = vpop.xlane.xlu0 %1834
    %v1836 = vmul.f32 %v1829, %v470
    %v1837 = vmul.f32 %v1832, %v470
    %v1838 = vmul.f32 %v1835, %v470
    %v1839 = vsub.f32 %v1746, %v1836
    %v1840 = vsub.f32 %v1747, %v1837
    %v1841 = vsub.f32 %v1748, %v1838
    %v1842 = vmul.f32 %v1839, %v1839
    %v1843 = vmul.f32 %v1840, %v1840
    %v1844 = vmul.f32 %v1841, %v1841
    %v1845 = vsel %vm462, %v1842, 0.0
    %1846 = vadd.xlane.f32.xlu0 %v1845
    %v1847 = vpop.xlane.xlu0 %1846
    %v1848 = vsel %vm462, %v1843, 0.0
    %1849 = vadd.xlane.f32.xlu0 %v1848
    %v1850 = vpop.xlane.xlu0 %1849
    %v1851 = vsel %vm466, %v1844, 0.0
    %1852 = vadd.xlane.f32.xlu0 %v1851
    %v1853 = vpop.xlane.xlu0 %1852
    %v1854 = vmul.f32 %v1847, %v470
    %v1855 = vmul.f32 %v1850, %v470
    %v1856 = vmul.f32 %v1853, %v470
    %v1857 = vadd.f32 %v1854, 1e-05
    %v1858 = vadd.f32 %v1855, 1e-05
    %v1859 = vadd.f32 %v1856, 1e-05
    %v1860 = vrsqrt.pop %v1857
    %v1861 = vrsqrt.pop %v1858
    %v1862 = vrsqrt.pop %v1859
    %v1863 = vmul.f32 %v1839, %v1860
    %v1864 = vmul.f32 %v1840, %v1861
    %v1865 = vmul.f32 %v1841, %v1862
    %v1867 = vlaneseq
    %v1868 = vshrl.u32 %v1867, 7
    %v1869 = vsub.s32 0, %v1868
    %v1870 = vrot.slane %v268, %v1869
    %v1872 = vmul.f32 %v1863, %v1870
    %v1873 = vmul.f32 %v1864, %v1870
    %v1874 = vmul.f32 %v1865, %v1870
    %v1876 = vlaneseq
    %v1877 = vshrl.u32 %v1876, 7
    %v1878 = vsub.s32 0, %v1877
    %v1879 = vrot.slane %v269, %v1878
    %v1881 = vadd.f32 %v1872, %v1879
    %v1882 = vadd.f32 %v1873, %v1879
    %v1883 = vadd.f32 %v1874, %v1879
    %v1884 = vpack.c.bf16 %v1882, %v1881
    %v1885 = vpack.c.bf16 %v1883, %v1883
    %v1886 = vpack.c.bf16 %v271, %v270
    %v1887 = vpack.c.bf16 %v273, %v272
    %v1889 = vlaneseq
    %v1890 = vshrl.u32 %v1889, 7
    %v1891 = vsub.s32 0, %v1890
    %v1892 = vrot.slane %v274, %v1891
    %v1895 = vsel %vm462, %v1884, 0
    %v1898 = vsel %vm462, %v1885, 0
    %1900 = vmatprep.subr.bf16.mxu0 0
    %1901 = vmatpush1.bf16.msra.mxu0 %v1886
    %1902 = vmatprep.subr.bf16.mxu0 0
    %1903 = vmatpush1.bf16.msra.mxu0 %v1887
    %1904 = vmatprep.subr.bf16.mxu0 0
    %1905 = vmatpush1.bf16.msra.mxu0 0
    %1906 = vmatprep.subr.bf16.mxu0 0
    %1907 = vmatpush1.bf16.msra.mxu0 0
    %1908 = vmatprep.subr.bf16.mxu0 0
    %1909 = vmatpush1.bf16.msra.mxu0 0
    %1910 = vmatprep.subr.bf16.mxu0 0
    %1911 = vmatpush1.bf16.msra.mxu0 0
    %1912 = vmatprep.subr.bf16.mxu0 0
    %1913 = vmatpush1.bf16.msra.mxu0 0
    %1914 = vmatprep.subr.bf16.mxu0 0
    %1915 = vmatpush1.bf16.msra.mxu0 0
    %1916 = vmatprep.subr.bf16.mxu0 0
    %1917 = vmatpush1.bf16.msra.mxu0 0
    %1918 = vmatprep.subr.bf16.mxu0 0
    %1919 = vmatpush1.bf16.msra.mxu0 0
    %1920 = vmatprep.subr.bf16.mxu0 0
    %1921 = vmatpush1.bf16.msra.mxu0 0
    %1922 = vmatprep.subr.bf16.mxu0 0
    %1923 = vmatpush1.bf16.msra.mxu0 0
    %1924 = vmatprep.subr.bf16.mxu0 0
    %1925 = vmatpush1.bf16.msra.mxu0 0
    %1926 = vmatprep.subr.bf16.mxu0 0
    %1927 = vmatpush1.bf16.msra.mxu0 0
    %1928 = vmatprep.subr.bf16.mxu0 0
    %1929 = vmatpush1.bf16.msra.mxu0 0
    %1930 = vmatprep.subr.bf16.mxu0 0
    %1931 = vmatpush1.bf16.msra.mxu0 0
    %1932 = vmatprep.mubr.bf16.mxu0 0
    %1933 = vmatmul.mubr.bf16.gmra.mrb[0].mxu0 %v1895
    %v1934 = vpop.f32.mrb[0].mxu0
    %v1935 = vadd.f32 %v1892, %v1934
    %v1936 = vpop.f32.mrb[0].mxu0
    %v1937 = vpop.f32.mrb[0].mxu0
    %v1938 = vadd.f32 %v1892, %v1937
    %v1939 = vpop.f32.mrb[0].mxu0
    %1940 = vmatprep.mubr.bf16.mxu0 0
    %1941 = vmatmul.mubr.bf16.gmra.mrb[0].mxu0 %v1898
    %v1942 = vpop.f32.mrb[0].mxu0
    %v1943 = vadd.f32 %v1892, %v1942
    %v1944 = vpop.f32.mrb[0].mxu0
    %v1945 = vpop.f32.mrb[0].mxu0
    %v1946 = vpop.f32.mrb[0].mxu0
    %1947 = vdwg.mxu0
    %v1948 = vpack.c.bf16 %v1938, %v1935
    %v1949 = vpack.c.bf16 %v1943, %v1943
    %1952 = vrot.lane.b32.xlu0 %v1948, 96
    %v1953 = vpop.permute.xlu0 %1952
    %1954 = vrot.lane.b32.xlu0 %v1949, 96
    %v1955 = vpop.permute.xlu0 %1954
    %v1957 = vsel %vm564, %v1948, 0
    %v1960 = vsel %vm564, %v1949, 0
    %v1963 = vsel %vm564, %v1953, 0
    %v1966 = vsel %vm564, %v1955, 0
    %1968 = vmatprep.subr.bf16.mxu0 0
    %1969 = vmatpush1.bf16.xpose.msra.mxu0 %v1963
    %1970 = vmatprep.subr.bf16.mxu0 0
    %1971 = vmatpush1.bf16.xpose.msra.mxu0 %v1966
    %1972 = vmatprep.subr.bf16.mxu0 0
    %1973 = vmatpush1.bf16.xpose.msra.mxu0 0
    %1974 = vmatprep.subr.bf16.mxu0 0
    %1975 = vmatpush1.bf16.xpose.msra.mxu0 0
    %1976 = vmatprep.subr.bf16.mxu0 0
    %1977 = vmatpush1.bf16.xpose.msra.mxu0 0
    %1978 = vmatprep.subr.bf16.mxu0 0
    %1979 = vmatpush1.bf16.xpose.msra.mxu0 0
    %1980 = vmatprep.subr.bf16.mxu0 0
    %1981 = vmatpush1.bf16.xpose.msra.mxu0 0
    %1982 = vmatprep.subr.bf16.mxu0 0
    %1983 = vmatpush1.bf16.xpose.msra.mxu0 0
    %1984 = vmatprep.subr.bf16.mxu0 0
    %1985 = vmatpush1.bf16.xpose.msra.mxu0 0
    %1986 = vmatprep.subr.bf16.mxu0 0
    %1987 = vmatpush1.bf16.xpose.msra.mxu0 0
    %1988 = vmatprep.subr.bf16.mxu0 0
    %1989 = vmatpush1.bf16.xpose.msra.mxu0 0
    %1990 = vmatprep.subr.bf16.mxu0 0
    %1991 = vmatpush1.bf16.xpose.msra.mxu0 0
    %1992 = vmatprep.subr.bf16.mxu0 0
    %1993 = vmatpush1.bf16.xpose.msra.mxu0 0
    %1994 = vmatprep.subr.bf16.mxu0 0
    %1995 = vmatpush1.bf16.xpose.msra.mxu0 0
    %1996 = vmatprep.subr.bf16.mxu0 0
    %1997 = vmatpush1.bf16.xpose.msra.mxu0 0
    %1998 = vmatprep.subr.bf16.mxu0 0
    %1999 = vmatpush1.bf16.xpose.msra.mxu0 0
    %2000 = vmatprep.mubr.bf16.mxu0 0
    %2001 = vmatmul.mubr.bf16.gmra.mrb[0].mxu0 %v1957
    %v2002 = vpop.f32.mrb[0].mxu0
    %v2003 = vadd.f32 0.0, %v2002
    %v2004 = vpop.f32.mrb[0].mxu0
    %v2005 = vpop.f32.mrb[0].mxu0
    %v2006 = vadd.f32 0.0, %v2005
    %v2007 = vpop.f32.mrb[0].mxu0
    %2008 = vmatprep.mubr.bf16.mxu0 0
    %2009 = vmatmul.mubr.bf16.gmra.mrb[0].mxu0 %v1960
    %v2010 = vpop.f32.mrb[0].mxu0
    %v2011 = vadd.f32 0.0, %v2010
    %v2012 = vpop.f32.mrb[0].mxu0
    %v2013 = vpop.f32.mrb[0].mxu0
    %v2014 = vpop.f32.mrb[0].mxu0
    %2015 = vdwg.mxu0
    %v2016 = vmul.f32 %v2003, 0.35355338
    %v2017 = vmul.f32 %v2006, 0.35355338
    %v2018 = vmul.f32 %v2011, 0.35355338
    %v2019 = vadd.f32 %v2016, %v1824
    %v2020 = vadd.f32 %v2017, %v1825
    %v2021 = vadd.f32 %v2018, %v1826
    %vm2022 = vcmask 146432
    %v2023 = vsel %vm2022, %v2019, -inf
    %2024 = vmax.xlane.f32.xlu0 %v2023
    %v2025 = vpop.xlane.xlu0 %2024
    %v2026 = vsel %vm2022, %v2020, -inf
    %2027 = vmax.xlane.f32.xlu0 %v2026
    %v2028 = vpop.xlane.xlu0 %2027
    %vm2029 = vcmask 140288
    %v2030 = vsel %vm2029, %v2021, -inf
    %2031 = vmax.xlane.f32.xlu0 %v2030
    %v2032 = vpop.xlane.xlu0 %2031
    %v2033 = vsub.f32 %v2019, %v2025
    %v2034 = vsub.f32 %v2020, %v2028
    %v2035 = vsub.f32 %v2021, %v2032
    %v2036 = vmul.f32 %v2033, 1.442695
    %v2037 = vpow.pop %v2036
    %v2038 = vmul.f32 %v2034, 1.442695
    %v2039 = vpow.pop %v2038
    %v2040 = vmul.f32 %v2035, 1.442695
    %v2041 = vpow.pop %v2040
    %v2042 = vsel %vm2022, %v2037, 0.0
    %2043 = vadd.xlane.f32.xlu0 %v2042
    %v2044 = vpop.xlane.xlu0 %2043
    %v2045 = vsel %vm2022, %v2039, 0.0
    %2046 = vadd.xlane.f32.xlu0 %v2045
    %v2047 = vpop.xlane.xlu0 %2046
    %v2048 = vsel %vm2029, %v2041, 0.0
    %2049 = vadd.xlane.f32.xlu0 %v2048
    %v2050 = vpop.xlane.xlu0 %2049
    %v2051 = vrcp.pop %v2044
    %v2052 = vrcp.pop %v2047
    %v2053 = vrcp.pop %v2050
    %v2054 = vmul.f32 %v2037, %v2051
    %v2055 = vmul.f32 %v2039, %v2052
    %v2056 = vmul.f32 %v2041, %v2053
    %v2057 = vpack.c.bf16 %v2055, %v2054
    %v2058 = vpack.c.bf16 %v2056, %v2056
    %2059 = vrot.lane.b32.xlu0 %v1948, 64
    %v2060 = vpop.permute.xlu0 %2059
    %2061 = vrot.lane.b32.xlu0 %v1949, 64
    %v2062 = vpop.permute.xlu0 %2061
    %v2065 = vsel %vm2022, %v2057, 0
    %v2068 = vsel %vm2022, %v2058, 0
    %v2071 = vsel %vm1691, %v2062, 0
    %2073 = vmatprep.subr.bf16.mxu0 0
    %2074 = vmatpush1.bf16.msra.mxu0 %v2060
    %2075 = vmatprep.subr.bf16.mxu0 0
    %2076 = vmatpush1.bf16.msra.mxu0 %v2071
    %2077 = vmatprep.subr.bf16.mxu0 0
    %2078 = vmatpush1.bf16.msra.mxu0 0
    %2079 = vmatprep.subr.bf16.mxu0 0
    %2080 = vmatpush1.bf16.msra.mxu0 0
    %2081 = vmatprep.subr.bf16.mxu0 0
    %2082 = vmatpush1.bf16.msra.mxu0 0
    %2083 = vmatprep.subr.bf16.mxu0 0
    %2084 = vmatpush1.bf16.msra.mxu0 0
    %2085 = vmatprep.subr.bf16.mxu0 0
    %2086 = vmatpush1.bf16.msra.mxu0 0
    %2087 = vmatprep.subr.bf16.mxu0 0
    %2088 = vmatpush1.bf16.msra.mxu0 0
    %2089 = vmatprep.subr.bf16.mxu0 0
    %2090 = vmatpush1.bf16.msra.mxu0 0
    %2091 = vmatprep.subr.bf16.mxu0 0
    %2092 = vmatpush1.bf16.msra.mxu0 0
    %2093 = vmatprep.subr.bf16.mxu0 0
    %2094 = vmatpush1.bf16.msra.mxu0 0
    %2095 = vmatprep.subr.bf16.mxu0 0
    %2096 = vmatpush1.bf16.msra.mxu0 0
    %2097 = vmatprep.subr.bf16.mxu0 0
    %2098 = vmatpush1.bf16.msra.mxu0 0
    %2099 = vmatprep.subr.bf16.mxu0 0
    %2100 = vmatpush1.bf16.msra.mxu0 0
    %2101 = vmatprep.subr.bf16.mxu0 0
    %2102 = vmatpush1.bf16.msra.mxu0 0
    %2103 = vmatprep.subr.bf16.mxu0 0
    %2104 = vmatpush1.bf16.msra.mxu0 0
    %2105 = vmatprep.mubr.bf16.mxu0 0
    %2106 = vmatmul.mubr.bf16.gmra.mrb[0].mxu0 %v2065
    %v2107 = vpop.f32.mrb[0].mxu0
    %v2108 = vadd.f32 0.0, %v2107
    %v2109 = vpop.f32.mrb[0].mxu0
    %v2110 = vpop.f32.mrb[0].mxu0
    %v2111 = vadd.f32 0.0, %v2110
    %v2112 = vpop.f32.mrb[0].mxu0
    %2113 = vmatprep.mubr.bf16.mxu0 0
    %2114 = vmatmul.mubr.bf16.gmra.mrb[0].mxu0 %v2068
    %v2115 = vpop.f32.mrb[0].mxu0
    %v2116 = vadd.f32 0.0, %v2115
    %v2117 = vpop.f32.mrb[0].mxu0
    %v2118 = vpop.f32.mrb[0].mxu0
    %v2119 = vpop.f32.mrb[0].mxu0
    %2120 = vdwg.mxu0
    %v2121 = vpack.c.bf16 %v2111, %v2108
    %v2122 = vpack.c.bf16 %v2116, %v2116
    %v2123 = vpack.c.bf16 %v275, %v275
    %2124 = vrot.lane.b32.xlu0 %v1948, 120
    %v2125 = vpop.permute.xlu0 %2124
    %2126 = vrot.lane.b32.xlu0 %v1949, 120
    %v2127 = vpop.permute.xlu0 %2126
    %2128 = vrot.lane.b32.xlu0 %v1948, 88
    %v2129 = vpop.permute.xlu0 %2128
    %2130 = vrot.lane.b32.xlu0 %v1949, 88
    %v2131 = vpop.permute.xlu0 %2130
    %v2133 = vsel %vm564, %v2125, 0
    %v2136 = vsel %vm564, %v2127, 0
    %v2139 = vsel %vm564, %v2129, 0
    %v2142 = vsel %vm564, %v2131, 0
    %2144 = vmatprep.subr.bf16.mxu0 0
    %2145 = vmatpush1.bf16.xpose.msra.mxu0 %v2139
    %2146 = vmatprep.subr.bf16.mxu0 0
    %2147 = vmatpush1.bf16.xpose.msra.mxu0 %v2142
    %2148 = vmatprep.subr.bf16.mxu0 0
    %2149 = vmatpush1.bf16.xpose.msra.mxu0 0
    %2150 = vmatprep.subr.bf16.mxu0 0
    %2151 = vmatpush1.bf16.xpose.msra.mxu0 0
    %2152 = vmatprep.subr.bf16.mxu0 0
    %2153 = vmatpush1.bf16.xpose.msra.mxu0 0
    %2154 = vmatprep.subr.bf16.mxu0 0
    %2155 = vmatpush1.bf16.xpose.msra.mxu0 0
    %2156 = vmatprep.subr.bf16.mxu0 0
    %2157 = vmatpush1.bf16.xpose.msra.mxu0 0
    %2158 = vmatprep.subr.bf16.mxu0 0
    %2159 = vmatpush1.bf16.xpose.msra.mxu0 0
    %2160 = vmatprep.subr.bf16.mxu0 0
    %2161 = vmatpush1.bf16.xpose.msra.mxu0 0
    %2162 = vmatprep.subr.bf16.mxu0 0
    %2163 = vmatpush1.bf16.xpose.msra.mxu0 0
    %2164 = vmatprep.subr.bf16.mxu0 0
    %2165 = vmatpush1.bf16.xpose.msra.mxu0 0
    %2166 = vmatprep.subr.bf16.mxu0 0
    %2167 = vmatpush1.bf16.xpose.msra.mxu0 0
    %2168 = vmatprep.subr.bf16.mxu0 0
    %2169 = vmatpush1.bf16.xpose.msra.mxu0 0
    %2170 = vmatprep.subr.bf16.mxu0 0
    %2171 = vmatpush1.bf16.xpose.msra.mxu0 0
    %2172 = vmatprep.subr.bf16.mxu0 0
    %2173 = vmatpush1.bf16.xpose.msra.mxu0 0
    %2174 = vmatprep.subr.bf16.mxu0 0
    %2175 = vmatpush1.bf16.xpose.msra.mxu0 0
    %2176 = vmatprep.mubr.bf16.mxu0 0
    %2177 = vmatmul.mubr.bf16.gmra.mrb[0].mxu0 %v2133
    %v2178 = vpop.f32.mrb[0].mxu0
    %v2179 = vadd.f32 0.0, %v2178
    %v2180 = vpop.f32.mrb[0].mxu0
    %v2181 = vpop.f32.mrb[0].mxu0
    %v2182 = vadd.f32 0.0, %v2181
    %v2183 = vpop.f32.mrb[0].mxu0
    %2184 = vmatprep.mubr.bf16.mxu0 0
    %2185 = vmatmul.mubr.bf16.gmra.mrb[0].mxu0 %v2136
    %v2186 = vpop.f32.mrb[0].mxu0
    %v2187 = vadd.f32 0.0, %v2186
    %v2188 = vpop.f32.mrb[0].mxu0
    %v2189 = vpop.f32.mrb[0].mxu0
    %v2190 = vpop.f32.mrb[0].mxu0
    %2191 = vdwg.mxu0
    %v2192 = vmul.f32 %v2179, 0.35355338
    %v2193 = vmul.f32 %v2182, 0.35355338
    %v2194 = vmul.f32 %v2187, 0.35355338
    %v2195 = vadd.f32 %v2192, %v1824
    %v2196 = vadd.f32 %v2193, %v1825
    %v2197 = vadd.f32 %v2194, %v1826
    %v2198 = vsel %vm2022, %v2195, -inf
    %2199 = vmax.xlane.f32.xlu0 %v2198
    %v2200 = vpop.xlane.xlu0 %2199
    %v2201 = vsel %vm2022, %v2196, -inf
    %2202 = vmax.xlane.f32.xlu0 %v2201
    %v2203 = vpop.xlane.xlu0 %2202
    %v2204 = vsel %vm2029, %v2197, -inf
    %2205 = vmax.xlane.f32.xlu0 %v2204
    %v2206 = vpop.xlane.xlu0 %2205
    %v2207 = vsub.f32 %v2195, %v2200
    %v2208 = vsub.f32 %v2196, %v2203
    %v2209 = vsub.f32 %v2197, %v2206
    %v2210 = vmul.f32 %v2207, 1.442695
    %v2211 = vpow.pop %v2210
    %v2212 = vmul.f32 %v2208, 1.442695
    %v2213 = vpow.pop %v2212
    %v2214 = vmul.f32 %v2209, 1.442695
    %v2215 = vpow.pop %v2214
    %v2216 = vsel %vm2022, %v2211, 0.0
    %2217 = vadd.xlane.f32.xlu0 %v2216
    %v2218 = vpop.xlane.xlu0 %2217
    %v2219 = vsel %vm2022, %v2213, 0.0
    %2220 = vadd.xlane.f32.xlu0 %v2219
    %v2221 = vpop.xlane.xlu0 %2220
    %v2222 = vsel %vm2029, %v2215, 0.0
    %2223 = vadd.xlane.f32.xlu0 %v2222
    %v2224 = vpop.xlane.xlu0 %2223
    %v2225 = vrcp.pop %v2218
    %v2226 = vrcp.pop %v2221
    %v2227 = vrcp.pop %v2224
    %v2228 = vmul.f32 %v2211, %v2225
    %v2229 = vmul.f32 %v2213, %v2226
    %v2230 = vmul.f32 %v2215, %v2227
    %v2231 = vpack.c.bf16 %v2229, %v2228
    %v2232 = vpack.c.bf16 %v2230, %v2230
    %2233 = vrot.lane.b32.xlu0 %v1948, 56
    %v2234 = vpop.permute.xlu0 %2233
    %2235 = vrot.lane.b32.xlu0 %v1949, 56
    %v2236 = vpop.permute.xlu0 %2235
    %v2239 = vsel %vm2022, %v2231, 0
    %v2242 = vsel %vm2022, %v2232, 0
    %v2245 = vsel %vm1691, %v2236, 0
    %2247 = vmatprep.subr.bf16.mxu0 0
    %2248 = vmatpush1.bf16.msra.mxu0 %v2234
    %2249 = vmatprep.subr.bf16.mxu0 0
    %2250 = vmatpush1.bf16.msra.mxu0 %v2245
    %2251 = vmatprep.subr.bf16.mxu0 0
    %2252 = vmatpush1.bf16.msra.mxu0 0
    %2253 = vmatprep.subr.bf16.mxu0 0
    %2254 = vmatpush1.bf16.msra.mxu0 0
    %2255 = vmatprep.subr.bf16.mxu0 0
    %2256 = vmatpush1.bf16.msra.mxu0 0
    %2257 = vmatprep.subr.bf16.mxu0 0
    %2258 = vmatpush1.bf16.msra.mxu0 0
    %2259 = vmatprep.subr.bf16.mxu0 0
    %2260 = vmatpush1.bf16.msra.mxu0 0
    %2261 = vmatprep.subr.bf16.mxu0 0
    %2262 = vmatpush1.bf16.msra.mxu0 0
    %2263 = vmatprep.subr.bf16.mxu0 0
    %2264 = vmatpush1.bf16.msra.mxu0 0
    %2265 = vmatprep.subr.bf16.mxu0 0
    %2266 = vmatpush1.bf16.msra.mxu0 0
    %2267 = vmatprep.subr.bf16.mxu0 0
    %2268 = vmatpush1.bf16.msra.mxu0 0
    %2269 = vmatprep.subr.bf16.mxu0 0
    %2270 = vmatpush1.bf16.msra.mxu0 0
    %2271 = vmatprep.subr.bf16.mxu0 0
    %2272 = vmatpush1.bf16.msra.mxu0 0
    %2273 = vmatprep.subr.bf16.mxu0 0
    %2274 = vmatpush1.bf16.msra.mxu0 0
    %2275 = vmatprep.subr.bf16.mxu0 0
    %2276 = vmatpush1.bf16.msra.mxu0 0
    %2277 = vmatprep.subr.bf16.mxu0 0
    %2278 = vmatpush1.bf16.msra.mxu0 0
    %2279 = vmatprep.mubr.bf16.mxu0 0
    %2280 = vmatmul.mubr.bf16.gmra.mrb[0].mxu0 %v2239
    %v2281 = vpop.f32.mrb[0].mxu0
    %v2282 = vadd.f32 0.0, %v2281
    %v2283 = vpop.f32.mrb[0].mxu0
    %v2284 = vpop.f32.mrb[0].mxu0
    %v2285 = vadd.f32 0.0, %v2284
    %v2286 = vpop.f32.mrb[0].mxu0
    %2287 = vmatprep.mubr.bf16.mxu0 0
    %2288 = vmatmul.mubr.bf16.gmra.mrb[0].mxu0 %v2242
    %v2289 = vpop.f32.mrb[0].mxu0
    %v2290 = vadd.f32 0.0, %v2289
    %v2291 = vpop.f32.mrb[0].mxu0
    %v2292 = vpop.f32.mrb[0].mxu0
    %v2293 = vpop.f32.mrb[0].mxu0
    %2294 = vdwg.mxu0
    %v2295 = vpack.c.bf16 %v2285, %v2282
    %v2296 = vpack.c.bf16 %v2290, %v2290
    %v2297 = vpack.c.bf16 %v276, %v276
    %v2299 = vsel %vm564, %v2295, 0
    %v2302 = vsel %vm564, %v2296, 0
    %v2305 = vsel %vm825, %v2297, 0
    %2307 = vmatprep.subr.bf16.mxu0 0
    %2308 = vmatpush1.bf16.msra.mxu0 %v2305
    %2309 = vmatprep.subr.bf16.mxu0 0
    %2310 = vmatpush1.bf16.msra.mxu0 0
    %2311 = vmatprep.subr.bf16.mxu0 0
    %2312 = vmatpush1.bf16.msra.mxu0 0
    %2313 = vmatprep.subr.bf16.mxu0 0
    %2314 = vmatpush1.bf16.msra.mxu0 0
    %2315 = vmatprep.subr.bf16.mxu0 0
    %2316 = vmatpush1.bf16.msra.mxu0 0
    %2317 = vmatprep.subr.bf16.mxu0 0
    %2318 = vmatpush1.bf16.msra.mxu0 0
    %2319 = vmatprep.subr.bf16.mxu0 0
    %2320 = vmatpush1.bf16.msra.mxu0 0
    %2321 = vmatprep.subr.bf16.mxu0 0
    %2322 = vmatpush1.bf16.msra.mxu0 0
    %2323 = vmatprep.subr.bf16.mxu0 0
    %2324 = vmatpush1.bf16.msra.mxu0 0
    %2325 = vmatprep.subr.bf16.mxu0 0
    %2326 = vmatpush1.bf16.msra.mxu0 0
    %2327 = vmatprep.subr.bf16.mxu0 0
    %2328 = vmatpush1.bf16.msra.mxu0 0
    %2329 = vmatprep.subr.bf16.mxu0 0
    %2330 = vmatpush1.bf16.msra.mxu0 0
    %2331 = vmatprep.subr.bf16.mxu0 0
    %2332 = vmatpush1.bf16.msra.mxu0 0
    %2333 = vmatprep.subr.bf16.mxu0 0
    %2334 = vmatpush1.bf16.msra.mxu0 0
    %2335 = vmatprep.subr.bf16.mxu0 0
    %2336 = vmatpush1.bf16.msra.mxu0 0
    %2337 = vmatprep.subr.bf16.mxu0 0
    %2338 = vmatpush1.bf16.msra.mxu0 0
    %2339 = vmatprep.mubr.bf16.mxu0 0
    %2340 = vmatmul.mubr.bf16.gmra.mrb[0].mxu0 %v2299
    %v2341 = vpop.f32.mrb[0].mxu0
    %v2342 = vadd.f32 0.0, %v2341
    %v2343 = vpop.f32.mrb[0].mxu0
    %v2344 = vpop.f32.mrb[0].mxu0
    %v2345 = vadd.f32 0.0, %v2344
    %v2346 = vpop.f32.mrb[0].mxu0
    %2347 = vmatprep.mubr.bf16.mxu0 0
    %2348 = vmatmul.mubr.bf16.gmra.mrb[0].mxu0 %v2302
    %v2349 = vpop.f32.mrb[0].mxu0
    %v2350 = vadd.f32 0.0, %v2349
    %v2351 = vpop.f32.mrb[0].mxu0
    %v2352 = vpop.f32.mrb[0].mxu0
    %v2353 = vpop.f32.mrb[0].mxu0
    %2354 = vdwg.mxu0
    %v2356 = vsel %vm564, %v2121, 0
    %v2359 = vsel %vm564, %v2122, 0
    %v2362 = vsel %vm825, %v2123, 0
    %2364 = vmatprep.subr.bf16.mxu0 0
    %2365 = vmatpush1.bf16.msra.mxu0 %v2362
    %2366 = vmatprep.subr.bf16.mxu0 0
    %2367 = vmatpush1.bf16.msra.mxu0 0
    %2368 = vmatprep.subr.bf16.mxu0 0
    %2369 = vmatpush1.bf16.msra.mxu0 0
    %2370 = vmatprep.subr.bf16.mxu0 0
    %2371 = vmatpush1.bf16.msra.mxu0 0
    %2372 = vmatprep.subr.bf16.mxu0 0
    %2373 = vmatpush1.bf16.msra.mxu0 0
    %2374 = vmatprep.subr.bf16.mxu0 0
    %2375 = vmatpush1.bf16.msra.mxu0 0
    %2376 = vmatprep.subr.bf16.mxu0 0
    %2377 = vmatpush1.bf16.msra.mxu0 0
    %2378 = vmatprep.subr.bf16.mxu0 0
    %2379 = vmatpush1.bf16.msra.mxu0 0
    %2380 = vmatprep.subr.bf16.mxu0 0
    %2381 = vmatpush1.bf16.msra.mxu0 0
    %2382 = vmatprep.subr.bf16.mxu0 0
    %2383 = vmatpush1.bf16.msra.mxu0 0
    %2384 = vmatprep.subr.bf16.mxu0 0
    %2385 = vmatpush1.bf16.msra.mxu0 0
    %2386 = vmatprep.subr.bf16.mxu0 0
    %2387 = vmatpush1.bf16.msra.mxu0 0
    %2388 = vmatprep.subr.bf16.mxu0 0
    %2389 = vmatpush1.bf16.msra.mxu0 0
    %2390 = vmatprep.subr.bf16.mxu0 0
    %2391 = vmatpush1.bf16.msra.mxu0 0
    %2392 = vmatprep.subr.bf16.mxu0 0
    %2393 = vmatpush1.bf16.msra.mxu0 0
    %2394 = vmatprep.subr.bf16.mxu0 0
    %2395 = vmatpush1.bf16.msra.mxu0 0
    %2396 = vmatprep.mubr.bf16.mxu0 0
    %2397 = vmatmul.mubr.bf16.gmra.mrb[0].mxu0 %v2356
    %v2398 = vpop.f32.mrb[0].mxu0
    %v2399 = vadd.f32 %v2342, %v2398
    %v2400 = vpop.f32.mrb[0].mxu0
    %v2401 = vpop.f32.mrb[0].mxu0
    %v2402 = vadd.f32 %v2345, %v2401
    %v2403 = vpop.f32.mrb[0].mxu0
    %2404 = vmatprep.mubr.bf16.mxu0 0
    %2405 = vmatmul.mubr.bf16.gmra.mrb[0].mxu0 %v2359
    %v2406 = vpop.f32.mrb[0].mxu0
    %v2407 = vadd.f32 %v2350, %v2406
    %v2408 = vpop.f32.mrb[0].mxu0
    %v2409 = vpop.f32.mrb[0].mxu0
    %v2410 = vpop.f32.mrb[0].mxu0
    %2411 = vdwg.mxu0
    %2412 = vrot.lane.b32.xlu0 %v1948, 112
    %v2413 = vpop.permute.xlu0 %2412
    %2414 = vrot.lane.b32.xlu0 %v1949, 112
    %v2415 = vpop.permute.xlu0 %2414
    %2416 = vrot.lane.b32.xlu0 %v1948, 80
    %v2417 = vpop.permute.xlu0 %2416
    %2418 = vrot.lane.b32.xlu0 %v1949, 80
    %v2419 = vpop.permute.xlu0 %2418
    %v2421 = vsel %vm564, %v2413, 0
    %v2424 = vsel %vm564, %v2415, 0
    %v2427 = vsel %vm564, %v2417, 0
    %v2430 = vsel %vm564, %v2419, 0
    %2432 = vmatprep.subr.bf16.mxu0 0
    %2433 = vmatpush1.bf16.xpose.msra.mxu0 %v2427
    %2434 = vmatprep.subr.bf16.mxu0 0
    %2435 = vmatpush1.bf16.xpose.msra.mxu0 %v2430
    %2436 = vmatprep.subr.bf16.mxu0 0
    %2437 = vmatpush1.bf16.xpose.msra.mxu0 0
    %2438 = vmatprep.subr.bf16.mxu0 0
    %2439 = vmatpush1.bf16.xpose.msra.mxu0 0
    %2440 = vmatprep.subr.bf16.mxu0 0
    %2441 = vmatpush1.bf16.xpose.msra.mxu0 0
    %2442 = vmatprep.subr.bf16.mxu0 0
    %2443 = vmatpush1.bf16.xpose.msra.mxu0 0
    %2444 = vmatprep.subr.bf16.mxu0 0
    %2445 = vmatpush1.bf16.xpose.msra.mxu0 0
    %2446 = vmatprep.subr.bf16.mxu0 0
    %2447 = vmatpush1.bf16.xpose.msra.mxu0 0
    %2448 = vmatprep.subr.bf16.mxu0 0
    %2449 = vmatpush1.bf16.xpose.msra.mxu0 0
    %2450 = vmatprep.subr.bf16.mxu0 0
    %2451 = vmatpush1.bf16.xpose.msra.mxu0 0
    %2452 = vmatprep.subr.bf16.mxu0 0
    %2453 = vmatpush1.bf16.xpose.msra.mxu0 0
    %2454 = vmatprep.subr.bf16.mxu0 0
    %2455 = vmatpush1.bf16.xpose.msra.mxu0 0
    %2456 = vmatprep.subr.bf16.mxu0 0
    %2457 = vmatpush1.bf16.xpose.msra.mxu0 0
    %2458 = vmatprep.subr.bf16.mxu0 0
    %2459 = vmatpush1.bf16.xpose.msra.mxu0 0
    %2460 = vmatprep.subr.bf16.mxu0 0
    %2461 = vmatpush1.bf16.xpose.msra.mxu0 0
    %2462 = vmatprep.subr.bf16.mxu0 0
    %2463 = vmatpush1.bf16.xpose.msra.mxu0 0
    %2464 = vmatprep.mubr.bf16.mxu0 0
    %2465 = vmatmul.mubr.bf16.gmra.mrb[0].mxu0 %v2421
    %v2466 = vpop.f32.mrb[0].mxu0
    %v2467 = vadd.f32 0.0, %v2466
    %v2468 = vpop.f32.mrb[0].mxu0
    %v2469 = vpop.f32.mrb[0].mxu0
    %v2470 = vadd.f32 0.0, %v2469
    %v2471 = vpop.f32.mrb[0].mxu0
    %2472 = vmatprep.mubr.bf16.mxu0 0
    %2473 = vmatmul.mubr.bf16.gmra.mrb[0].mxu0 %v2424
    %v2474 = vpop.f32.mrb[0].mxu0
    %v2475 = vadd.f32 0.0, %v2474
    %v2476 = vpop.f32.mrb[0].mxu0
    %v2477 = vpop.f32.mrb[0].mxu0
    %v2478 = vpop.f32.mrb[0].mxu0
    %2479 = vdwg.mxu0
    %v2480 = vmul.f32 %v2467, 0.35355338
    %v2481 = vmul.f32 %v2470, 0.35355338
    %v2482 = vmul.f32 %v2475, 0.35355338
    %v2483 = vadd.f32 %v2480, %v1824
    %v2484 = vadd.f32 %v2481, %v1825
    %v2485 = vadd.f32 %v2482, %v1826
    %v2486 = vsel %vm2022, %v2483, -inf
    %2487 = vmax.xlane.f32.xlu0 %v2486
    %v2488 = vpop.xlane.xlu0 %2487
    %v2489 = vsel %vm2022, %v2484, -inf
    %2490 = vmax.xlane.f32.xlu0 %v2489
    %v2491 = vpop.xlane.xlu0 %2490
    %v2492 = vsel %vm2029, %v2485, -inf
    %2493 = vmax.xlane.f32.xlu0 %v2492
    %v2494 = vpop.xlane.xlu0 %2493
    %v2495 = vsub.f32 %v2483, %v2488
    %v2496 = vsub.f32 %v2484, %v2491
    %v2497 = vsub.f32 %v2485, %v2494
    %v2498 = vmul.f32 %v2495, 1.442695
    %v2499 = vpow.pop %v2498
    %v2500 = vmul.f32 %v2496, 1.442695
    %v2501 = vpow.pop %v2500
    %v2502 = vmul.f32 %v2497, 1.442695
    %v2503 = vpow.pop %v2502
    %v2504 = vsel %vm2022, %v2499, 0.0
    %2505 = vadd.xlane.f32.xlu0 %v2504
    %v2506 = vpop.xlane.xlu0 %2505
    %v2507 = vsel %vm2022, %v2501, 0.0
    %2508 = vadd.xlane.f32.xlu0 %v2507
    %v2509 = vpop.xlane.xlu0 %2508
    %v2510 = vsel %vm2029, %v2503, 0.0
    %2511 = vadd.xlane.f32.xlu0 %v2510
    %v2512 = vpop.xlane.xlu0 %2511
    %v2513 = vrcp.pop %v2506
    %v2514 = vrcp.pop %v2509
    %v2515 = vrcp.pop %v2512
    %v2516 = vmul.f32 %v2499, %v2513
    %v2517 = vmul.f32 %v2501, %v2514
    %v2518 = vmul.f32 %v2503, %v2515
    %v2519 = vpack.c.bf16 %v2517, %v2516
    %v2520 = vpack.c.bf16 %v2518, %v2518
    %2521 = vrot.lane.b32.xlu0 %v1948, 48
    %v2522 = vpop.permute.xlu0 %2521
    %2523 = vrot.lane.b32.xlu0 %v1949, 48
    %v2524 = vpop.permute.xlu0 %2523
    %v2527 = vsel %vm2022, %v2519, 0
    %v2530 = vsel %vm2022, %v2520, 0
    %v2533 = vsel %vm1691, %v2524, 0
    %2535 = vmatprep.subr.bf16.mxu0 0
    %2536 = vmatpush1.bf16.msra.mxu0 %v2522
    %2537 = vmatprep.subr.bf16.mxu0 0
    %2538 = vmatpush1.bf16.msra.mxu0 %v2533
    %2539 = vmatprep.subr.bf16.mxu0 0
    %2540 = vmatpush1.bf16.msra.mxu0 0
    %2541 = vmatprep.subr.bf16.mxu0 0
    %2542 = vmatpush1.bf16.msra.mxu0 0
    %2543 = vmatprep.subr.bf16.mxu0 0
    %2544 = vmatpush1.bf16.msra.mxu0 0
    %2545 = vmatprep.subr.bf16.mxu0 0
    %2546 = vmatpush1.bf16.msra.mxu0 0
    %2547 = vmatprep.subr.bf16.mxu0 0
    %2548 = vmatpush1.bf16.msra.mxu0 0
    %2549 = vmatprep.subr.bf16.mxu0 0
    %2550 = vmatpush1.bf16.msra.mxu0 0
    %2551 = vmatprep.subr.bf16.mxu0 0
    %2552 = vmatpush1.bf16.msra.mxu0 0
    %2553 = vmatprep.subr.bf16.mxu0 0
    %2554 = vmatpush1.bf16.msra.mxu0 0
    %2555 = vmatprep.subr.bf16.mxu0 0
    %2556 = vmatpush1.bf16.msra.mxu0 0
    %2557 = vmatprep.subr.bf16.mxu0 0
    %2558 = vmatpush1.bf16.msra.mxu0 0
    %2559 = vmatprep.subr.bf16.mxu0 0
    %2560 = vmatpush1.bf16.msra.mxu0 0
    %2561 = vmatprep.subr.bf16.mxu0 0
    %2562 = vmatpush1.bf16.msra.mxu0 0
    %2563 = vmatprep.subr.bf16.mxu0 0
    %2564 = vmatpush1.bf16.msra.mxu0 0
    %2565 = vmatprep.subr.bf16.mxu0 0
    %2566 = vmatpush1.bf16.msra.mxu0 0
    %2567 = vmatprep.mubr.bf16.mxu0 0
    %2568 = vmatmul.mubr.bf16.gmra.mrb[0].mxu0 %v2527
    %v2569 = vpop.f32.mrb[0].mxu0
    %v2570 = vadd.f32 0.0, %v2569
    %v2571 = vpop.f32.mrb[0].mxu0
    %v2572 = vpop.f32.mrb[0].mxu0
    %v2573 = vadd.f32 0.0, %v2572
    %v2574 = vpop.f32.mrb[0].mxu0
    %2575 = vmatprep.mubr.bf16.mxu0 0
    %2576 = vmatmul.mubr.bf16.gmra.mrb[0].mxu0 %v2530
    %v2577 = vpop.f32.mrb[0].mxu0
    %v2578 = vadd.f32 0.0, %v2577
    %v2579 = vpop.f32.mrb[0].mxu0
    %v2580 = vpop.f32.mrb[0].mxu0
    %v2581 = vpop.f32.mrb[0].mxu0
    %2582 = vdwg.mxu0
    %v2583 = vpack.c.bf16 %v2573, %v2570
    %v2584 = vpack.c.bf16 %v2578, %v2578
    %v2585 = vpack.c.bf16 %v277, %v277
    %v2587 = vsel %vm564, %v2583, 0
    %v2590 = vsel %vm564, %v2584, 0
    %v2593 = vsel %vm825, %v2585, 0
    %2595 = vmatprep.subr.bf16.mxu0 0
    %2596 = vmatpush1.bf16.msra.mxu0 %v2593
    %2597 = vmatprep.subr.bf16.mxu0 0
    %2598 = vmatpush1.bf16.msra.mxu0 0
    %2599 = vmatprep.subr.bf16.mxu0 0
    %2600 = vmatpush1.bf16.msra.mxu0 0
    %2601 = vmatprep.subr.bf16.mxu0 0
    %2602 = vmatpush1.bf16.msra.mxu0 0
    %2603 = vmatprep.subr.bf16.mxu0 0
    %2604 = vmatpush1.bf16.msra.mxu0 0
    %2605 = vmatprep.subr.bf16.mxu0 0
    %2606 = vmatpush1.bf16.msra.mxu0 0
    %2607 = vmatprep.subr.bf16.mxu0 0
    %2608 = vmatpush1.bf16.msra.mxu0 0
    %2609 = vmatprep.subr.bf16.mxu0 0
    %2610 = vmatpush1.bf16.msra.mxu0 0
    %2611 = vmatprep.subr.bf16.mxu0 0
    %2612 = vmatpush1.bf16.msra.mxu0 0
    %2613 = vmatprep.subr.bf16.mxu0 0
    %2614 = vmatpush1.bf16.msra.mxu0 0
    %2615 = vmatprep.subr.bf16.mxu0 0
    %2616 = vmatpush1.bf16.msra.mxu0 0
    %2617 = vmatprep.subr.bf16.mxu0 0
    %2618 = vmatpush1.bf16.msra.mxu0 0
    %2619 = vmatprep.subr.bf16.mxu0 0
    %2620 = vmatpush1.bf16.msra.mxu0 0
    %2621 = vmatprep.subr.bf16.mxu0 0
    %2622 = vmatpush1.bf16.msra.mxu0 0
    %2623 = vmatprep.subr.bf16.mxu0 0
    %2624 = vmatpush1.bf16.msra.mxu0 0
    %2625 = vmatprep.subr.bf16.mxu0 0
    %2626 = vmatpush1.bf16.msra.mxu0 0
    %2627 = vmatprep.mubr.bf16.mxu0 0
    %2628 = vmatmul.mubr.bf16.gmra.mrb[0].mxu0 %v2587
    %v2629 = vpop.f32.mrb[0].mxu0
    %v2630 = vadd.f32 0.0, %v2629
    %v2631 = vpop.f32.mrb[0].mxu0
    %v2632 = vpop.f32.mrb[0].mxu0
    %v2633 = vadd.f32 0.0, %v2632
    %v2634 = vpop.f32.mrb[0].mxu0
    %2635 = vmatprep.mubr.bf16.mxu0 0
    %2636 = vmatmul.mubr.bf16.gmra.mrb[0].mxu0 %v2590
    %v2637 = vpop.f32.mrb[0].mxu0
    %v2638 = vadd.f32 0.0, %v2637
    %v2639 = vpop.f32.mrb[0].mxu0
    %v2640 = vpop.f32.mrb[0].mxu0
    %v2641 = vpop.f32.mrb[0].mxu0
    %2642 = vdwg.mxu0
    %v2643 = vadd.f32 %v2399, %v2630
    %v2644 = vadd.f32 %v2402, %v2633
    %v2645 = vadd.f32 %v2407, %v2638
    %2646 = vrot.lane.b32.xlu0 %v1948, 104
    %v2647 = vpop.permute.xlu0 %2646
    %2648 = vrot.lane.b32.xlu0 %v1949, 104
    %v2649 = vpop.permute.xlu0 %2648
    %2650 = vrot.lane.b32.xlu0 %v1948, 72
    %v2651 = vpop.permute.xlu0 %2650
    %2652 = vrot.lane.b32.xlu0 %v1949, 72
    %v2653 = vpop.permute.xlu0 %2652
    %v2655 = vsel %vm564, %v2647, 0
    %v2658 = vsel %vm564, %v2649, 0
    %v2661 = vsel %vm564, %v2651, 0
    %v2664 = vsel %vm564, %v2653, 0
    %2666 = vmatprep.subr.bf16.mxu0 0
    %2667 = vmatpush1.bf16.xpose.msra.mxu0 %v2661
    %2668 = vmatprep.subr.bf16.mxu0 0
    %2669 = vmatpush1.bf16.xpose.msra.mxu0 %v2664
    %2670 = vmatprep.subr.bf16.mxu0 0
    %2671 = vmatpush1.bf16.xpose.msra.mxu0 0
    %2672 = vmatprep.subr.bf16.mxu0 0
    %2673 = vmatpush1.bf16.xpose.msra.mxu0 0
    %2674 = vmatprep.subr.bf16.mxu0 0
    %2675 = vmatpush1.bf16.xpose.msra.mxu0 0
    %2676 = vmatprep.subr.bf16.mxu0 0
    %2677 = vmatpush1.bf16.xpose.msra.mxu0 0
    %2678 = vmatprep.subr.bf16.mxu0 0
    %2679 = vmatpush1.bf16.xpose.msra.mxu0 0
    %2680 = vmatprep.subr.bf16.mxu0 0
    %2681 = vmatpush1.bf16.xpose.msra.mxu0 0
    %2682 = vmatprep.subr.bf16.mxu0 0
    %2683 = vmatpush1.bf16.xpose.msra.mxu0 0
    %2684 = vmatprep.subr.bf16.mxu0 0
    %2685 = vmatpush1.bf16.xpose.msra.mxu0 0
    %2686 = vmatprep.subr.bf16.mxu0 0
    %2687 = vmatpush1.bf16.xpose.msra.mxu0 0
    %2688 = vmatprep.subr.bf16.mxu0 0
    %2689 = vmatpush1.bf16.xpose.msra.mxu0 0
    %2690 = vmatprep.subr.bf16.mxu0 0
    %2691 = vmatpush1.bf16.xpose.msra.mxu0 0
    %2692 = vmatprep.subr.bf16.mxu0 0
    %2693 = vmatpush1.bf16.xpose.msra.mxu0 0
    %2694 = vmatprep.subr.bf16.mxu0 0
    %2695 = vmatpush1.bf16.xpose.msra.mxu0 0
    %2696 = vmatprep.subr.bf16.mxu0 0
    %2697 = vmatpush1.bf16.xpose.msra.mxu0 0
    %2698 = vmatprep.mubr.bf16.mxu0 0
    %2699 = vmatmul.mubr.bf16.gmra.mrb[0].mxu0 %v2655
    %v2700 = vpop.f32.mrb[0].mxu0
    %v2701 = vadd.f32 0.0, %v2700
    %v2702 = vpop.f32.mrb[0].mxu0
    %v2703 = vpop.f32.mrb[0].mxu0
    %v2704 = vadd.f32 0.0, %v2703
    %v2705 = vpop.f32.mrb[0].mxu0
    %2706 = vmatprep.mubr.bf16.mxu0 0
    %2707 = vmatmul.mubr.bf16.gmra.mrb[0].mxu0 %v2658
    %v2708 = vpop.f32.mrb[0].mxu0
    %v2709 = vadd.f32 0.0, %v2708
    %v2710 = vpop.f32.mrb[0].mxu0
    %v2711 = vpop.f32.mrb[0].mxu0
    %v2712 = vpop.f32.mrb[0].mxu0
    %2713 = vdwg.mxu0
    %v2714 = vmul.f32 %v2701, 0.35355338
    %v2715 = vmul.f32 %v2704, 0.35355338
    %v2716 = vmul.f32 %v2709, 0.35355338
    %v2717 = vadd.f32 %v2714, %v1824
    %v2718 = vadd.f32 %v2715, %v1825
    %v2719 = vadd.f32 %v2716, %v1826
    %v2720 = vsel %vm2022, %v2717, -inf
    %2721 = vmax.xlane.f32.xlu0 %v2720
    %v2722 = vpop.xlane.xlu0 %2721
    %v2723 = vsel %vm2022, %v2718, -inf
    %2724 = vmax.xlane.f32.xlu0 %v2723
    %v2725 = vpop.xlane.xlu0 %2724
    %v2726 = vsel %vm2029, %v2719, -inf
    %2727 = vmax.xlane.f32.xlu0 %v2726
    %v2728 = vpop.xlane.xlu0 %2727
    %v2729 = vsub.f32 %v2717, %v2722
    %v2730 = vsub.f32 %v2718, %v2725
    %v2731 = vsub.f32 %v2719, %v2728
    %v2732 = vmul.f32 %v2729, 1.442695
    %v2733 = vpow.pop %v2732
    %v2734 = vmul.f32 %v2730, 1.442695
    %v2735 = vpow.pop %v2734
    %v2736 = vmul.f32 %v2731, 1.442695
    %v2737 = vpow.pop %v2736
    %v2738 = vsel %vm2022, %v2733, 0.0
    %2739 = vadd.xlane.f32.xlu0 %v2738
    %v2740 = vpop.xlane.xlu0 %2739
    %v2741 = vsel %vm2022, %v2735, 0.0
    %2742 = vadd.xlane.f32.xlu0 %v2741
    %v2743 = vpop.xlane.xlu0 %2742
    %v2744 = vsel %vm2029, %v2737, 0.0
    %2745 = vadd.xlane.f32.xlu0 %v2744
    %v2746 = vpop.xlane.xlu0 %2745
    %v2747 = vrcp.pop %v2740
    %v2748 = vrcp.pop %v2743
    %v2749 = vrcp.pop %v2746
    %v2750 = vmul.f32 %v2733, %v2747
    %v2751 = vmul.f32 %v2735, %v2748
    %v2752 = vmul.f32 %v2737, %v2749
    %v2753 = vpack.c.bf16 %v2751, %v2750
    %v2754 = vpack.c.bf16 %v2752, %v2752
    %2755 = vrot.lane.b32.xlu0 %v1948, 40
    %v2756 = vpop.permute.xlu0 %2755
    %2757 = vrot.lane.b32.xlu0 %v1949, 40
    %v2758 = vpop.permute.xlu0 %2757
    %v2761 = vsel %vm2022, %v2753, 0
    %v2764 = vsel %vm2022, %v2754, 0
    %v2767 = vsel %vm1691, %v2758, 0
    %2769 = vmatprep.subr.bf16.mxu0 0
    %2770 = vmatpush1.bf16.msra.mxu0 %v2756
    %2771 = vmatprep.subr.bf16.mxu0 0
    %2772 = vmatpush1.bf16.msra.mxu0 %v2767
    %2773 = vmatprep.subr.bf16.mxu0 0
    %2774 = vmatpush1.bf16.msra.mxu0 0
    %2775 = vmatprep.subr.bf16.mxu0 0
    %2776 = vmatpush1.bf16.msra.mxu0 0
    %2777 = vmatprep.subr.bf16.mxu0 0
    %2778 = vmatpush1.bf16.msra.mxu0 0
    %2779 = vmatprep.subr.bf16.mxu0 0
    %2780 = vmatpush1.bf16.msra.mxu0 0
    %2781 = vmatprep.subr.bf16.mxu0 0
    %2782 = vmatpush1.bf16.msra.mxu0 0
    %2783 = vmatprep.subr.bf16.mxu0 0
    %2784 = vmatpush1.bf16.msra.mxu0 0
    %2785 = vmatprep.subr.bf16.mxu0 0
    %2786 = vmatpush1.bf16.msra.mxu0 0
    %2787 = vmatprep.subr.bf16.mxu0 0
    %2788 = vmatpush1.bf16.msra.mxu0 0
    %2789 = vmatprep.subr.bf16.mxu0 0
    %2790 = vmatpush1.bf16.msra.mxu0 0
    %2791 = vmatprep.subr.bf16.mxu0 0
    %2792 = vmatpush1.bf16.msra.mxu0 0
    %2793 = vmatprep.subr.bf16.mxu0 0
    %2794 = vmatpush1.bf16.msra.mxu0 0
    %2795 = vmatprep.subr.bf16.mxu0 0
    %2796 = vmatpush1.bf16.msra.mxu0 0
    %2797 = vmatprep.subr.bf16.mxu0 0
    %2798 = vmatpush1.bf16.msra.mxu0 0
    %2799 = vmatprep.subr.bf16.mxu0 0
    %2800 = vmatpush1.bf16.msra.mxu0 0
    %2801 = vmatprep.mubr.bf16.mxu0 0
    %2802 = vmatmul.mubr.bf16.gmra.mrb[0].mxu0 %v2761
    %v2803 = vpop.f32.mrb[0].mxu0
    %v2804 = vadd.f32 0.0, %v2803
    %v2805 = vpop.f32.mrb[0].mxu0
    %v2806 = vpop.f32.mrb[0].mxu0
    %v2807 = vadd.f32 0.0, %v2806
    %v2808 = vpop.f32.mrb[0].mxu0
    %2809 = vmatprep.mubr.bf16.mxu0 0
    %2810 = vmatmul.mubr.bf16.gmra.mrb[0].mxu0 %v2764
    %v2811 = vpop.f32.mrb[0].mxu0
    %v2812 = vadd.f32 0.0, %v2811
    %v2813 = vpop.f32.mrb[0].mxu0
    %v2814 = vpop.f32.mrb[0].mxu0
    %v2815 = vpop.f32.mrb[0].mxu0
    %2816 = vdwg.mxu0
    %v2817 = vpack.c.bf16 %v2807, %v2804
    %v2818 = vpack.c.bf16 %v2812, %v2812
    %v2819 = vpack.c.bf16 %v278, %v278
    %v2821 = vsel %vm564, %v2817, 0
    %v2824 = vsel %vm564, %v2818, 0
    %v2827 = vsel %vm825, %v2819, 0
    %2829 = vmatprep.subr.bf16.mxu0 0
    %2830 = vmatpush1.bf16.msra.mxu0 %v2827
    %2831 = vmatprep.subr.bf16.mxu0 0
    %2832 = vmatpush1.bf16.msra.mxu0 0
    %2833 = vmatprep.subr.bf16.mxu0 0
    %2834 = vmatpush1.bf16.msra.mxu0 0
    %2835 = vmatprep.subr.bf16.mxu0 0
    %2836 = vmatpush1.bf16.msra.mxu0 0
    %2837 = vmatprep.subr.bf16.mxu0 0
    %2838 = vmatpush1.bf16.msra.mxu0 0
    %2839 = vmatprep.subr.bf16.mxu0 0
    %2840 = vmatpush1.bf16.msra.mxu0 0
    %2841 = vmatprep.subr.bf16.mxu0 0
    %2842 = vmatpush1.bf16.msra.mxu0 0
    %2843 = vmatprep.subr.bf16.mxu0 0
    %2844 = vmatpush1.bf16.msra.mxu0 0
    %2845 = vmatprep.subr.bf16.mxu0 0
    %2846 = vmatpush1.bf16.msra.mxu0 0
    %2847 = vmatprep.subr.bf16.mxu0 0
    %2848 = vmatpush1.bf16.msra.mxu0 0
    %2849 = vmatprep.subr.bf16.mxu0 0
    %2850 = vmatpush1.bf16.msra.mxu0 0
    %2851 = vmatprep.subr.bf16.mxu0 0
    %2852 = vmatpush1.bf16.msra.mxu0 0
    %2853 = vmatprep.subr.bf16.mxu0 0
    %2854 = vmatpush1.bf16.msra.mxu0 0
    %2855 = vmatprep.subr.bf16.mxu0 0
    %2856 = vmatpush1.bf16.msra.mxu0 0
    %2857 = vmatprep.subr.bf16.mxu0 0
    %2858 = vmatpush1.bf16.msra.mxu0 0
    %2859 = vmatprep.subr.bf16.mxu0 0
    %2860 = vmatpush1.bf16.msra.mxu0 0
    %2861 = vmatprep.mubr.bf16.mxu0 0
    %2862 = vmatmul.mubr.bf16.gmra.mrb[0].mxu0 %v2821
    %v2863 = vpop.f32.mrb[0].mxu0
    %v2864 = vadd.f32 0.0, %v2863
    %v2865 = vpop.f32.mrb[0].mxu0
    %v2866 = vpop.f32.mrb[0].mxu0
    %v2867 = vadd.f32 0.0, %v2866
    %v2868 = vpop.f32.mrb[0].mxu0
    %2869 = vmatprep.mubr.bf16.mxu0 0
    %2870 = vmatmul.mubr.bf16.gmra.mrb[0].mxu0 %v2824
    %v2871 = vpop.f32.mrb[0].mxu0
    %v2872 = vadd.f32 0.0, %v2871
    %v2873 = vpop.f32.mrb[0].mxu0
    %v2874 = vpop.f32.mrb[0].mxu0
    %v2875 = vpop.f32.mrb[0].mxu0
    %2876 = vdwg.mxu0
    %v2877 = vadd.f32 %v2643, %v2864
    %v2878 = vadd.f32 %v2644, %v2867
    %v2879 = vadd.f32 %v2645, %v2872
    %v2880 = vadd.f32 %v1746, %v2877
    %v2881 = vadd.f32 %v1747, %v2878
    %v2882 = vadd.f32 %v1748, %v2879
    %v2884 = vlaneseq
    %v2885 = vshrl.u32 %v2884, 7
    %v2886 = vsub.s32 0, %v2885
    %v2887 = vrot.slane %v279, %v2886
    %v2889 = vadd.f32 %v2880, %v2887
    %v2890 = vadd.f32 %v2881, %v2887
    %v2891 = vadd.f32 %v2882, %v2887
    %v2892 = vsel %vm462, %v2889, 0.0
    %2893 = vadd.xlane.f32.xlu0 %v2892
    %v2894 = vpop.xlane.xlu0 %2893
    %v2895 = vsel %vm462, %v2890, 0.0
    %2896 = vadd.xlane.f32.xlu0 %v2895
    %v2897 = vpop.xlane.xlu0 %2896
    %v2898 = vsel %vm466, %v2891, 0.0
    %2899 = vadd.xlane.f32.xlu0 %v2898
    %v2900 = vpop.xlane.xlu0 %2899
    %v2901 = vmul.f32 %v2894, %v470
    %v2902 = vmul.f32 %v2897, %v470
    %v2903 = vmul.f32 %v2900, %v470
    %v2904 = vsub.f32 %v2889, %v2901
    %v2905 = vsub.f32 %v2890, %v2902
    %v2906 = vsub.f32 %v2891, %v2903
    %v2907 = vmul.f32 %v2904, %v2904
    %v2908 = vmul.f32 %v2905, %v2905
    %v2909 = vmul.f32 %v2906, %v2906
    %v2910 = vsel %vm462, %v2907, 0.0
    %2911 = vadd.xlane.f32.xlu0 %v2910
    %v2912 = vpop.xlane.xlu0 %2911
    %v2913 = vsel %vm462, %v2908, 0.0
    %2914 = vadd.xlane.f32.xlu0 %v2913
    %v2915 = vpop.xlane.xlu0 %2914
    %v2916 = vsel %vm466, %v2909, 0.0
    %2917 = vadd.xlane.f32.xlu0 %v2916
    %v2918 = vpop.xlane.xlu0 %2917
    %v2919 = vmul.f32 %v2912, %v470
    %v2920 = vmul.f32 %v2915, %v470
    %v2921 = vmul.f32 %v2918, %v470
    %v2922 = vadd.f32 %v2919, 1e-05
    %v2923 = vadd.f32 %v2920, 1e-05
    %v2924 = vadd.f32 %v2921, 1e-05
    %v2925 = vrsqrt.pop %v2922
    %v2926 = vrsqrt.pop %v2923
    %v2927 = vrsqrt.pop %v2924
    %v2928 = vmul.f32 %v2904, %v2925
    %v2929 = vmul.f32 %v2905, %v2926
    %v2930 = vmul.f32 %v2906, %v2927
    %v2932 = vlaneseq
    %v2933 = vshrl.u32 %v2932, 7
    %v2934 = vsub.s32 0, %v2933
    %v2935 = vrot.slane %v280, %v2934
    %v2937 = vmul.f32 %v2928, %v2935
    %v2938 = vmul.f32 %v2929, %v2935
    %v2939 = vmul.f32 %v2930, %v2935
    %v2941 = vlaneseq
    %v2942 = vshrl.u32 %v2941, 7
    %v2943 = vsub.s32 0, %v2942
    %v2944 = vrot.slane %v281, %v2943
    %v2946 = vadd.f32 %v2937, %v2944
    %v2947 = vadd.f32 %v2938, %v2944
    %v2948 = vadd.f32 %v2939, %v2944
    %v2949 = vpack.c.bf16 %v2947, %v2946
    %v2950 = vpack.c.bf16 %v2948, %v2948
    %v2951 = vpack.c.bf16 %v283, %v282
    %v2952 = vpack.c.bf16 %v285, %v284
    %v2954 = vlaneseq
    %v2955 = vshrl.u32 %v2954, 7
    %v2956 = vsub.s32 0, %v2955
    %v2957 = vrot.slane %v286, %v2956
    %v2960 = vsel %vm462, %v2949, 0
    %v2963 = vsel %vm462, %v2950, 0
    %2965 = vmatprep.subr.bf16.mxu0 0
    %2966 = vmatpush1.bf16.msra.mxu0 %v2951
    %2967 = vmatprep.subr.bf16.mxu0 0
    %2968 = vmatpush1.bf16.msra.mxu0 %v2952
    %2969 = vmatprep.subr.bf16.mxu0 0
    %2970 = vmatpush1.bf16.msra.mxu0 0
    %2971 = vmatprep.subr.bf16.mxu0 0
    %2972 = vmatpush1.bf16.msra.mxu0 0
    %2973 = vmatprep.subr.bf16.mxu0 0
    %2974 = vmatpush1.bf16.msra.mxu0 0
    %2975 = vmatprep.subr.bf16.mxu0 0
    %2976 = vmatpush1.bf16.msra.mxu0 0
    %2977 = vmatprep.subr.bf16.mxu0 0
    %2978 = vmatpush1.bf16.msra.mxu0 0
    %2979 = vmatprep.subr.bf16.mxu0 0
    %2980 = vmatpush1.bf16.msra.mxu0 0
    %2981 = vmatprep.subr.bf16.mxu0 0
    %2982 = vmatpush1.bf16.msra.mxu0 0
    %2983 = vmatprep.subr.bf16.mxu0 0
    %2984 = vmatpush1.bf16.msra.mxu0 0
    %2985 = vmatprep.subr.bf16.mxu0 0
    %2986 = vmatpush1.bf16.msra.mxu0 0
    %2987 = vmatprep.subr.bf16.mxu0 0
    %2988 = vmatpush1.bf16.msra.mxu0 0
    %2989 = vmatprep.subr.bf16.mxu0 0
    %2990 = vmatpush1.bf16.msra.mxu0 0
    %2991 = vmatprep.subr.bf16.mxu0 0
    %2992 = vmatpush1.bf16.msra.mxu0 0
    %2993 = vmatprep.subr.bf16.mxu0 0
    %2994 = vmatpush1.bf16.msra.mxu0 0
    %2995 = vmatprep.subr.bf16.mxu0 0
    %2996 = vmatpush1.bf16.msra.mxu0 0
    %2997 = vmatprep.mubr.bf16.mxu0 0
    %2998 = vmatmul.mubr.bf16.gmra.mrb[0].mxu0 %v2960
    %v2999 = vpop.f32.mrb[0].mxu0
    %v3000 = vadd.f32 %v2957, %v2999
    %v3001 = vpop.f32.mrb[0].mxu0
    %v3002 = vpop.f32.mrb[0].mxu0
    %v3003 = vadd.f32 %v2957, %v3002
    %v3004 = vpop.f32.mrb[0].mxu0
    %3005 = vmatprep.mubr.bf16.mxu0 0
    %3006 = vmatmul.mubr.bf16.gmra.mrb[0].mxu0 %v2963
    %v3007 = vpop.f32.mrb[0].mxu0
    %v3008 = vadd.f32 %v2957, %v3007
    %v3009 = vpop.f32.mrb[0].mxu0
    %v3010 = vpop.f32.mrb[0].mxu0
    %v3011 = vpop.f32.mrb[0].mxu0
    %3012 = vdwg.mxu0
    %v3013 = vmul.f32 %v3000, %v3000
    %v3014 = vmul.f32 %v3003, %v3003
    %v3015 = vmul.f32 %v3008, %v3008
    %v3016 = vmul.f32 %v3000, %v3013
    %v3017 = vmul.f32 %v3003, %v3014
    %v3018 = vmul.f32 %v3008, %v3015
    %v3019 = vmul.f32 %v3016, 0.044715
    %v3020 = vmul.f32 %v3017, 0.044715
    %v3021 = vmul.f32 %v3018, 0.044715
    %v3022 = vadd.f32 %v3000, %v3019
    %v3023 = vadd.f32 %v3003, %v3020
    %v3024 = vadd.f32 %v3008, %v3021
    %v3025 = vmul.f32 %v3022, 0.7978846
    %v3026 = vmul.f32 %v3023, 0.7978846
    %v3027 = vmul.f32 %v3024, 0.7978846
    %v3028 = vtanh.pop %v3025
    %v3029 = vtanh.pop %v3026
    %v3030 = vtanh.pop %v3027
    %v3031 = vadd.f32 %v3028, 1.0
    %v3032 = vadd.f32 %v3029, 1.0
    %v3033 = vadd.f32 %v3030, 1.0
    %v3034 = vmul.f32 %v3031, 0.5
    %v3035 = vmul.f32 %v3032, 0.5
    %v3036 = vmul.f32 %v3033, 0.5
    %v3037 = vmul.f32 %v3000, %v3034
    %v3038 = vmul.f32 %v3003, %v3035
    %v3039 = vmul.f32 %v3008, %v3036
    %v3040 = vpack.c.bf16 %v3038, %v3037
    %v3041 = vpack.c.bf16 %v3039, %v3039
    %v3042 = vpack.c.bf16 %v288, %v287
    %v3043 = vpack.c.bf16 %v290, %v289
    %v3044 = vpack.c.bf16 %v292, %v291
    %v3045 = vpack.c.bf16 %v294, %v293
    %v3046 = vpack.c.bf16 %v296, %v295
    %v3047 = vpack.c.bf16 %v298, %v297
    %v3048 = vpack.c.bf16 %v300, %v299
    %v3049 = vpack.c.bf16 %v302, %v301
    %3050 = vmatprep.subr.bf16.mxu0 0
    %3051 = vmatpush1.bf16.msra.mxu0 %v3042
    %3052 = vmatprep.subr.bf16.mxu0 0
    %3053 = vmatpush1.bf16.msra.mxu0 %v3043
    %3054 = vmatprep.subr.bf16.mxu0 0
    %3055 = vmatpush1.bf16.msra.mxu0 %v3044
    %3056 = vmatprep.subr.bf16.mxu0 0
    %3057 = vmatpush1.bf16.msra.mxu0 %v3045
    %3058 = vmatprep.subr.bf16.mxu0 0
    %3059 = vmatpush1.bf16.msra.mxu0 %v3046
    %3060 = vmatprep.subr.bf16.mxu0 0
    %3061 = vmatpush1.bf16.msra.mxu0 %v3047
    %3062 = vmatprep.subr.bf16.mxu0 0
    %3063 = vmatpush1.bf16.msra.mxu0 %v3048
    %3064 = vmatprep.subr.bf16.mxu0 0
    %3065 = vmatpush1.bf16.msra.mxu0 %v3049
    %3066 = vmatprep.subr.bf16.mxu0 0
    %3067 = vmatpush1.bf16.msra.mxu0 0
    %3068 = vmatprep.subr.bf16.mxu0 0
    %3069 = vmatpush1.bf16.msra.mxu0 0
    %3070 = vmatprep.subr.bf16.mxu0 0
    %3071 = vmatpush1.bf16.msra.mxu0 0
    %3072 = vmatprep.subr.bf16.mxu0 0
    %3073 = vmatpush1.bf16.msra.mxu0 0
    %3074 = vmatprep.subr.bf16.mxu0 0
    %3075 = vmatpush1.bf16.msra.mxu0 0
    %3076 = vmatprep.subr.bf16.mxu0 0
    %3077 = vmatpush1.bf16.msra.mxu0 0
    %3078 = vmatprep.subr.bf16.mxu0 0
    %3079 = vmatpush1.bf16.msra.mxu0 0
    %3080 = vmatprep.subr.bf16.mxu0 0
    %3081 = vmatpush1.bf16.msra.mxu0 0
    %3082 = vmatprep.mubr.bf16.mxu0 0
    %3083 = vmatmul.mubr.bf16.gmra.mrb[0].mxu0 %v3040
    %v3084 = vpop.f32.mrb[0].mxu0
    %v3085 = vadd.f32 0.0, %v3084
    %v3086 = vpop.f32.mrb[0].mxu0
    %v3087 = vpop.f32.mrb[0].mxu0
    %v3088 = vadd.f32 0.0, %v3087
    %v3089 = vpop.f32.mrb[0].mxu0
    %3090 = vmatprep.mubr.bf16.mxu0 0
    %3091 = vmatmul.mubr.bf16.gmra.mrb[0].mxu0 %v3041
    %v3092 = vpop.f32.mrb[0].mxu0
    %v3093 = vadd.f32 0.0, %v3092
    %v3094 = vpop.f32.mrb[0].mxu0
    %v3095 = vpop.f32.mrb[0].mxu0
    %v3096 = vpop.f32.mrb[0].mxu0
    %3097 = vdwg.mxu0
    %v3098 = vadd.f32 %v2889, %v3085
    %v3099 = vadd.f32 %v2890, %v3088
    %v3100 = vadd.f32 %v2891, %v3093
    %v3102 = vlaneseq
    %v3103 = vshrl.u32 %v3102, 7
    %v3104 = vsub.s32 0, %v3103
    %v3105 = vrot.slane %v303, %v3104
    %v3107 = vadd.f32 %v3098, %v3105
    %v3108 = vadd.f32 %v3099, %v3105
    %v3109 = vadd.f32 %v3100, %v3105
    %v3110 = vsel %vm462, %v3107, 0.0
    %3111 = vadd.xlane.f32.xlu0 %v3110
    %v3112 = vpop.xlane.xlu0 %3111
    %v3113 = vsel %vm462, %v3108, 0.0
    %3114 = vadd.xlane.f32.xlu0 %v3113
    %v3115 = vpop.xlane.xlu0 %3114
    %v3116 = vsel %vm466, %v3109, 0.0
    %3117 = vadd.xlane.f32.xlu0 %v3116
    %v3118 = vpop.xlane.xlu0 %3117
    %v3119 = vmul.f32 %v3112, %v470
    %v3120 = vmul.f32 %v3115, %v470
    %v3121 = vmul.f32 %v3118, %v470
    %v3122 = vsub.f32 %v3107, %v3119
    %v3123 = vsub.f32 %v3108, %v3120
    %v3124 = vsub.f32 %v3109, %v3121
    %v3125 = vmul.f32 %v3122, %v3122
    %v3126 = vmul.f32 %v3123, %v3123
    %v3127 = vmul.f32 %v3124, %v3124
    %v3128 = vsel %vm462, %v3125, 0.0
    %3129 = vadd.xlane.f32.xlu0 %v3128
    %v3130 = vpop.xlane.xlu0 %3129
    %v3131 = vsel %vm462, %v3126, 0.0
    %3132 = vadd.xlane.f32.xlu0 %v3131
    %v3133 = vpop.xlane.xlu0 %3132
    %v3134 = vsel %vm466, %v3127, 0.0
    %3135 = vadd.xlane.f32.xlu0 %v3134
    %v3136 = vpop.xlane.xlu0 %3135
    %v3137 = vmul.f32 %v3130, %v470
    %v3138 = vmul.f32 %v3133, %v470
    %v3139 = vmul.f32 %v3136, %v470
    %v3140 = vadd.f32 %v3137, 1e-05
    %v3141 = vadd.f32 %v3138, 1e-05
    %v3142 = vadd.f32 %v3139, 1e-05
    %v3143 = vrsqrt.pop %v3140
    %v3144 = vrsqrt.pop %v3141
    %v3145 = vrsqrt.pop %v3142
    %v3146 = vmul.f32 %v3122, %v3143
    %v3147 = vmul.f32 %v3123, %v3144
    %v3148 = vmul.f32 %v3124, %v3145
    %v3150 = vlaneseq
    %v3151 = vshrl.u32 %v3150, 7
    %v3152 = vsub.s32 0, %v3151
    %v3153 = vrot.slane %v304, %v3152
    %v3155 = vmul.f32 %v3146, %v3153
    %v3156 = vmul.f32 %v3147, %v3153
    %v3157 = vmul.f32 %v3148, %v3153
    %v3159 = vlaneseq
    %v3160 = vshrl.u32 %v3159, 7
    %v3161 = vsub.s32 0, %v3160
    %v3162 = vrot.slane %v305, %v3161
    %v3164 = vadd.f32 %v3155, %v3162
    %v3165 = vadd.f32 %v3156, %v3162
    %v3166 = vadd.f32 %v3157, %v3162
    %v3167 = vpack.c.bf16 %v3165, %v3164
    %v3168 = vpack.c.bf16 %v3166, %v3166
    %v3170 = vsel %vm462, %v3167, 0
    %v3173 = vsel %vm462, %v3168, 0
    %v3176 = vsel %vm462, %v1622, 0
    %v3179 = vsel %vm462, %v1623, 0
    %v3182 = vsel %vm462, %v1624, 0
    %v3185 = vsel %vm462, %v1625, 0
    %v3188 = vsel %vm462, %v1626, 0
    %v3191 = vsel %vm462, %v1627, 0
    %v3194 = vsel %vm462, %v1628, 0
    %v3197 = vsel %vm462, %v1629, 0
    %3199 = vmatprep.subr.bf16.mxu0 0
    %3200 = vmatpush1.bf16.xpose.msra.mxu0 %v3176
    %3201 = vmatprep.subr.bf16.mxu0 0
    %3202 = vmatpush1.bf16.xpose.msra.mxu0 %v3179
    %3203 = vmatprep.subr.bf16.mxu0 0
    %3204 = vmatpush1.bf16.xpose.msra.mxu0 %v3182
    %3205 = vmatprep.subr.bf16.mxu0 0
    %3206 = vmatpush1.bf16.xpose.msra.mxu0 %v3185
    %3207 = vmatprep.subr.bf16.mxu0 0
    %3208 = vmatpush1.bf16.xpose.msra.mxu0 %v3188
    %3209 = vmatprep.subr.bf16.mxu0 0
    %3210 = vmatpush1.bf16.xpose.msra.mxu0 %v3191
    %3211 = vmatprep.subr.bf16.mxu0 0
    %3212 = vmatpush1.bf16.xpose.msra.mxu0 %v3194
    %3213 = vmatprep.subr.bf16.mxu0 0
    %3214 = vmatpush1.bf16.xpose.msra.mxu0 %v3197
    %3215 = vmatprep.subr.bf16.mxu0 0
    %3216 = vmatpush1.bf16.xpose.msra.mxu0 0
    %3217 = vmatprep.subr.bf16.mxu0 0
    %3218 = vmatpush1.bf16.xpose.msra.mxu0 0
    %3219 = vmatprep.subr.bf16.mxu0 0
    %3220 = vmatpush1.bf16.xpose.msra.mxu0 0
    %3221 = vmatprep.subr.bf16.mxu0 0
    %3222 = vmatpush1.bf16.xpose.msra.mxu0 0
    %3223 = vmatprep.subr.bf16.mxu0 0
    %3224 = vmatpush1.bf16.xpose.msra.mxu0 0
    %3225 = vmatprep.subr.bf16.mxu0 0
    %3226 = vmatpush1.bf16.xpose.msra.mxu0 0
    %3227 = vmatprep.subr.bf16.mxu0 0
    %3228 = vmatpush1.bf16.xpose.msra.mxu0 0
    %3229 = vmatprep.subr.bf16.mxu0 0
    %3230 = vmatpush1.bf16.xpose.msra.mxu0 0
    %3231 = vmatprep.mubr.bf16.mxu0 0
    %3232 = vmatmul.mubr.bf16.gmra.mrb[0].mxu0 %v3170
    %v3233 = vpop.f32.mrb[0].mxu0
    %v3234 = vadd.f32 0.0, %v3233
    %v3235 = vpop.f32.mrb[0].mxu0
    %v3236 = vpop.f32.mrb[0].mxu0
    %v3237 = vadd.f32 0.0, %v3236
    %v3238 = vpop.f32.mrb[0].mxu0
    %3239 = vmatprep.mubr.bf16.mxu0 0
    %3240 = vmatmul.mubr.bf16.gmra.mrb[0].mxu0 %v3173
    %v3241 = vpop.f32.mrb[0].mxu0
    %v3242 = vadd.f32 0.0, %v3241
    %v3243 = vpop.f32.mrb[0].mxu0
    %v3244 = vpop.f32.mrb[0].mxu0
    %v3245 = vpop.f32.mrb[0].mxu0
    %3246 = vdwg.mxu0
    %3247 = vst [vmem:[%s87] sm:$0xff] %v3234
    %3248 = vst [vmem:[%s87 + $0x8] sm:$0xff] %v3237
    %3249 = vst [vmem:[%s87 + $0x10] sm:$0x3] %v3242
    %v3250 = vld [vmem:[%s17] sm:$0xff]
    %v3251 = vld [vmem:[%s17 + $0x8] sm:$0xff]
    %v3252 = vld [vmem:[%s17 + $0x10] sm:$0x3]
    %3253 = vmax.xlane.f32.xlu0 %v3234
    %v3254 = vpop.xlane.xlu0 %3253
    %3255 = vmax.xlane.f32.xlu0 %v3237
    %v3256 = vpop.xlane.xlu0 %3255
    %vm3257 = vcmask 1041408
    %v3258 = vsel %vm3257, %v3242, -inf
    %3259 = vmax.xlane.f32.xlu0 %v3258
    %v3260 = vpop.xlane.xlu0 %3259
    %v3261 = vsub.f32 %v3234, %v3254
    %v3262 = vsub.f32 %v3237, %v3256
    %v3263 = vsub.f32 %v3242, %v3260
    %v3264 = vmul.f32 %v3261, 1.442695
    %v3265 = vpow.pop %v3264
    %v3266 = vmul.f32 %v3262, 1.442695
    %v3267 = vpow.pop %v3266
    %v3268 = vmul.f32 %v3263, 1.442695
    %v3269 = vpow.pop %v3268
    %3270 = vadd.xlane.f32.xlu0 %v3265
    %v3271 = vpop.xlane.xlu0 %3270
    %3272 = vadd.xlane.f32.xlu0 %v3267
    %v3273 = vpop.xlane.xlu0 %3272
    %v3274 = vsel %vm3257, %v3269, 0.0
    %3275 = vadd.xlane.f32.xlu0 %v3274
    %v3276 = vpop.xlane.xlu0 %3275
    %v3277 = vlog2.pop %v3271
    %v3278 = vmul.f32 %v3277, 0.6931472
    %v3279 = vlog2.pop %v3273
    %v3280 = vmul.f32 %v3279, 0.6931472
    %v3281 = vlog2.pop %v3276
    %v3282 = vmul.f32 %v3281, 0.6931472
    %v3283 = vadd.f32 %v3278, %v3254
    %v3284 = vadd.f32 %v3280, %v3256
    %v3285 = vadd.f32 %v3282, %v3260
    %3286 = vset.pattern.permute.xlu0 0
    %3287 = vperm.xlu0 %3286, %v3250
    %v3288 = vpop.permute.xlu0 %3287
    %3289 = vset.pattern.permute.xlu0 0
    %3290 = vperm.xlu0 %3289, %v3251
    %v3291 = vpop.permute.xlu0 %3290
    %3292 = vset.pattern.permute.xlu0 0
    %3293 = vperm.xlu0 %3292, %v3252
    %v3294 = vpop.permute.xlu0 %3293
    %vm3295 = vcmp.eq.s32.totalorder %v419, %v3288
    %vm3296 = vcmp.eq.s32.totalorder %v419, %v3291
    %vm3297 = vcmp.eq.s32.totalorder %v419, %v3294
    %v3298 = vsel %vm3295, %v3234, 0.0
    %v3299 = vsel %vm3296, %v3237, 0.0
    %v3300 = vsel %vm3297, %v3242, 0.0
    %3301 = vadd.xlane.f32.xlu0 %v3298
    %v3302 = vpop.xlane.xlu0 %3301
    %3303 = vadd.xlane.f32.xlu0 %v3299
    %v3304 = vpop.xlane.xlu0 %3303
    %v3305 = vsel %vm3257, %v3300, 0.0
    %3306 = vadd.xlane.f32.xlu0 %v3305
    %v3307 = vpop.xlane.xlu0 %3306
    %vm3308 = vcmp.ne.s32.totalorder %v3250, 4294967196
    %vm3309 = vcmp.ne.s32.totalorder %v3251, 4294967196
    %vm3310 = vcmp.ne.s32.totalorder %v3252, 4294967196
    %v3311 = vsel %vm3308, 1, 0
    %v3312 = vsel %vm3309, 1, 0
    %v3313 = vsel %vm3310, 1, 0
    %v3314 = vcvt.s32.f32 %v3311
    %v3315 = vcvt.s32.f32 %v3312
    %v3316 = vcvt.s32.f32 %v3313
    %v3317 = vsub.f32 %v3283, %v3302
    %v3318 = vsub.f32 %v3284, %v3304
    %v3319 = vsub.f32 %v3285, %v3307
    %v3320 = vmul.f32 %v3317, %v3314
    %v3321 = vmul.f32 %v3318, %v3315
    %v3322 = vmul.f32 %v3319, %v3316
    %vm3323 = vcmask 7168
    %v3324 = vsel %vm3323, %v3320, 0.0
    %v3325 = vsel %vm3323, %v3321, 0.0
    %v3326 = vadd.f32 %v3324, %v3325
    %vm3327 = vcmask 1024
    %v3328 = vsel %vm3327, %v3322, 0.0
    %v3329 = vadd.f32 %v3326, %v3328
    %v3330 = vrot.slane %v3329, 4
    %v3331 = vadd.f32 %v3329, %v3330
    %v3332 = vrot.slane %v3331, 2
    %v3333 = vadd.f32 %v3331, %v3332
    %v3334 = vrot.slane %v3333, 1
    %v3335 = vadd.f32 %v3333, %v3334
    %v3336 = vsel %vm3323, %v3314, 0.0
    %v3337 = vsel %vm3323, %v3315, 0.0
    %v3338 = vadd.f32 %v3336, %v3337
    %v3339 = vsel %vm3327, %v3316, 0.0
    %v3340 = vadd.f32 %v3338, %v3339
    %v3341 = vrot.slane %v3340, 4
    %v3342 = vadd.f32 %v3340, %v3341
    %v3343 = vrot.slane %v3342, 2
    %v3344 = vadd.f32 %v3342, %v3343
    %v3345 = vrot.slane %v3344, 1
    %v3346 = vadd.f32 %v3344, %v3345
    %v3347 = vmax.f32 %v3346, 1.0
    %v3348 = vrcp.pop %v3347
    %v3349 = vmul.f32 %v3335, %v3348
    %vm3350 = vcmask 0
    %3351 = vst.msk [vmem:[#allocation2] sm:$0x1] %vm3350, %v3349
    // Predicated region
    $region174: #{encoder_decoder_forward.1} parent=1 // pred_check
      _
    $region175: #{encoder_decoder_forward.1} parent=1 // pred_check_branch
      %3353 = sbr.rel (0) target = $region177
    $region176: #{encoder_decoder_forward.1} parent=1 // pred_region
      _
    $region177: #{encoder_decoder_forward.1} parent=1 // pred_fallthru
      _
    // Predicated region
    $region178: #{encoder_decoder_forward.1} parent=1 // pred_check
      _
    $region179: #{encoder_decoder_forward.1} parent=1 // pred_check_branch
      %3355 = sbr.rel (0) target = $region181
    $region180: #{encoder_decoder_forward.1} parent=1 // pred_region
      %s3357 = ssub.s32 16, 16
      %3358 = vsyncadd [#allocation3], %s3357
      %s3360 = sshll.u32 [#allocation2], 4
      %s3361 = int_to_ptr.vmem [resolvable:$true] %s3360
      %3363 = dma.vmem_to_hbm [thread:$0]  %s3361, 16, %s89, [#allocation3]
    $region181: #{encoder_decoder_forward.1} parent=1 // pred_fallthru
      _
    // Predicated region
    $region182: #{encoder_decoder_forward.1} parent=1 // pred_check
      _
    $region183: #{encoder_decoder_forward.1} parent=1 // pred_check_branch
      %3365 = sbr.rel (0) target = $region185
    $region184: #{encoder_decoder_forward.1} parent=1 // pred_region
      _
    $region185: #{encoder_decoder_forward.1} parent=1 // pred_fallthru
      _
    // Predicated region
    $region186: #{encoder_decoder_forward.1} parent=1 // pred_check
      _
    $region187: #{encoder_decoder_forward.1} parent=1 // pred_check_branch
      %3367 = sbr.rel (0) target = $region189
    $region188: #{encoder_decoder_forward.1} parent=1 // pred_region
      %3368 = dma.done [#allocation3], 16
    $region189: #{encoder_decoder_forward.1} parent=1 // pred_fallthru
      _
    %3369 = vsyncpa [#allocation3], 1

</llo_original>
